<compile_context>
chip_gen: v7x
topology: tpu7x:2x2x1
jax: 0.10.0
libtpu: 0.0.40
codegen_flags: <defaults>
</compile_context>

<pallas_src>
import functools

import jax
import jax.numpy as jnp
from jax.experimental import pallas as pl
from jax.experimental.pallas import tpu as pltpu

_SLOPE = 0.01                    # nn.LeakyReLU default negative_slope
_POOL = 8                        # F.interpolate target spatial size (8, 8)
_VMEM_LIMIT = 32 * 1024 * 1024   # safe scoped-VMEM budget on v5e/v6e/v7x


# ---------------------------------------------------------------------------
# Pallas kernel: fused  Flatten -> Linear(K,256) -> LeakyReLU
#                       -> Linear(256,128) -> LeakyReLU -> Linear(128,1)
#                       -> sigmoid
# The grid streams the K contraction of the first Linear (int8 weight tiles);
# the rest of the MLP runs in the finalize step entirely on VMEM-resident data.
# ---------------------------------------------------------------------------
def _head_kernel(flat_ref, w1q_ref, s1_ref, b1_ref, w2_ref, b2_ref,
                 w3_ref, b3_ref, out_ref, acc_ref):
    k = pl.program_id(0)

    @pl.when(k == 0)
    def _init():
        acc_ref[...] = jnp.zeros_like(acc_ref)

    # Streamed K-tile of Linear-1: int8 weight tile -> bf16 (exact, |q| <= 127),
    # bf16 MXU matmul with the streamed bf16 activation tile, f32 accumulation.
    # The per-column dequant scale is applied once at finalize, not per tile.
    w1_tile = w1q_ref[...].astype(jnp.bfloat16)
    acc_ref[...] += jnp.dot(flat_ref[...], w1_tile,
                            preferred_element_type=jnp.float32)

    @pl.when(k == pl.num_programs(0) - 1)
    def _finalize():
        # Dequant scale + bias + LeakyReLU (all f32, all in vregs).
        y1 = acc_ref[...] * s1_ref[...] + b1_ref[...]
        y1 = jnp.where(y1 >= 0, y1, _SLOPE * y1)
        # Linear-2 (256 -> 128) + LeakyReLU, still VMEM-resident.
        y2 = jnp.dot(y1, w2_ref[...],
                     preferred_element_type=jnp.float32) + b2_ref[...]
        y2 = jnp.where(y2 >= 0, y2, _SLOPE * y2)
        # Linear-3 (128 -> 1) as a lane reduction (avoids a 1-lane matmul),
        # then sigmoid (exp goes to the EUP slot).
        logit = jnp.sum(y2 * w3_ref[...], axis=-1, keepdims=True) + b3_ref[...]
        out_ref[...] = 1.0 / (1.0 + jnp.exp(-logit))


def _pick_tile_k(k_total, target=32768):
    """Largest multiple of 128 that divides K and is <= target.

    Never returns an oversized tile: worst case it degrades to 128 rather than
    falling back to the full K (which would blow the double-buffered VMEM
    budget for the real 131072-deep contraction).
    """
    assert k_total % 128 == 0, k_total
    target = min(target, k_total)
    tk = 128
    for cand in range(128, target + 1, 128):
        if k_total % cand == 0:
            tk = cand
    return tk


def _fused_mlp_head(flat, w1q, s1, b1, w2t, b2, w3r, b3, *, tk_target=32768):
    """flat: (N, K) bf16; w1q: (K, 256) int8; s1,b1: (1, 256) f32;
    w2t: (256, 128); b2: (1, 128); w3r: (1, 128); b3: (1, 1)."""
    n, k_total = flat.shape
    c1 = w1q.shape[1]
    c2 = w2t.shape[1]
    tk = _pick_tile_k(k_total, tk_target)
    assert tk % 128 == 0 and k_total % tk == 0, (tk, k_total)
    # Double-buffered streams (int8 weight + bf16 activations) must fit the
    # configured VMEM limit with ~1 MiB headroom for residents/acc/scratch.
    stream_bytes = 2 * (tk * c1 * 1 + n * tk * 2)
    assert stream_bytes + (1 << 20) < _VMEM_LIMIT, (tk, stream_bytes)

    return pl.pallas_call(
        _head_kernel,
        out_shape=jax.ShapeDtypeStruct((n, 1), jnp.float32),
        grid_spec=pltpu.PrefetchScalarGridSpec(
            num_scalar_prefetch=0,
            grid=(k_total // tk,),
            in_specs=[
                pl.BlockSpec((n, tk), lambda k: (0, k)),    # activations (streamed)
                pl.BlockSpec((tk, c1), lambda k: (k, 0)),   # W1 int8 (streamed)
                pl.BlockSpec((1, c1), lambda k: (0, 0)),    # W1 dequant scale
                pl.BlockSpec((1, c1), lambda k: (0, 0)),    # b1
                pl.BlockSpec((c1, c2), lambda k: (0, 0)),   # W2 (resident)
                pl.BlockSpec((1, c2), lambda k: (0, 0)),    # b2
                pl.BlockSpec((1, c2), lambda k: (0, 0)),    # W3 row
                pl.BlockSpec((1, 1), lambda k: (0, 0)),     # b3
            ],
            out_specs=pl.BlockSpec((n, 1), lambda k: (0, 0)),
            scratch_shapes=[pltpu.VMEM((n, c1), jnp.float32)],
        ),
        compiler_params=pltpu.CompilerParams(
            dimension_semantics=("arbitrary",),     # K reduction axis
            vmem_limit_bytes=_VMEM_LIMIT,
        ),
    )(flat, w1q, s1, b1, w2t, b2, w3r, b3)


# ---------------------------------------------------------------------------
# Glue: bilinear resize to (8, 8), align_corners=True, then flatten.
# ~1 MB of data vs ~32 MB of int8 weight streaming -> kept as a tiny XLA einsum.
# ---------------------------------------------------------------------------
def _bilinear_matrix(in_size, out_size):
    """(out_size, in_size) interpolation matrix, align_corners=True."""
    if out_size == 1:
        src = jnp.zeros((1,), jnp.float32)
    else:
        scale = (in_size - 1) / (out_size - 1)
        src = jnp.arange(out_size, dtype=jnp.float32) * scale
    i0 = jnp.clip(jnp.floor(src).astype(jnp.int32), 0, in_size - 1)
    i1 = jnp.minimum(i0 + 1, in_size - 1)
    frac = src - i0.astype(jnp.float32)
    rows = jnp.arange(out_size)
    m = jnp.zeros((out_size, in_size), jnp.float32)
    m = m.at[rows, i0].add(1.0 - frac)
    m = m.at[rows, i1].add(frac)
    return m


def _interp_flatten(feat):
    """(N, C, h, w) -> bilinear (8, 8) -> flatten to (N, C*64) (PyTorch order)."""
    n, c, h, w = feat.shape
    mh = _bilinear_matrix(h, _POOL)
    mw = _bilinear_matrix(w, _POOL)
    up = jnp.einsum("nchw,Hh,Ww->ncHW", feat, mh, mw)
    return up.reshape(n, c * _POOL * _POOL)


def prepare_params(params):
    """One-time packing of PyTorch-layout (out_features, in_features) params.

    W1 is quantized to int8 with a per-output-column symmetric f32 scale: the
    kernel is HBM-bound on the W1 stream, so int8 halves its bytes vs bf16
    (~2x wall time) while the per-column scale keeps dynamic range.
    """
    w1, b1, w2, b2, w3, b3 = params
    w1t = jnp.asarray(w1, jnp.float32).T                                # (K, 256)
    s1 = jnp.max(jnp.abs(w1t), axis=0, keepdims=True) / 127.0
    s1 = jnp.where(s1 > 0, s1, 1.0)                                     # guard all-zero cols
    w1q = jnp.clip(jnp.round(w1t / s1), -127, 127).astype(jnp.int8)     # (K, 256) int8
    return (
        w1q,
        s1.astype(jnp.float32),                           # (1, 256)
        jnp.asarray(b1, jnp.float32).reshape(1, -1),      # (1, 256)
        jnp.asarray(w2, jnp.float32).T,                   # (256, 128)
        jnp.asarray(b2, jnp.float32).reshape(1, -1),      # (1, 128)
        jnp.asarray(w3, jnp.float32).reshape(1, -1),      # (1, 128)
        jnp.asarray(b3, jnp.float32).reshape(1, 1),       # (1, 1)
    )


@functools.partial(jax.jit, static_argnames=("tk_target",))
def discriminator_head_forward(feat, packed, tk_target=32768):
    """feat: encoder's final feature map (N, C, h, w) -> sigmoid probs (N, 1)."""
    # Cast once in the wrapper: halves the activation HBM stream and removes a
    # per-tile VPU cast from the kernel hot loop.
    flat = _interp_flatten(feat).astype(jnp.bfloat16)
    return _fused_mlp_head(flat, *packed, tk_target=tk_target)


# ---------------------------------------------------------------------------
# Pure-JAX references.
# ---------------------------------------------------------------------------
@jax.jit
def _ref_same_convention(feat, packed):
    """Reference using the kernel's int8-W1 / bf16-activation convention."""
    w1q, s1, b1, w2t, b2, w3r, b3 = packed
    flat = _interp_flatten(feat).astype(jnp.bfloat16)
    y1 = jnp.dot(flat, w1q.astype(jnp.bfloat16),
                 preferred_element_type=jnp.float32) * s1 + b1
    y1 = jnp.where(y1 >= 0, y1, _SLOPE * y1)
    y2 = jnp.dot(y1, w2t, preferred_element_type=jnp.float32) + b2
    y2 = jnp.where(y2 >= 0, y2, _SLOPE * y2)
    logit = jnp.sum(y2 * w3r, axis=-1, keepdims=True) + b3
    return 1.0 / (1.0 + jnp.exp(-logit))


@jax.jit
def _ref_fp32(feat, raw):
    """Full-precision reference matching the original PyTorch math."""
    w1, b1, w2, b2, w3, b3 = raw
    flat = _interp_flatten(feat)
    y1 = flat @ w1.T + b1
    y1 = jnp.where(y1 >= 0, y1, _SLOPE * y1)
    y2 = y1 @ w2.T + b2
    y2 = jnp.where(y2 >= 0, y2, _SLOPE * y2)
    logit = y2 @ w3.T + b3
    return jax.nn.sigmoid(logit)


# ---------------------------------------------------------------------------
if __name__ == "__main__":
    key = jax.random.PRNGKey(0)
    k_f, k_w1, k_b1, k_w2, k_b2, k_w3, k_b3 = jax.random.split(key, 7)

    # Small self-test shapes (the real EfficientNet-b5 head has C = 2048, so
    # K = 2048*8*8 = 131072; the kernel/wrapper are shape-generic).
    N = 2
    C = 512
    H_FEAT = W_FEAT = 10          # encoder output spatial size (input-res dependent)
    HID1, HID2 = 256, 128
    K = C * _POOL * _POOL         # 32768

    feat = jax.random.normal(k_f, (N, C, H_FEAT, W_FEAT), jnp.float32)

    # Classifier params in PyTorch nn.Linear layout (out_features, in_features).
    w1 = 0.01 * jax.random.normal(k_w1, (HID1, K), jnp.float32)
    b1 = 0.01 * jax.random.normal(k_b1, (HID1,), jnp.float32)
    w2 = 0.05 * jax.random.normal(k_w2, (HID2, HID1), jnp.float32)
    b2 = 0.05 * jax.random.normal(k_b2, (HID2,), jnp.float32)
    w3 = 0.05 * jax.random.normal(k_w3, (1, HID2), jnp.float32)
    b3 = 0.05 * jax.random.normal(k_b3, (1,), jnp.float32)
    raw = (w1, b1, w2, b2, w3, b3)

    packed = prepare_params(raw)

    # tk_target=8192 -> 4 grid steps at this test size, exercising the
    # init / accumulate / finalize phases of the reduction.
    out = jax.block_until_ready(
        discriminator_head_forward(feat, packed, tk_target=8192))
    ref_q = jax.block_until_ready(_ref_same_convention(feat, packed))
    ref_f = jax.block_until_ready(_ref_fp32(feat, raw))

    assert out.shape == (N, 1), out.shape
    assert bool(jnp.all(jnp.isfinite(out)))
    # Tight: kernel vs pure-JAX reference with the identical numeric convention.
    err_kernel = float(jnp.max(jnp.abs(out - ref_q)))
    assert err_kernel < 3e-3, err_kernel
    # Loose: int8-W1 / bf16-activation path vs the original f32 math.
    err_quant = float(jnp.max(jnp.abs(out - ref_f)))
    assert err_quant < 3e-2, err_quant
    print("KERNEL_OK")
</pallas_src>

<mosaic_0001>
module attributes {stable_mosaic.version = 11 : i64} {
  func.func @_head_kernel(%arg0: i32, %arg1: memref<2x8192xbf16, #tpu.memory_space<vmem>>, %arg2: memref<8192x256xi8, #tpu.memory_space<vmem>>, %arg3: memref<1x256xf32, #tpu.memory_space<vmem>>, %arg4: memref<1x256xf32, #tpu.memory_space<vmem>>, %arg5: memref<256x128xf32, #tpu.memory_space<vmem>>, %arg6: memref<1x128xf32, #tpu.memory_space<vmem>>, %arg7: memref<1x128xf32, #tpu.memory_space<vmem>>, %arg8: memref<1x1xf32, #tpu.memory_space<vmem>>, %arg9: memref<2x1xf32, #tpu.memory_space<vmem>>, %arg10: memref<2x256xf32, #tpu.memory_space<vmem>>) attributes {dimension_semantics = [#tpu.dimension_semantics<arbitrary>], iteration_bounds = array<i64: 4>, scalar_prefetch = 0 : i64, scratch_operands = 1 : i64, tpu.core_type = #tpu.core_type<tc>, window_params = [{transform_indices = @transform_0, window_bounds = array<i64: 2, 8192>}, {transform_indices = @transform_1, window_bounds = array<i64: 8192, 256>}, {pipeline_mode = #tpu.pipeline_mode<synchronous>, transform_indices = @transform_2, window_bounds = array<i64: 1, 256>}, {pipeline_mode = #tpu.pipeline_mode<synchronous>, transform_indices = @transform_3, window_bounds = array<i64: 1, 256>}, {pipeline_mode = #tpu.pipeline_mode<synchronous>, transform_indices = @transform_4, window_bounds = array<i64: 256, 128>}, {pipeline_mode = #tpu.pipeline_mode<synchronous>, transform_indices = @transform_5, window_bounds = array<i64: 1, 128>}, {pipeline_mode = #tpu.pipeline_mode<synchronous>, transform_indices = @transform_6, window_bounds = array<i64: 1, 128>}, {pipeline_mode = #tpu.pipeline_mode<synchronous>, transform_indices = @transform_7, window_bounds = array<i64: 1, 1>}, {pipeline_mode = #tpu.pipeline_mode<synchronous>, transform_indices = @transform_8, window_bounds = array<i64: 2, 1>}]} {
    %c0_i32 = arith.constant 0 : i32
    %0 = arith.cmpi eq, %arg0, %c0_i32 : i32
    %1 = arith.extui %0 : i1 to i32
    %c0_i32_0 = arith.constant 0 : i32
    %2 = arith.cmpi ne, %1, %c0_i32_0 : i32
    scf.if %2 {
      %cst_9 = arith.constant 0.000000e+00 : f32
      %13 = vector.broadcast %cst_9 : f32 to vector<2x256xf32>
      %c0_10 = arith.constant 0 : index
      %c0_11 = arith.constant 0 : index
      %14 = vector.load %arg10[%c0_10, %c0_11] : memref<2x256xf32, #tpu.memory_space<vmem>>, vector<2x256xf32>
      tpu.vector_store %arg10[%c0_10, %c0_11], %13 {strides = array<i32>} : memref<2x256xf32, #tpu.memory_space<vmem>>, vector<2x256xf32>,
    } else {
    }
    %c0 = arith.constant 0 : index
    %c0_1 = arith.constant 0 : index
    %3 = vector.load %arg2[%c0, %c0_1] : memref<8192x256xi8, #tpu.memory_space<vmem>>, vector<8192x256xi8>
    %4 = arith.sitofp %3 : vector<8192x256xi8> to vector<8192x256xbf16>
    %c0_2 = arith.constant 0 : index
    %c0_3 = arith.constant 0 : index
    %5 = vector.load %arg10[%c0_2, %c0_3] : memref<2x256xf32, #tpu.memory_space<vmem>>, vector<2x256xf32>
    %c0_4 = arith.constant 0 : index
    %c0_5 = arith.constant 0 : index
    %6 = vector.load %arg1[%c0_4, %c0_5] : memref<2x8192xbf16, #tpu.memory_space<vmem>>, vector<2x8192xbf16>
    %cst = arith.constant dense<0.000000e+00> : vector<2x256xf32>
    %7 = tpu.matmul %6, %4, %cst {dimension_numbers = #tpu.dot_dimension_numbers<[1], [0], [0], [1], [0, 0, 1, 1], [], []>} : vector<2x8192xbf16>, vector<8192x256xbf16>, vector<2x256xf32> -> vector<2x256xf32>
    %8 = arith.addf %5, %7 : vector<2x256xf32>
    %c0_6 = arith.constant 0 : index
    %c0_7 = arith.constant 0 : index
    %9 = vector.load %arg10[%c0_6, %c0_7] : memref<2x256xf32, #tpu.memory_space<vmem>>, vector<2x256xf32>
    tpu.vector_store %arg10[%c0_6, %c0_7], %8 {strides = array<i32>} : memref<2x256xf32, #tpu.memory_space<vmem>>, vector<2x256xf32>,
    %c3_i32 = arith.constant 3 : i32
    %10 = arith.cmpi eq, %arg0, %c3_i32 : i32
    %11 = arith.extui %10 : i1 to i32
    %c0_i32_8 = arith.constant 0 : i32
    %12 = arith.cmpi ne, %11, %c0_i32_8 : i32
    scf.if %12 {
      %c0_9 = arith.constant 0 : index
      %c0_10 = arith.constant 0 : index
      %13 = vector.load %arg10[%c0_9, %c0_10] : memref<2x256xf32, #tpu.memory_space<vmem>>, vector<2x256xf32>
      %c0_11 = arith.constant 0 : index
      %c0_12 = arith.constant 0 : index
      %14 = vector.load %arg3[%c0_11, %c0_12] : memref<1x256xf32, #tpu.memory_space<vmem>>, vector<1x256xf32>
      %15 = vector.broadcast %14 : vector<1x256xf32> to vector<2x256xf32>
      %16 = arith.mulf %13, %15 : vector<2x256xf32>
      %c0_13 = arith.constant 0 : index
      %c0_14 = arith.constant 0 : index
      %17 = vector.load %arg4[%c0_13, %c0_14] : memref<1x256xf32, #tpu.memory_space<vmem>>, vector<1x256xf32>
      %18 = vector.broadcast %17 : vector<1x256xf32> to vector<2x256xf32>
      %19 = arith.addf %16, %18 : vector<2x256xf32>
      %cst_15 = arith.constant 0.000000e+00 : f32
      %20 = vector.broadcast %cst_15 : f32 to vector<2x256xf32>
      %21 = arith.cmpf oge, %19, %20 : vector<2x256xf32>
      %cst_16 = arith.constant 0.00999999977 : f32
      %22 = vector.broadcast %cst_16 : f32 to vector<2x256xf32>
      %23 = arith.mulf %22, %19 : vector<2x256xf32>
      %24 = arith.select %21, %19, %23 : vector<2x256xi1>, vector<2x256xf32>
      %c0_17 = arith.constant 0 : index
      %c0_18 = arith.constant 0 : index
      %25 = vector.load %arg5[%c0_17, %c0_18] : memref<256x128xf32, #tpu.memory_space<vmem>>, vector<256x128xf32>
      %cst_19 = arith.constant dense<0.000000e+00> : vector<2x128xf32>
      %26 = tpu.matmul %24, %25, %cst_19 {dimension_numbers = #tpu.dot_dimension_numbers<[1], [0], [0], [1], [0, 0, 1, 1], [], []>} : vector<2x256xf32>, vector<256x128xf32>, vector<2x128xf32> -> vector<2x128xf32>
      %c0_20 = arith.constant 0 : index
      %c0_21 = arith.constant 0 : index
      %27 = vector.load %arg6[%c0_20, %c0_21] : memref<1x128xf32, #tpu.memory_space<vmem>>, vector<1x128xf32>
      %28 = vector.broadcast %27 : vector<1x128xf32> to vector<2x128xf32>
      %29 = arith.addf %26, %28 : vector<2x128xf32>
      %cst_22 = arith.constant 0.000000e+00 : f32
      %30 = vector.broadcast %cst_22 : f32 to vector<2x128xf32>
      %31 = arith.cmpf oge, %29, %30 : vector<2x128xf32>
      %cst_23 = arith.constant 0.00999999977 : f32
      %32 = vector.broadcast %cst_23 : f32 to vector<2x128xf32>
      %33 = arith.mulf %32, %29 : vector<2x128xf32>
      %34 = arith.select %31, %29, %33 : vector<2x128xi1>, vector<2x128xf32>
      %c0_24 = arith.constant 0 : index
      %c0_25 = arith.constant 0 : index
      %35 = vector.load %arg7[%c0_24, %c0_25] : memref<1x128xf32, #tpu.memory_space<vmem>>, vector<1x128xf32>
      %36 = vector.broadcast %35 : vector<1x128xf32> to vector<2x128xf32>
      %37 = arith.mulf %34, %36 : vector<2x128xf32>
      %cst_26 = arith.constant dense<0.000000e+00> : vector<2xf32>
      %38 = vector.multi_reduction <add>, %37, %cst_26 [1] : vector<2x128xf32> to vector<2xf32>
      %39 = vector.shape_cast %38 : vector<2xf32> to vector<2x1xf32>
      %c0_27 = arith.constant 0 : index
      %c0_28 = arith.constant 0 : index
      %40 = vector.load %arg8[%c0_27, %c0_28] : memref<1x1xf32, #tpu.memory_space<vmem>>, vector<1x1xf32>
      %41 = vector.broadcast %40 : vector<1x1xf32> to vector<2x1xf32>
      %42 = arith.addf %39, %41 : vector<2x1xf32>
      %cst_29 = arith.constant 0.000000e+00 : f32
      %43 = vector.broadcast %cst_29 : f32 to vector<2x1xf32>
      %44 = arith.subf %43, %42 : vector<2x1xf32>
      %45 = math.exp %44 : vector<2x1xf32>
      %cst_30 = arith.constant 1.000000e+00 : f32
      %46 = vector.broadcast %cst_30 : f32 to vector<2x1xf32>
      %47 = arith.addf %46, %45 : vector<2x1xf32>
      %cst_31 = arith.constant 1.000000e+00 : f32
      %48 = vector.broadcast %cst_31 : f32 to vector<2x1xf32>
      %49 = arith.divf %48, %47 : vector<2x1xf32>
      %c0_32 = arith.constant 0 : index
      %c0_33 = arith.constant 0 : index
      %50 = vector.load %arg9[%c0_32, %c0_33] : memref<2x1xf32, #tpu.memory_space<vmem>>, vector<2x1xf32>
      tpu.vector_store %arg9[%c0_32, %c0_33], %49 {strides = array<i32>} : memref<2x1xf32, #tpu.memory_space<vmem>>, vector<2x1xf32>,
    } else {
    }
    return
  }
  func.func @transform_0(%arg0: i32) -> (i32, i32) {
    %c0_i32 = arith.constant 0 : i32
    %c0_i32_0 = arith.constant 0 : i32
    return %c0_i32, %arg0 : i32, i32
  }
  func.func @transform_1(%arg0: i32) -> (i32, i32) {
    %c0_i32 = arith.constant 0 : i32
    %c0_i32_0 = arith.constant 0 : i32
    return %arg0, %c0_i32 : i32, i32
  }
  func.func @transform_2(%arg0: i32) -> (i32, i32) {
    %c0_i32 = arith.constant 0 : i32
    %c0_i32_0 = arith.constant 0 : i32
    %c0_i32_1 = arith.constant 0 : i32
    return %c0_i32, %c0_i32_0 : i32, i32
  }
  func.func @transform_3(%arg0: i32) -> (i32, i32) {
    %c0_i32 = arith.constant 0 : i32
    %c0_i32_0 = arith.constant 0 : i32
    %c0_i32_1 = arith.constant 0 : i32
    return %c0_i32, %c0_i32_0 : i32, i32
  }
  func.func @transform_4(%arg0: i32) -> (i32, i32) {
    %c0_i32 = arith.constant 0 : i32
    %c0_i32_0 = arith.constant 0 : i32
    %c0_i32_1 = arith.constant 0 : i32
    return %c0_i32, %c0_i32_0 : i32, i32
  }
  func.func @transform_5(%arg0: i32) -> (i32, i32) {
    %c0_i32 = arith.constant 0 : i32
    %c0_i32_0 = arith.constant 0 : i32
    %c0_i32_1 = arith.constant 0 : i32
    return %c0_i32, %c0_i32_0 : i32, i32
  }
  func.func @transform_6(%arg0: i32) -> (i32, i32) {
    %c0_i32 = arith.constant 0 : i32
    %c0_i32_0 = arith.constant 0 : i32
    %c0_i32_1 = arith.constant 0 : i32
    return %c0_i32, %c0_i32_0 : i32, i32
  }
  func.func @transform_7(%arg0: i32) -> (i32, i32) {
    %c0_i32 = arith.constant 0 : i32
    %c0_i32_0 = arith.constant 0 : i32
    %c0_i32_1 = arith.constant 0 : i32
    return %c0_i32, %c0_i32_0 : i32, i32
  }
  func.func @transform_8(%arg0: i32) -> (i32, i32) {
    %c0_i32 = arith.constant 0 : i32
    %c0_i32_0 = arith.constant 0 : i32
    %c0_i32_1 = arith.constant 0 : i32
    return %c0_i32, %c0_i32_0 : i32, i32
  }
}

</mosaic_0001>

<llo_original>
// kernel: discriminator_head_forward.1
$region0: #{discriminator_head_forward.1}
  #allocation0 [shape = 'u32[]', space=smem, size = 0x4, offset = 0x4, fixed_abs, tag = 'smem constant byte address 0x4 - core index']
  #allocation1 [shape = 'u32[144,128]{1,0:T(1,128)}', space=vmem, size = 0x12000, scoped, tag = 'internal scratch']
  #allocation2 [shape = 'f32[2,256]{1,0:T(2,128)}', space=vmem, size = 0x800, scoped, tag = 'scratch operand']
  #allocation3 [shape = 'f32[1,1]{1,0:T(1,128)S(1)}', space=vmem, size = 0x200, scoped, tag = 'scoped memory for discriminator_head_forward.1']
  %s0 = inlined_call_operand.vmem [shape: bf16[2,32768], index: 0, kind: input, shape index: {}]
  %s1 = inlined_call_operand.hbm [shape: s8[32768,256], index: 1, kind: input, shape index: {}]
  %s2 = inlined_call_operand.hbm [shape: f32[1,256], index: 2, kind: input, shape index: {}]
  %s3 = inlined_call_operand.hbm [shape: f32[1,256], index: 3, kind: input, shape index: {}]
  %s4 = inlined_call_operand.hbm [shape: f32[256,128], index: 4, kind: input, shape index: {}]
  %s5 = inlined_call_operand.hbm [shape: f32[1,128], index: 5, kind: input, shape index: {}]
  %s6 = inlined_call_operand.hbm [shape: f32[1,128], index: 6, kind: input, shape index: {}]
  %s7 = inlined_call_operand.<no memory space> [shape: f32[1,1], index: 7, kind: input, shape index: {}]
  %s8 = inlined_call_operand.vmem [shape: f32[2,1], index: 8, kind: output, shape index: {}]
  %s9 = sld [smem:[#allocation0]]
  $region97: #{discriminator_head_forward.1} parent=0
    _
  %s11 = ssub.s32 1, %s9
  %s12 = scalar_select 0, %s11, %s9
  %v13 = vstv %s7
  %14 = vst [vmem:[#allocation3] sm:$0x1] %v13
  $region1: #{discriminator_head_forward.1} parent=0
    #allocation4 [shape = 'u8[4194304]{0}', space=vmem, size = 0x400000, scoped, tag = 'input window, operand 1']
    #allocation5 [shape = 's32[2]{0}', space=sflag, size = 0x8, scoped, tag = 'scoped memory for discriminator_head_forward.1']
    #allocation6 [shape = 'u8[1024]{0}', space=vmem, size = 0x400, scoped, tag = 'input window, operand 2, single buffered']
    #allocation7 [shape = 's32[1]{0}', space=sflag, size = 0x4, scoped, tag = 'scoped memory for discriminator_head_forward.1']
    #allocation8 [shape = 'u8[1024]{0}', space=vmem, size = 0x400, scoped, tag = 'input window, operand 3, single buffered']
    #allocation9 [shape = 'u8[131072]{0}', space=vmem, size = 0x20000, scoped, tag = 'input window, operand 4, single buffered']
    #allocation10 [shape = 's32[1]{0}', space=sflag, size = 0x4, scoped, tag = 'scoped memory for discriminator_head_forward.1']
    #allocation11 [shape = 'u8[512]{0}', space=vmem, size = 0x400, scoped, tag = 'input window, operand 5, single buffered']
    #allocation12 [shape = 'u8[512]{0}', space=vmem, size = 0x400, scoped, tag = 'input window, operand 6, single buffered']
    #allocation13 [shape = 's32[1]{0}', space=sflag, size = 0x4, scoped, tag = 'scoped memory for discriminator_head_forward.1']
    %15 = vsyncpa [#allocation5], 0
    %s16 = scalar_lea.sflag [#allocation5], 1
    %17 = vsyncpa %s16, 0
    %18 = vsyncpa [#allocation7], 0
    %19 = vsyncpa [#allocation10], 0
    %20 = vsyncpa [#allocation13], 0
    loop: start=0, step=1, limit=6
    $region2: #{discriminator_head_forward.1} parent=1 // loop_pre_header
      _
    $region3: #{discriminator_head_forward.1} parent=1 // loop_header
      %s22 = sphi 0, %s26
      %p23 = scmp.ge.s32.totalorder %s22, 6
      %s32 = sphi 0, %s34
      %s35 = sphi 0, %s32
      %s36 = sphi 0, %s35
      %s52 = sphi 0, %s36
      %s58 = sphi 0, %s60
      %s61 = sphi 0, %s58
      %s62 = sphi 0, %s61
      %s78 = sphi 0, %s62
      %s82 = sphi 0, %s82
      %s84 = sphi 0, %s82
      %s85 = sphi 0, %s84
      %s99 = sphi 0, %s85
      %s103 = sphi 0, %s103
      %s105 = sphi 0, %s103
      %s106 = sphi 0, %s105
      %s120 = sphi 0, %s106
      %s124 = sphi 0, %s124
      %s126 = sphi 0, %s124
      %s127 = sphi 0, %s126
      %s141 = sphi 0, %s127
      %s145 = sphi 0, %s145
      %s147 = sphi 0, %s145
      %s148 = sphi 0, %s147
      %s162 = sphi 0, %s148
      %s166 = sphi 0, %s166
      %s168 = sphi 0, %s166
      %s169 = sphi 0, %s168
      %s183 = sphi 0, %s169
      %s187 = sphi 0, %s187
      %s189 = sphi 0, %s187
      %s190 = sphi 0, %s189
      %s204 = sphi 0, %s190
      %s208 = sphi 0, %s208
      %s210 = sphi 0, %s208
      %s211 = sphi 0, %s210
      %s225 = sphi 0, %s211
    $region4: #{discriminator_head_forward.1} parent=1 // loop_header_branch
      %25 = sbr.rel (%p23) target = $region8
    $region5: #{discriminator_head_forward.1} parent=1 // loop_body
      %s27 = ssub.s32 %s22, 1
      %s28 = ssub.s32 %s22, 2
      %s29 = sadd.s32 %s22, 1
      %s30 = ssub.s32 %s22, %s29
      %p31 = scmp.eq.s32.totalorder %s30, 0
      %s33 = sadd.s32 %s32, 1
      %s34 = scalar_select %p31, %s32, %s33
      %p37 = pneg %p31
      %p38 = scmp.eq.s32.totalorder %s22, 3
      %p39 = por %p37, %p38
      %p40 = scmp.ne.s32.totalorder %s32, %s35
      %p41 = scmp.eq.s32.totalorder %s22, 0
      %p42 = por %p40, %p41
      %p43 = scmp.ne.s32.totalorder %s32, %s35
      %p44 = scmp.eq.s32.totalorder %s27, 3
      %p45 = por %p43, %p44
      %p46 = scmp.ne.s32.totalorder %s35, %s36
      %p47 = scmp.eq.s32.totalorder %s27, 0
      %p48 = por %p46, %p47
      %p49 = scmp.ne.s32.totalorder %s35, %s36
      %p50 = scmp.eq.s32.totalorder %s28, 3
      %p51 = por %p49, %p50
      %p53 = scmp.ne.s32.totalorder %s36, %s52
      %p54 = scmp.eq.s32.totalorder %s28, 0
      %p55 = por %p53, %p54
      %s56 = ssub.s32 %s22, %s29
      %p57 = scmp.eq.s32.totalorder %s56, 0
      %s59 = sadd.s32 %s58, 1
      %s60 = scalar_select %p57, %s58, %s59
      %p63 = pneg %p57
      %p64 = scmp.eq.s32.totalorder %s22, 3
      %p65 = por %p63, %p64
      %p66 = scmp.ne.s32.totalorder %s58, %s61
      %p67 = scmp.eq.s32.totalorder %s22, 0
      %p68 = por %p66, %p67
      %p69 = scmp.ne.s32.totalorder %s58, %s61
      %p70 = scmp.eq.s32.totalorder %s27, 3
      %p71 = por %p69, %p70
      %p72 = scmp.ne.s32.totalorder %s61, %s62
      %p73 = scmp.eq.s32.totalorder %s27, 0
      %p74 = por %p72, %p73
      %p75 = scmp.ne.s32.totalorder %s61, %s62
      %p76 = scmp.eq.s32.totalorder %s28, 3
      %p77 = por %p75, %p76
      %p79 = scmp.ne.s32.totalorder %s62, %s78
      %p80 = scmp.eq.s32.totalorder %s28, 0
      %p81 = por %p79, %p80
      %s83 = sadd.s32 %s82, 1
      %p86 = scmp.eq.s32.totalorder %s22, 3
      %p87 = scmp.ne.s32.totalorder %s82, %s84
      %p88 = scmp.eq.s32.totalorder %s22, 0
      %p89 = por %p87, %p88
      %p90 = scmp.ne.s32.totalorder %s82, %s84
      %p91 = scmp.eq.s32.totalorder %s27, 3
      %p92 = por %p90, %p91
      %p93 = scmp.ne.s32.totalorder %s84, %s85
      %p94 = scmp.eq.s32.totalorder %s27, 0
      %p95 = por %p93, %p94
      %p96 = scmp.ne.s32.totalorder %s84, %s85
      %p97 = scmp.eq.s32.totalorder %s28, 3
      %p98 = por %p96, %p97
      %p100 = scmp.ne.s32.totalorder %s85, %s99
      %p101 = scmp.eq.s32.totalorder %s28, 0
      %p102 = por %p100, %p101
      %s104 = sadd.s32 %s103, 1
      %p107 = scmp.eq.s32.totalorder %s22, 3
      %p108 = scmp.ne.s32.totalorder %s103, %s105
      %p109 = scmp.eq.s32.totalorder %s22, 0
      %p110 = por %p108, %p109
      %p111 = scmp.ne.s32.totalorder %s103, %s105
      %p112 = scmp.eq.s32.totalorder %s27, 3
      %p113 = por %p111, %p112
      %p114 = scmp.ne.s32.totalorder %s105, %s106
      %p115 = scmp.eq.s32.totalorder %s27, 0
      %p116 = por %p114, %p115
      %p117 = scmp.ne.s32.totalorder %s105, %s106
      %p118 = scmp.eq.s32.totalorder %s28, 3
      %p119 = por %p117, %p118
      %p121 = scmp.ne.s32.totalorder %s106, %s120
      %p122 = scmp.eq.s32.totalorder %s28, 0
      %p123 = por %p121, %p122
      %s125 = sadd.s32 %s124, 1
      %p128 = scmp.eq.s32.totalorder %s22, 3
      %p129 = scmp.ne.s32.totalorder %s124, %s126
      %p130 = scmp.eq.s32.totalorder %s22, 0
      %p131 = por %p129, %p130
      %p132 = scmp.ne.s32.totalorder %s124, %s126
      %p133 = scmp.eq.s32.totalorder %s27, 3
      %p134 = por %p132, %p133
      %p135 = scmp.ne.s32.totalorder %s126, %s127
      %p136 = scmp.eq.s32.totalorder %s27, 0
      %p137 = por %p135, %p136
      %p138 = scmp.ne.s32.totalorder %s126, %s127
      %p139 = scmp.eq.s32.totalorder %s28, 3
      %p140 = por %p138, %p139
      %p142 = scmp.ne.s32.totalorder %s127, %s141
      %p143 = scmp.eq.s32.totalorder %s28, 0
      %p144 = por %p142, %p143
      %s146 = sadd.s32 %s145, 1
      %p149 = scmp.eq.s32.totalorder %s22, 3
      %p150 = scmp.ne.s32.totalorder %s145, %s147
      %p151 = scmp.eq.s32.totalorder %s22, 0
      %p152 = por %p150, %p151
      %p153 = scmp.ne.s32.totalorder %s145, %s147
      %p154 = scmp.eq.s32.totalorder %s27, 3
      %p155 = por %p153, %p154
      %p156 = scmp.ne.s32.totalorder %s147, %s148
      %p157 = scmp.eq.s32.totalorder %s27, 0
      %p158 = por %p156, %p157
      %p159 = scmp.ne.s32.totalorder %s147, %s148
      %p160 = scmp.eq.s32.totalorder %s28, 3
      %p161 = por %p159, %p160
      %p163 = scmp.ne.s32.totalorder %s148, %s162
      %p164 = scmp.eq.s32.totalorder %s28, 0
      %p165 = por %p163, %p164
      %s167 = sadd.s32 %s166, 1
      %p170 = scmp.eq.s32.totalorder %s22, 3
      %p171 = scmp.ne.s32.totalorder %s166, %s168
      %p172 = scmp.eq.s32.totalorder %s22, 0
      %p173 = por %p171, %p172
      %p174 = scmp.ne.s32.totalorder %s166, %s168
      %p175 = scmp.eq.s32.totalorder %s27, 3
      %p176 = por %p174, %p175
      %p177 = scmp.ne.s32.totalorder %s168, %s169
      %p178 = scmp.eq.s32.totalorder %s27, 0
      %p179 = por %p177, %p178
      %p180 = scmp.ne.s32.totalorder %s168, %s169
      %p181 = scmp.eq.s32.totalorder %s28, 3
      %p182 = por %p180, %p181
      %p184 = scmp.ne.s32.totalorder %s169, %s183
      %p185 = scmp.eq.s32.totalorder %s28, 0
      %p186 = por %p184, %p185
      %s188 = sadd.s32 %s187, 1
      %p191 = scmp.eq.s32.totalorder %s22, 3
      %p192 = scmp.ne.s32.totalorder %s187, %s189
      %p193 = scmp.eq.s32.totalorder %s22, 0
      %p194 = por %p192, %p193
      %p195 = scmp.ne.s32.totalorder %s187, %s189
      %p196 = scmp.eq.s32.totalorder %s27, 3
      %p197 = por %p195, %p196
      %p198 = scmp.ne.s32.totalorder %s189, %s190
      %p199 = scmp.eq.s32.totalorder %s27, 0
      %p200 = por %p198, %p199
      %p201 = scmp.ne.s32.totalorder %s189, %s190
      %p202 = scmp.eq.s32.totalorder %s28, 3
      %p203 = por %p201, %p202
      %p205 = scmp.ne.s32.totalorder %s190, %s204
      %p206 = scmp.eq.s32.totalorder %s28, 0
      %p207 = por %p205, %p206
      %s209 = sadd.s32 %s208, 1
      %p212 = scmp.eq.s32.totalorder %s22, 3
      %p213 = scmp.ne.s32.totalorder %s208, %s210
      %p214 = scmp.eq.s32.totalorder %s22, 0
      %p215 = por %p213, %p214
      %p216 = scmp.ne.s32.totalorder %s208, %s210
      %p217 = scmp.eq.s32.totalorder %s27, 3
      %p218 = por %p216, %p217
      %p219 = scmp.ne.s32.totalorder %s210, %s211
      %p220 = scmp.eq.s32.totalorder %s27, 0
      %p221 = por %p219, %p220
      %p222 = scmp.ne.s32.totalorder %s210, %s211
      %p223 = scmp.eq.s32.totalorder %s28, 3
      %p224 = por %p222, %p223
      %p226 = scmp.ne.s32.totalorder %s211, %s225
      %p227 = scmp.eq.s32.totalorder %s28, 0
      %p228 = por %p226, %p227
      %p229 = scmp.le.s32.totalorder 1, %s22
      %p230 = scmp.lt.s32.totalorder %s22, 5
      %p231 = pnand %p229, %p230
      %p232 = pneg %p231
      // Predicated region
      $region9: #{discriminator_head_forward.1} parent=5 // pred_check
        _
      $region10: #{discriminator_head_forward.1} parent=5 // pred_check_branch
        %234 = sbr.rel (%p231) target = $region12
      $region11: #{discriminator_head_forward.1} parent=5 // pred_region
        %s235 = ssub.s32 %s22, 1
        // Predicated region
        $region13: #{discriminator_head_forward.1} parent=11 // pred_check
          %p236 = pneg %p95
        $region14: #{discriminator_head_forward.1} parent=11 // pred_check_branch
          %238 = sbr.rel (%p236) target = $region16
        $region15: #{discriminator_head_forward.1} parent=11 // pred_region
          %s240 = ssub.s32 32, 32
          %241 = vsyncadd [#allocation7], %s240
          %s243 = sshll.u32 [#allocation6], 4
          %s244 = int_to_ptr.vmem [resolvable:$true] %s243
          %246 = dma.hbm_to_vmem [thread:$0]  %s2, 32, %s244, [#allocation7]
        $region16: #{discriminator_head_forward.1} parent=11 // pred_fallthru
          _
        // Predicated region
        $region17: #{discriminator_head_forward.1} parent=11 // pred_check
          %p247 = pneg %p116
        $region18: #{discriminator_head_forward.1} parent=11 // pred_check_branch
          %249 = sbr.rel (%p247) target = $region20
        $region19: #{discriminator_head_forward.1} parent=11 // pred_region
          %s251 = ssub.s32 32, 32
          %252 = vsyncadd [#allocation7], %s251
          %s254 = sshll.u32 [#allocation8], 4
          %s255 = int_to_ptr.vmem [resolvable:$true] %s254
          %257 = dma.hbm_to_vmem [thread:$0]  %s3, 32, %s255, [#allocation7]
        $region20: #{discriminator_head_forward.1} parent=11 // pred_fallthru
          _
        // Predicated region
        $region21: #{discriminator_head_forward.1} parent=11 // pred_check
          %p258 = pneg %p137
        $region22: #{discriminator_head_forward.1} parent=11 // pred_check_branch
          %260 = sbr.rel (%p258) target = $region24
        $region23: #{discriminator_head_forward.1} parent=11 // pred_region
          %s262 = ssub.s32 4096, 4096
          %263 = vsyncadd [#allocation10], %s262
          %s264 = sshll.u32 [#allocation9], 4
          %s265 = int_to_ptr.vmem [resolvable:$true] %s264
          %270 = dma.hbm_to_vmem [thread:$0]  %s4, 4096, %s265, [#allocation10], 128, 128, 8
        $region24: #{discriminator_head_forward.1} parent=11 // pred_fallthru
          _
        // Predicated region
        $region25: #{discriminator_head_forward.1} parent=11 // pred_check
          %p271 = pneg %p158
        $region26: #{discriminator_head_forward.1} parent=11 // pred_check_branch
          %273 = sbr.rel (%p271) target = $region28
        $region27: #{discriminator_head_forward.1} parent=11 // pred_region
          %s275 = ssub.s32 16, 16
          %276 = vsyncadd [#allocation10], %s275
          %s278 = sshll.u32 [#allocation11], 4
          %s279 = int_to_ptr.vmem [resolvable:$true] %s278
          %281 = dma.hbm_to_vmem [thread:$0]  %s5, 16, %s279, [#allocation10]
        $region28: #{discriminator_head_forward.1} parent=11 // pred_fallthru
          _
        // Predicated region
        $region29: #{discriminator_head_forward.1} parent=11 // pred_check
          %p282 = pneg %p179
        $region30: #{discriminator_head_forward.1} parent=11 // pred_check_branch
          %284 = sbr.rel (%p282) target = $region32
        $region31: #{discriminator_head_forward.1} parent=11 // pred_region
          %s286 = ssub.s32 16, 16
          %287 = vsyncadd [#allocation13], %s286
          %s289 = sshll.u32 [#allocation12], 4
          %s290 = int_to_ptr.vmem [resolvable:$true] %s289
          %292 = dma.hbm_to_vmem [thread:$0]  %s6, 16, %s290, [#allocation13]
        $region32: #{discriminator_head_forward.1} parent=11 // pred_fallthru
          _
        // Predicated region
        $region33: #{discriminator_head_forward.1} parent=11 // pred_check
          %p293 = pneg %p200
        $region34: #{discriminator_head_forward.1} parent=11 // pred_check_branch
          %295 = sbr.rel (%p293) target = $region36
        $region35: #{discriminator_head_forward.1} parent=11 // pred_region
          _
        $region36: #{discriminator_head_forward.1} parent=11 // pred_fallthru
          _
      $region12: #{discriminator_head_forward.1} parent=5 // pred_fallthru
        _
      %p296 = scmp.lt.s32.totalorder %s22, 4
      // Predicated region
      $region37: #{discriminator_head_forward.1} parent=5 // pred_check
        %p297 = pneg %p296
      $region38: #{discriminator_head_forward.1} parent=5 // pred_check_branch
        %299 = sbr.rel (%p297) target = $region40
      $region39: #{discriminator_head_forward.1} parent=5 // pred_region
        // Predicated region
        $region41: #{discriminator_head_forward.1} parent=39 // pred_check
          %p300 = pneg %p42
        $region42: #{discriminator_head_forward.1} parent=39 // pred_check_branch
          %302 = sbr.rel (%p300) target = $region44
        $region43: #{discriminator_head_forward.1} parent=39 // pred_region
          %s303 = smul.u32 64, %s22
          %p304 = scmp.lt.s32.totalorder %s303, 255
          %s305 = scalar_select %p304, %s303, 255
          %s306 = scalar_lea.vmem %s0, %s305
          %s307 = smul.u32 64, %s22
        $region44: #{discriminator_head_forward.1} parent=39 // pred_fallthru
          _
        // Predicated region
        $region45: #{discriminator_head_forward.1} parent=39 // pred_check
          %p308 = pneg %p68
        $region46: #{discriminator_head_forward.1} parent=39 // pred_check_branch
          %310 = sbr.rel (%p308) target = $region48
        $region47: #{discriminator_head_forward.1} parent=39 // pred_region
          %s311 = sand.u32 %s58, 1
          %s312 = scalar_lea.sflag [#allocation5], %s311
          %s313 = sand.u32 %s58, 1
          %s314 = smul.addr %s313, 4096
          %s315 = scalar_lea.vmem [#allocation4], %s314
          %s316 = smul.u32 256, %s22
          %s318 = ssub.s32 65536, 65536
          %319 = vsyncadd %s312, %s318
          %s320 = smul.addr %s316, 2
          %s321 = smul.addr %s320, 128
          %s322 = scalar_lea.hbm %s1, %s321
          %s323 = sshll.u32 %s315, 4
          %s324 = int_to_ptr.vmem [resolvable:$true] %s323
          %329 = dma.hbm_to_vmem [thread:$0]  %s322, 65536, %s324, %s312, 256, 256, 16
        $region48: #{discriminator_head_forward.1} parent=39 // pred_fallthru
          _
      $region40: #{discriminator_head_forward.1} parent=5 // pred_fallthru
        _
      %p330 = scmp.le.s32.totalorder 1, %s22
      %p331 = scmp.lt.s32.totalorder %s22, 5
      %p332 = pnand %p330, %p331
      %p333 = pneg %p332
      // Predicated region
      $region49: #{discriminator_head_forward.1} parent=5 // pred_check
        _
      $region50: #{discriminator_head_forward.1} parent=5 // pred_check_branch
        %335 = sbr.rel (%p332) target = $region52
      $region51: #{discriminator_head_forward.1} parent=5 // pred_region
        %s336 = ssub.s32 %s22, 1
        %s337 = sand.u32 %s61, 1
        %s338 = scalar_lea.sflag [#allocation5], %s337
        %s339 = sand.u32 %s61, 1
        %s340 = smul.addr %s339, 4096
        %s341 = scalar_lea.vmem [#allocation4], %s340
        // Predicated region
        $region53: #{discriminator_head_forward.1} parent=51 // pred_check
          %p342 = pneg %p74
        $region54: #{discriminator_head_forward.1} parent=51 // pred_check_branch
          %344 = sbr.rel (%p342) target = $region56
        $region55: #{discriminator_head_forward.1} parent=51 // pred_region
          %345 = dma.done %s338, 65536
        $region56: #{discriminator_head_forward.1} parent=51 // pred_fallthru
          _
        // Predicated region
        $region57: #{discriminator_head_forward.1} parent=51 // pred_check
          %p346 = pneg %p95
        $region58: #{discriminator_head_forward.1} parent=51 // pred_check_branch
          %348 = sbr.rel (%p346) target = $region60
        $region59: #{discriminator_head_forward.1} parent=51 // pred_region
          %349 = dma.done [#allocation7], 32
        $region60: #{discriminator_head_forward.1} parent=51 // pred_fallthru
          _
        // Predicated region
        $region61: #{discriminator_head_forward.1} parent=51 // pred_check
          %p350 = pneg %p116
        $region62: #{discriminator_head_forward.1} parent=51 // pred_check_branch
          %352 = sbr.rel (%p350) target = $region64
        $region63: #{discriminator_head_forward.1} parent=51 // pred_region
          %353 = dma.done [#allocation7], 32
        $region64: #{discriminator_head_forward.1} parent=51 // pred_fallthru
          _
        // Predicated region
        $region65: #{discriminator_head_forward.1} parent=51 // pred_check
          %p354 = pneg %p137
        $region66: #{discriminator_head_forward.1} parent=51 // pred_check_branch
          %356 = sbr.rel (%p354) target = $region68
        $region67: #{discriminator_head_forward.1} parent=51 // pred_region
          %357 = dma.done [#allocation10], 4096
        $region68: #{discriminator_head_forward.1} parent=51 // pred_fallthru
          _
        // Predicated region
        $region69: #{discriminator_head_forward.1} parent=51 // pred_check
          %p358 = pneg %p158
        $region70: #{discriminator_head_forward.1} parent=51 // pred_check_branch
          %360 = sbr.rel (%p358) target = $region72
        $region71: #{discriminator_head_forward.1} parent=51 // pred_region
          %361 = dma.done [#allocation10], 16
        $region72: #{discriminator_head_forward.1} parent=51 // pred_fallthru
          _
        // Predicated region
        $region73: #{discriminator_head_forward.1} parent=51 // pred_check
          %p362 = pneg %p179
        $region74: #{discriminator_head_forward.1} parent=51 // pred_check_branch
          %364 = sbr.rel (%p362) target = $region76
        $region75: #{discriminator_head_forward.1} parent=51 // pred_region
          %365 = dma.done [#allocation13], 16
        $region76: #{discriminator_head_forward.1} parent=51 // pred_fallthru
          _
        %s366 = smul.u32 64, %s27
        %p367 = scmp.lt.s32.totalorder %s366, 255
        %s368 = scalar_select %p367, %s366, 255
        %s369 = scalar_lea.vmem %s0, %s368
        %p370 = pneg %p48
        %p371 = pneg %p45
        %s372 = sand.u32 %s61, 1
        %s373 = scalar_lea.sflag [#allocation5], %s372
        %s374 = sand.u32 %s61, 1
        %s375 = smul.addr %s374, 4096
        %s376 = scalar_lea.vmem [#allocation4], %s375
        %p377 = pneg %p74
        %p378 = pneg %p71
        %p379 = pneg %p95
        %p380 = pneg %p92
        %p381 = pneg %p116
        %p382 = pneg %p113
        %p383 = pneg %p137
        %p384 = pneg %p134
        %p385 = pneg %p158
        %p386 = pneg %p155
        %p387 = pneg %p179
        %p388 = pneg %p176
        %p389 = pneg %p200
        %p390 = pneg %p197
        %p391 = pneg %p221
        %p392 = pneg %p218
        %s393 = smul.u32 64, %s27
        %p394 = scmp.lt.s32.totalorder %s393, 255
        %s395 = scalar_select %p394, %s393, 255
        %s396 = scalar_lea.vmem %s0, %s395
        %s397 = smul.u32 64, %s27
        %s398 = smul.u32 256, %s27
        %p399 = scmp.eq.s32.totalorder %s27, 0
        // Predicated region
        $region77: #{discriminator_head_forward.1} parent=51 // pred_check
          %p400 = pneg %p399
        $region78: #{discriminator_head_forward.1} parent=51 // pred_check_branch
          %402 = sbr.rel (%p400) target = $region80
        $region79: #{discriminator_head_forward.1} parent=51 // pred_region
          %403 = vst [vmem:[#allocation2] sm:$0xf] 0.0
        $region80: #{discriminator_head_forward.1} parent=51 // pred_fallthru
          _
        %v404 = vld [vmem:[%s341] sm:$0xff]
        %v405 = vld [vmem:[%s341 + $0x8] sm:$0xff]
        %v406 = vld [vmem:[%s341 + $0x10] sm:$0xff]
        %v407 = vld [vmem:[%s341 + $0x18] sm:$0xff]
        %v408 = vld [vmem:[%s341 + $0x20] sm:$0xff]
        %v409 = vld [vmem:[%s341 + $0x28] sm:$0xff]
        %v410 = vld [vmem:[%s341 + $0x30] sm:$0xff]
        %v411 = vld [vmem:[%s341 + $0x38] sm:$0xff]
        %v412 = vld [vmem:[%s341 + $0x40] sm:$0xff]
        %v413 = vld [vmem:[%s341 + $0x48] sm:$0xff]
        %v414 = vld [vmem:[%s341 + $0x50] sm:$0xff]
        %v415 = vld [vmem:[%s341 + $0x58] sm:$0xff]
        %v416 = vld [vmem:[%s341 + $0x60] sm:$0xff]
        %v417 = vld [vmem:[%s341 + $0x68] sm:$0xff]
        %v418 = vld [vmem:[%s341 + $0x70] sm:$0xff]
        %v419 = vld [vmem:[%s341 + $0x78] sm:$0xff]
        %v420 = vld [vmem:[%s341 + $0x80] sm:$0xff]
        %v421 = vld [vmem:[%s341 + $0x88] sm:$0xff]
        %v422 = vld [vmem:[%s341 + $0x90] sm:$0xff]
        %v423 = vld [vmem:[%s341 + $0x98] sm:$0xff]
        %v424 = vld [vmem:[%s341 + $0xa0] sm:$0xff]
        %v425 = vld [vmem:[%s341 + $0xa8] sm:$0xff]
        %v426 = vld [vmem:[%s341 + $0xb0] sm:$0xff]
        %v427 = vld [vmem:[%s341 + $0xb8] sm:$0xff]
        %v428 = vld [vmem:[%s341 + $0xc0] sm:$0xff]
        %v429 = vld [vmem:[%s341 + $0xc8] sm:$0xff]
        %v430 = vld [vmem:[%s341 + $0xd0] sm:$0xff]
        %v431 = vld [vmem:[%s341 + $0xd8] sm:$0xff]
        %v432 = vld [vmem:[%s341 + $0xe0] sm:$0xff]
        %v433 = vld [vmem:[%s341 + $0xe8] sm:$0xff]
        %v434 = vld [vmem:[%s341 + $0xf0] sm:$0xff]
        %v435 = vld [vmem:[%s341 + $0xf8] sm:$0xff]
        %v436 = vld [vmem:[%s341 + $0x100] sm:$0xff]
        %v437 = vld [vmem:[%s341 + $0x108] sm:$0xff]
        %v438 = vld [vmem:[%s341 + $0x110] sm:$0xff]
        %v439 = vld [vmem:[%s341 + $0x118] sm:$0xff]
        %v440 = vld [vmem:[%s341 + $0x120] sm:$0xff]
        %v441 = vld [vmem:[%s341 + $0x128] sm:$0xff]
        %v442 = vld [vmem:[%s341 + $0x130] sm:$0xff]
        %v443 = vld [vmem:[%s341 + $0x138] sm:$0xff]
        %v444 = vld [vmem:[%s341 + $0x140] sm:$0xff]
        %v445 = vld [vmem:[%s341 + $0x148] sm:$0xff]
        %v446 = vld [vmem:[%s341 + $0x150] sm:$0xff]
        %v447 = vld [vmem:[%s341 + $0x158] sm:$0xff]
        %v448 = vld [vmem:[%s341 + $0x160] sm:$0xff]
        %v449 = vld [vmem:[%s341 + $0x168] sm:$0xff]
        %v450 = vld [vmem:[%s341 + $0x170] sm:$0xff]
        %v451 = vld [vmem:[%s341 + $0x178] sm:$0xff]
        %v452 = vld [vmem:[%s341 + $0x180] sm:$0xff]
        %v453 = vld [vmem:[%s341 + $0x188] sm:$0xff]
        %v454 = vld [vmem:[%s341 + $0x190] sm:$0xff]
        %v455 = vld [vmem:[%s341 + $0x198] sm:$0xff]
        %v456 = vld [vmem:[%s341 + $0x1a0] sm:$0xff]
        %v457 = vld [vmem:[%s341 + $0x1a8] sm:$0xff]
        %v458 = vld [vmem:[%s341 + $0x1b0] sm:$0xff]
        %v459 = vld [vmem:[%s341 + $0x1b8] sm:$0xff]
        %v460 = vld [vmem:[%s341 + $0x1c0] sm:$0xff]
        %v461 = vld [vmem:[%s341 + $0x1c8] sm:$0xff]
        %v462 = vld [vmem:[%s341 + $0x1d0] sm:$0xff]
        %v463 = vld [vmem:[%s341 + $0x1d8] sm:$0xff]
        %v464 = vld [vmem:[%s341 + $0x1e0] sm:$0xff]
        %v465 = vld [vmem:[%s341 + $0x1e8] sm:$0xff]
        %v466 = vld [vmem:[%s341 + $0x1f0] sm:$0xff]
        %v467 = vld [vmem:[%s341 + $0x1f8] sm:$0xff]
        %v468 = vld [vmem:[%s341 + $0x200] sm:$0xff]
        %v469 = vld [vmem:[%s341 + $0x208] sm:$0xff]
        %v470 = vld [vmem:[%s341 + $0x210] sm:$0xff]
        %v471 = vld [vmem:[%s341 + $0x218] sm:$0xff]
        %v472 = vld [vmem:[%s341 + $0x220] sm:$0xff]
        %v473 = vld [vmem:[%s341 + $0x228] sm:$0xff]
        %v474 = vld [vmem:[%s341 + $0x230] sm:$0xff]
        %v475 = vld [vmem:[%s341 + $0x238] sm:$0xff]
        %v476 = vld [vmem:[%s341 + $0x240] sm:$0xff]
        %v477 = vld [vmem:[%s341 + $0x248] sm:$0xff]
        %v478 = vld [vmem:[%s341 + $0x250] sm:$0xff]
        %v479 = vld [vmem:[%s341 + $0x258] sm:$0xff]
        %v480 = vld [vmem:[%s341 + $0x260] sm:$0xff]
        %v481 = vld [vmem:[%s341 + $0x268] sm:$0xff]
        %v482 = vld [vmem:[%s341 + $0x270] sm:$0xff]
        %v483 = vld [vmem:[%s341 + $0x278] sm:$0xff]
        %v484 = vld [vmem:[%s341 + $0x280] sm:$0xff]
        %v485 = vld [vmem:[%s341 + $0x288] sm:$0xff]
        %v486 = vld [vmem:[%s341 + $0x290] sm:$0xff]
        %v487 = vld [vmem:[%s341 + $0x298] sm:$0xff]
        %v488 = vld [vmem:[%s341 + $0x2a0] sm:$0xff]
        %v489 = vld [vmem:[%s341 + $0x2a8] sm:$0xff]
        %v490 = vld [vmem:[%s341 + $0x2b0] sm:$0xff]
        %v491 = vld [vmem:[%s341 + $0x2b8] sm:$0xff]
        %v492 = vld [vmem:[%s341 + $0x2c0] sm:$0xff]
        %v493 = vld [vmem:[%s341 + $0x2c8] sm:$0xff]
        %v494 = vld [vmem:[%s341 + $0x2d0] sm:$0xff]
        %v495 = vld [vmem:[%s341 + $0x2d8] sm:$0xff]
        %v496 = vld [vmem:[%s341 + $0x2e0] sm:$0xff]
        %v497 = vld [vmem:[%s341 + $0x2e8] sm:$0xff]
        %v498 = vld [vmem:[%s341 + $0x2f0] sm:$0xff]
        %v499 = vld [vmem:[%s341 + $0x2f8] sm:$0xff]
        %v500 = vld [vmem:[%s341 + $0x300] sm:$0xff]
        %v501 = vld [vmem:[%s341 + $0x308] sm:$0xff]
        %v502 = vld [vmem:[%s341 + $0x310] sm:$0xff]
        %v503 = vld [vmem:[%s341 + $0x318] sm:$0xff]
        %v504 = vld [vmem:[%s341 + $0x320] sm:$0xff]
        %v505 = vld [vmem:[%s341 + $0x328] sm:$0xff]
        %v506 = vld [vmem:[%s341 + $0x330] sm:$0xff]
        %v507 = vld [vmem:[%s341 + $0x338] sm:$0xff]
        %v508 = vld [vmem:[%s341 + $0x340] sm:$0xff]
        %v509 = vld [vmem:[%s341 + $0x348] sm:$0xff]
        %v510 = vld [vmem:[%s341 + $0x350] sm:$0xff]
        %v511 = vld [vmem:[%s341 + $0x358] sm:$0xff]
        %v512 = vld [vmem:[%s341 + $0x360] sm:$0xff]
        %v513 = vld [vmem:[%s341 + $0x368] sm:$0xff]
        %v514 = vld [vmem:[%s341 + $0x370] sm:$0xff]
        %v515 = vld [vmem:[%s341 + $0x378] sm:$0xff]
        %v516 = vld [vmem:[%s341 + $0x380] sm:$0xff]
        %v517 = vld [vmem:[%s341 + $0x388] sm:$0xff]
        %v518 = vld [vmem:[%s341 + $0x390] sm:$0xff]
        %v519 = vld [vmem:[%s341 + $0x398] sm:$0xff]
        %v520 = vld [vmem:[%s341 + $0x3a0] sm:$0xff]
        %v521 = vld [vmem:[%s341 + $0x3a8] sm:$0xff]
        %v522 = vld [vmem:[%s341 + $0x3b0] sm:$0xff]
        %v523 = vld [vmem:[%s341 + $0x3b8] sm:$0xff]
        %v524 = vld [vmem:[%s341 + $0x3c0] sm:$0xff]
        %v525 = vld [vmem:[%s341 + $0x3c8] sm:$0xff]
        %v526 = vld [vmem:[%s341 + $0x3d0] sm:$0xff]
        %v527 = vld [vmem:[%s341 + $0x3d8] sm:$0xff]
        %v528 = vld [vmem:[%s341 + $0x3e0] sm:$0xff]
        %v529 = vld [vmem:[%s341 + $0x3e8] sm:$0xff]
        %v530 = vld [vmem:[%s341 + $0x3f0] sm:$0xff]
        %v531 = vld [vmem:[%s341 + $0x3f8] sm:$0xff]
        %v532 = vld [vmem:[%s341 + $0x400] sm:$0xff]
        %v533 = vld [vmem:[%s341 + $0x408] sm:$0xff]
        %v534 = vld [vmem:[%s341 + $0x410] sm:$0xff]
        %v535 = vld [vmem:[%s341 + $0x418] sm:$0xff]
        %v536 = vld [vmem:[%s341 + $0x420] sm:$0xff]
        %v537 = vld [vmem:[%s341 + $0x428] sm:$0xff]
        %v538 = vld [vmem:[%s341 + $0x430] sm:$0xff]
        %v539 = vld [vmem:[%s341 + $0x438] sm:$0xff]
        %v540 = vld [vmem:[%s341 + $0x440] sm:$0xff]
        %v541 = vld [vmem:[%s341 + $0x448] sm:$0xff]
        %v542 = vld [vmem:[%s341 + $0x450] sm:$0xff]
        %v543 = vld [vmem:[%s341 + $0x458] sm:$0xff]
        %v544 = vld [vmem:[%s341 + $0x460] sm:$0xff]
        %v545 = vld [vmem:[%s341 + $0x468] sm:$0xff]
        %v546 = vld [vmem:[%s341 + $0x470] sm:$0xff]
        %v547 = vld [vmem:[%s341 + $0x478] sm:$0xff]
        %v548 = vld [vmem:[%s341 + $0x480] sm:$0xff]
        %v549 = vld [vmem:[%s341 + $0x488] sm:$0xff]
        %v550 = vld [vmem:[%s341 + $0x490] sm:$0xff]
        %v551 = vld [vmem:[%s341 + $0x498] sm:$0xff]
        %v552 = vld [vmem:[%s341 + $0x4a0] sm:$0xff]
        %v553 = vld [vmem:[%s341 + $0x4a8] sm:$0xff]
        %v554 = vld [vmem:[%s341 + $0x4b0] sm:$0xff]
        %v555 = vld [vmem:[%s341 + $0x4b8] sm:$0xff]
        %v556 = vld [vmem:[%s341 + $0x4c0] sm:$0xff]
        %v557 = vld [vmem:[%s341 + $0x4c8] sm:$0xff]
        %v558 = vld [vmem:[%s341 + $0x4d0] sm:$0xff]
        %v559 = vld [vmem:[%s341 + $0x4d8] sm:$0xff]
        %v560 = vld [vmem:[%s341 + $0x4e0] sm:$0xff]
        %v561 = vld [vmem:[%s341 + $0x4e8] sm:$0xff]
        %v562 = vld [vmem:[%s341 + $0x4f0] sm:$0xff]
        %v563 = vld [vmem:[%s341 + $0x4f8] sm:$0xff]
        %v564 = vld [vmem:[%s341 + $0x500] sm:$0xff]
        %v565 = vld [vmem:[%s341 + $0x508] sm:$0xff]
        %v566 = vld [vmem:[%s341 + $0x510] sm:$0xff]
        %v567 = vld [vmem:[%s341 + $0x518] sm:$0xff]
        %v568 = vld [vmem:[%s341 + $0x520] sm:$0xff]
        %v569 = vld [vmem:[%s341 + $0x528] sm:$0xff]
        %v570 = vld [vmem:[%s341 + $0x530] sm:$0xff]
        %v571 = vld [vmem:[%s341 + $0x538] sm:$0xff]
        %v572 = vld [vmem:[%s341 + $0x540] sm:$0xff]
        %v573 = vld [vmem:[%s341 + $0x548] sm:$0xff]
        %v574 = vld [vmem:[%s341 + $0x550] sm:$0xff]
        %v575 = vld [vmem:[%s341 + $0x558] sm:$0xff]
        %v576 = vld [vmem:[%s341 + $0x560] sm:$0xff]
        %v577 = vld [vmem:[%s341 + $0x568] sm:$0xff]
        %v578 = vld [vmem:[%s341 + $0x570] sm:$0xff]
        %v579 = vld [vmem:[%s341 + $0x578] sm:$0xff]
        %v580 = vld [vmem:[%s341 + $0x580] sm:$0xff]
        %v581 = vld [vmem:[%s341 + $0x588] sm:$0xff]
        %v582 = vld [vmem:[%s341 + $0x590] sm:$0xff]
        %v583 = vld [vmem:[%s341 + $0x598] sm:$0xff]
        %v584 = vld [vmem:[%s341 + $0x5a0] sm:$0xff]
        %v585 = vld [vmem:[%s341 + $0x5a8] sm:$0xff]
        %v586 = vld [vmem:[%s341 + $0x5b0] sm:$0xff]
        %v587 = vld [vmem:[%s341 + $0x5b8] sm:$0xff]
        %v588 = vld [vmem:[%s341 + $0x5c0] sm:$0xff]
        %v589 = vld [vmem:[%s341 + $0x5c8] sm:$0xff]
        %v590 = vld [vmem:[%s341 + $0x5d0] sm:$0xff]
        %v591 = vld [vmem:[%s341 + $0x5d8] sm:$0xff]
        %v592 = vld [vmem:[%s341 + $0x5e0] sm:$0xff]
        %v593 = vld [vmem:[%s341 + $0x5e8] sm:$0xff]
        %v594 = vld [vmem:[%s341 + $0x5f0] sm:$0xff]
        %v595 = vld [vmem:[%s341 + $0x5f8] sm:$0xff]
        %v596 = vld [vmem:[%s341 + $0x600] sm:$0xff]
        %v597 = vld [vmem:[%s341 + $0x608] sm:$0xff]
        %v598 = vld [vmem:[%s341 + $0x610] sm:$0xff]
        %v599 = vld [vmem:[%s341 + $0x618] sm:$0xff]
        %v600 = vld [vmem:[%s341 + $0x620] sm:$0xff]
        %v601 = vld [vmem:[%s341 + $0x628] sm:$0xff]
        %v602 = vld [vmem:[%s341 + $0x630] sm:$0xff]
        %v603 = vld [vmem:[%s341 + $0x638] sm:$0xff]
        %v604 = vld [vmem:[%s341 + $0x640] sm:$0xff]
        %v605 = vld [vmem:[%s341 + $0x648] sm:$0xff]
        %v606 = vld [vmem:[%s341 + $0x650] sm:$0xff]
        %v607 = vld [vmem:[%s341 + $0x658] sm:$0xff]
        %v608 = vld [vmem:[%s341 + $0x660] sm:$0xff]
        %v609 = vld [vmem:[%s341 + $0x668] sm:$0xff]
        %v610 = vld [vmem:[%s341 + $0x670] sm:$0xff]
        %v611 = vld [vmem:[%s341 + $0x678] sm:$0xff]
        %v612 = vld [vmem:[%s341 + $0x680] sm:$0xff]
        %v613 = vld [vmem:[%s341 + $0x688] sm:$0xff]
        %v614 = vld [vmem:[%s341 + $0x690] sm:$0xff]
        %v615 = vld [vmem:[%s341 + $0x698] sm:$0xff]
        %v616 = vld [vmem:[%s341 + $0x6a0] sm:$0xff]
        %v617 = vld [vmem:[%s341 + $0x6a8] sm:$0xff]
        %v618 = vld [vmem:[%s341 + $0x6b0] sm:$0xff]
        %v619 = vld [vmem:[%s341 + $0x6b8] sm:$0xff]
        %v620 = vld [vmem:[%s341 + $0x6c0] sm:$0xff]
        %v621 = vld [vmem:[%s341 + $0x6c8] sm:$0xff]
        %v622 = vld [vmem:[%s341 + $0x6d0] sm:$0xff]
        %v623 = vld [vmem:[%s341 + $0x6d8] sm:$0xff]
        %v624 = vld [vmem:[%s341 + $0x6e0] sm:$0xff]
        %v625 = vld [vmem:[%s341 + $0x6e8] sm:$0xff]
        %v626 = vld [vmem:[%s341 + $0x6f0] sm:$0xff]
        %v627 = vld [vmem:[%s341 + $0x6f8] sm:$0xff]
        %v628 = vld [vmem:[%s341 + $0x700] sm:$0xff]
        %v629 = vld [vmem:[%s341 + $0x708] sm:$0xff]
        %v630 = vld [vmem:[%s341 + $0x710] sm:$0xff]
        %v631 = vld [vmem:[%s341 + $0x718] sm:$0xff]
        %v632 = vld [vmem:[%s341 + $0x720] sm:$0xff]
        %v633 = vld [vmem:[%s341 + $0x728] sm:$0xff]
        %v634 = vld [vmem:[%s341 + $0x730] sm:$0xff]
        %v635 = vld [vmem:[%s341 + $0x738] sm:$0xff]
        %v636 = vld [vmem:[%s341 + $0x740] sm:$0xff]
        %v637 = vld [vmem:[%s341 + $0x748] sm:$0xff]
        %v638 = vld [vmem:[%s341 + $0x750] sm:$0xff]
        %v639 = vld [vmem:[%s341 + $0x758] sm:$0xff]
        %v640 = vld [vmem:[%s341 + $0x760] sm:$0xff]
        %v641 = vld [vmem:[%s341 + $0x768] sm:$0xff]
        %v642 = vld [vmem:[%s341 + $0x770] sm:$0xff]
        %v643 = vld [vmem:[%s341 + $0x778] sm:$0xff]
        %v644 = vld [vmem:[%s341 + $0x780] sm:$0xff]
        %v645 = vld [vmem:[%s341 + $0x788] sm:$0xff]
        %v646 = vld [vmem:[%s341 + $0x790] sm:$0xff]
        %v647 = vld [vmem:[%s341 + $0x798] sm:$0xff]
        %v648 = vld [vmem:[%s341 + $0x7a0] sm:$0xff]
        %v649 = vld [vmem:[%s341 + $0x7a8] sm:$0xff]
        %v650 = vld [vmem:[%s341 + $0x7b0] sm:$0xff]
        %v651 = vld [vmem:[%s341 + $0x7b8] sm:$0xff]
        %v652 = vld [vmem:[%s341 + $0x7c0] sm:$0xff]
        %v653 = vld [vmem:[%s341 + $0x7c8] sm:$0xff]
        %v654 = vld [vmem:[%s341 + $0x7d0] sm:$0xff]
        %v655 = vld [vmem:[%s341 + $0x7d8] sm:$0xff]
        %v656 = vld [vmem:[%s341 + $0x7e0] sm:$0xff]
        %v657 = vld [vmem:[%s341 + $0x7e8] sm:$0xff]
        %v658 = vld [vmem:[%s341 + $0x7f0] sm:$0xff]
        %v659 = vld [vmem:[%s341 + $0x7f8] sm:$0xff]
        %v660 = vld [vmem:[%s341 + $0x800] sm:$0xff]
        %v661 = vld [vmem:[%s341 + $0x808] sm:$0xff]
        %v662 = vld [vmem:[%s341 + $0x810] sm:$0xff]
        %v663 = vld [vmem:[%s341 + $0x818] sm:$0xff]
        %v664 = vld [vmem:[%s341 + $0x820] sm:$0xff]
        %v665 = vld [vmem:[%s341 + $0x828] sm:$0xff]
        %v666 = vld [vmem:[%s341 + $0x830] sm:$0xff]
        %v667 = vld [vmem:[%s341 + $0x838] sm:$0xff]
        %v668 = vld [vmem:[%s341 + $0x840] sm:$0xff]
        %v669 = vld [vmem:[%s341 + $0x848] sm:$0xff]
        %v670 = vld [vmem:[%s341 + $0x850] sm:$0xff]
        %v671 = vld [vmem:[%s341 + $0x858] sm:$0xff]
        %v672 = vld [vmem:[%s341 + $0x860] sm:$0xff]
        %v673 = vld [vmem:[%s341 + $0x868] sm:$0xff]
        %v674 = vld [vmem:[%s341 + $0x870] sm:$0xff]
        %v675 = vld [vmem:[%s341 + $0x878] sm:$0xff]
        %v676 = vld [vmem:[%s341 + $0x880] sm:$0xff]
        %v677 = vld [vmem:[%s341 + $0x888] sm:$0xff]
        %v678 = vld [vmem:[%s341 + $0x890] sm:$0xff]
        %v679 = vld [vmem:[%s341 + $0x898] sm:$0xff]
        %v680 = vld [vmem:[%s341 + $0x8a0] sm:$0xff]
        %v681 = vld [vmem:[%s341 + $0x8a8] sm:$0xff]
        %v682 = vld [vmem:[%s341 + $0x8b0] sm:$0xff]
        %v683 = vld [vmem:[%s341 + $0x8b8] sm:$0xff]
        %v684 = vld [vmem:[%s341 + $0x8c0] sm:$0xff]
        %v685 = vld [vmem:[%s341 + $0x8c8] sm:$0xff]
        %v686 = vld [vmem:[%s341 + $0x8d0] sm:$0xff]
        %v687 = vld [vmem:[%s341 + $0x8d8] sm:$0xff]
        %v688 = vld [vmem:[%s341 + $0x8e0] sm:$0xff]
        %v689 = vld [vmem:[%s341 + $0x8e8] sm:$0xff]
        %v690 = vld [vmem:[%s341 + $0x8f0] sm:$0xff]
        %v691 = vld [vmem:[%s341 + $0x8f8] sm:$0xff]
        %v692 = vld [vmem:[%s341 + $0x900] sm:$0xff]
        %v693 = vld [vmem:[%s341 + $0x908] sm:$0xff]
        %v694 = vld [vmem:[%s341 + $0x910] sm:$0xff]
        %v695 = vld [vmem:[%s341 + $0x918] sm:$0xff]
        %v696 = vld [vmem:[%s341 + $0x920] sm:$0xff]
        %v697 = vld [vmem:[%s341 + $0x928] sm:$0xff]
        %v698 = vld [vmem:[%s341 + $0x930] sm:$0xff]
        %v699 = vld [vmem:[%s341 + $0x938] sm:$0xff]
        %v700 = vld [vmem:[%s341 + $0x940] sm:$0xff]
        %v701 = vld [vmem:[%s341 + $0x948] sm:$0xff]
        %v702 = vld [vmem:[%s341 + $0x950] sm:$0xff]
        %v703 = vld [vmem:[%s341 + $0x958] sm:$0xff]
        %v704 = vld [vmem:[%s341 + $0x960] sm:$0xff]
        %v705 = vld [vmem:[%s341 + $0x968] sm:$0xff]
        %v706 = vld [vmem:[%s341 + $0x970] sm:$0xff]
        %v707 = vld [vmem:[%s341 + $0x978] sm:$0xff]
        %v708 = vld [vmem:[%s341 + $0x980] sm:$0xff]
        %v709 = vld [vmem:[%s341 + $0x988] sm:$0xff]
        %v710 = vld [vmem:[%s341 + $0x990] sm:$0xff]
        %v711 = vld [vmem:[%s341 + $0x998] sm:$0xff]
        %v712 = vld [vmem:[%s341 + $0x9a0] sm:$0xff]
        %v713 = vld [vmem:[%s341 + $0x9a8] sm:$0xff]
        %v714 = vld [vmem:[%s341 + $0x9b0] sm:$0xff]
        %v715 = vld [vmem:[%s341 + $0x9b8] sm:$0xff]
        %v716 = vld [vmem:[%s341 + $0x9c0] sm:$0xff]
        %v717 = vld [vmem:[%s341 + $0x9c8] sm:$0xff]
        %v718 = vld [vmem:[%s341 + $0x9d0] sm:$0xff]
        %v719 = vld [vmem:[%s341 + $0x9d8] sm:$0xff]
        %v720 = vld [vmem:[%s341 + $0x9e0] sm:$0xff]
        %v721 = vld [vmem:[%s341 + $0x9e8] sm:$0xff]
        %v722 = vld [vmem:[%s341 + $0x9f0] sm:$0xff]
        %v723 = vld [vmem:[%s341 + $0x9f8] sm:$0xff]
        %v724 = vld [vmem:[%s341 + $0xa00] sm:$0xff]
        %v725 = vld [vmem:[%s341 + $0xa08] sm:$0xff]
        %v726 = vld [vmem:[%s341 + $0xa10] sm:$0xff]
        %v727 = vld [vmem:[%s341 + $0xa18] sm:$0xff]
        %v728 = vld [vmem:[%s341 + $0xa20] sm:$0xff]
        %v729 = vld [vmem:[%s341 + $0xa28] sm:$0xff]
        %v730 = vld [vmem:[%s341 + $0xa30] sm:$0xff]
        %v731 = vld [vmem:[%s341 + $0xa38] sm:$0xff]
        %v732 = vld [vmem:[%s341 + $0xa40] sm:$0xff]
        %v733 = vld [vmem:[%s341 + $0xa48] sm:$0xff]
        %v734 = vld [vmem:[%s341 + $0xa50] sm:$0xff]
        %v735 = vld [vmem:[%s341 + $0xa58] sm:$0xff]
        %v736 = vld [vmem:[%s341 + $0xa60] sm:$0xff]
        %v737 = vld [vmem:[%s341 + $0xa68] sm:$0xff]
        %v738 = vld [vmem:[%s341 + $0xa70] sm:$0xff]
        %v739 = vld [vmem:[%s341 + $0xa78] sm:$0xff]
        %v740 = vld [vmem:[%s341 + $0xa80] sm:$0xff]
        %v741 = vld [vmem:[%s341 + $0xa88] sm:$0xff]
        %v742 = vld [vmem:[%s341 + $0xa90] sm:$0xff]
        %v743 = vld [vmem:[%s341 + $0xa98] sm:$0xff]
        %v744 = vld [vmem:[%s341 + $0xaa0] sm:$0xff]
        %v745 = vld [vmem:[%s341 + $0xaa8] sm:$0xff]
        %v746 = vld [vmem:[%s341 + $0xab0] sm:$0xff]
        %v747 = vld [vmem:[%s341 + $0xab8] sm:$0xff]
        %v748 = vld [vmem:[%s341 + $0xac0] sm:$0xff]
        %v749 = vld [vmem:[%s341 + $0xac8] sm:$0xff]
        %v750 = vld [vmem:[%s341 + $0xad0] sm:$0xff]
        %v751 = vld [vmem:[%s341 + $0xad8] sm:$0xff]
        %v752 = vld [vmem:[%s341 + $0xae0] sm:$0xff]
        %v753 = vld [vmem:[%s341 + $0xae8] sm:$0xff]
        %v754 = vld [vmem:[%s341 + $0xaf0] sm:$0xff]
        %v755 = vld [vmem:[%s341 + $0xaf8] sm:$0xff]
        %v756 = vld [vmem:[%s341 + $0xb00] sm:$0xff]
        %v757 = vld [vmem:[%s341 + $0xb08] sm:$0xff]
        %v758 = vld [vmem:[%s341 + $0xb10] sm:$0xff]
        %v759 = vld [vmem:[%s341 + $0xb18] sm:$0xff]
        %v760 = vld [vmem:[%s341 + $0xb20] sm:$0xff]
        %v761 = vld [vmem:[%s341 + $0xb28] sm:$0xff]
        %v762 = vld [vmem:[%s341 + $0xb30] sm:$0xff]
        %v763 = vld [vmem:[%s341 + $0xb38] sm:$0xff]
        %v764 = vld [vmem:[%s341 + $0xb40] sm:$0xff]
        %v765 = vld [vmem:[%s341 + $0xb48] sm:$0xff]
        %v766 = vld [vmem:[%s341 + $0xb50] sm:$0xff]
        %v767 = vld [vmem:[%s341 + $0xb58] sm:$0xff]
        %v768 = vld [vmem:[%s341 + $0xb60] sm:$0xff]
        %v769 = vld [vmem:[%s341 + $0xb68] sm:$0xff]
        %v770 = vld [vmem:[%s341 + $0xb70] sm:$0xff]
        %v771 = vld [vmem:[%s341 + $0xb78] sm:$0xff]
        %v772 = vld [vmem:[%s341 + $0xb80] sm:$0xff]
        %v773 = vld [vmem:[%s341 + $0xb88] sm:$0xff]
        %v774 = vld [vmem:[%s341 + $0xb90] sm:$0xff]
        %v775 = vld [vmem:[%s341 + $0xb98] sm:$0xff]
        %v776 = vld [vmem:[%s341 + $0xba0] sm:$0xff]
        %v777 = vld [vmem:[%s341 + $0xba8] sm:$0xff]
        %v778 = vld [vmem:[%s341 + $0xbb0] sm:$0xff]
        %v779 = vld [vmem:[%s341 + $0xbb8] sm:$0xff]
        %v780 = vld [vmem:[%s341 + $0xbc0] sm:$0xff]
        %v781 = vld [vmem:[%s341 + $0xbc8] sm:$0xff]
        %v782 = vld [vmem:[%s341 + $0xbd0] sm:$0xff]
        %v783 = vld [vmem:[%s341 + $0xbd8] sm:$0xff]
        %v784 = vld [vmem:[%s341 + $0xbe0] sm:$0xff]
        %v785 = vld [vmem:[%s341 + $0xbe8] sm:$0xff]
        %v786 = vld [vmem:[%s341 + $0xbf0] sm:$0xff]
        %v787 = vld [vmem:[%s341 + $0xbf8] sm:$0xff]
        %v788 = vld [vmem:[%s341 + $0xc00] sm:$0xff]
        %v789 = vld [vmem:[%s341 + $0xc08] sm:$0xff]
        %v790 = vld [vmem:[%s341 + $0xc10] sm:$0xff]
        %v791 = vld [vmem:[%s341 + $0xc18] sm:$0xff]
        %v792 = vld [vmem:[%s341 + $0xc20] sm:$0xff]
        %v793 = vld [vmem:[%s341 + $0xc28] sm:$0xff]
        %v794 = vld [vmem:[%s341 + $0xc30] sm:$0xff]
        %v795 = vld [vmem:[%s341 + $0xc38] sm:$0xff]
        %v796 = vld [vmem:[%s341 + $0xc40] sm:$0xff]
        %v797 = vld [vmem:[%s341 + $0xc48] sm:$0xff]
        %v798 = vld [vmem:[%s341 + $0xc50] sm:$0xff]
        %v799 = vld [vmem:[%s341 + $0xc58] sm:$0xff]
        %v800 = vld [vmem:[%s341 + $0xc60] sm:$0xff]
        %v801 = vld [vmem:[%s341 + $0xc68] sm:$0xff]
        %v802 = vld [vmem:[%s341 + $0xc70] sm:$0xff]
        %v803 = vld [vmem:[%s341 + $0xc78] sm:$0xff]
        %v804 = vld [vmem:[%s341 + $0xc80] sm:$0xff]
        %v805 = vld [vmem:[%s341 + $0xc88] sm:$0xff]
        %v806 = vld [vmem:[%s341 + $0xc90] sm:$0xff]
        %v807 = vld [vmem:[%s341 + $0xc98] sm:$0xff]
        %v808 = vld [vmem:[%s341 + $0xca0] sm:$0xff]
        %v809 = vld [vmem:[%s341 + $0xca8] sm:$0xff]
        %v810 = vld [vmem:[%s341 + $0xcb0] sm:$0xff]
        %v811 = vld [vmem:[%s341 + $0xcb8] sm:$0xff]
        %v812 = vld [vmem:[%s341 + $0xcc0] sm:$0xff]
        %v813 = vld [vmem:[%s341 + $0xcc8] sm:$0xff]
        %v814 = vld [vmem:[%s341 + $0xcd0] sm:$0xff]
        %v815 = vld [vmem:[%s341 + $0xcd8] sm:$0xff]
        %v816 = vld [vmem:[%s341 + $0xce0] sm:$0xff]
        %v817 = vld [vmem:[%s341 + $0xce8] sm:$0xff]
        %v818 = vld [vmem:[%s341 + $0xcf0] sm:$0xff]
        %v819 = vld [vmem:[%s341 + $0xcf8] sm:$0xff]
        %v820 = vld [vmem:[%s341 + $0xd00] sm:$0xff]
        %v821 = vld [vmem:[%s341 + $0xd08] sm:$0xff]
        %v822 = vld [vmem:[%s341 + $0xd10] sm:$0xff]
        %v823 = vld [vmem:[%s341 + $0xd18] sm:$0xff]
        %v824 = vld [vmem:[%s341 + $0xd20] sm:$0xff]
        %v825 = vld [vmem:[%s341 + $0xd28] sm:$0xff]
        %v826 = vld [vmem:[%s341 + $0xd30] sm:$0xff]
        %v827 = vld [vmem:[%s341 + $0xd38] sm:$0xff]
        %v828 = vld [vmem:[%s341 + $0xd40] sm:$0xff]
        %v829 = vld [vmem:[%s341 + $0xd48] sm:$0xff]
        %v830 = vld [vmem:[%s341 + $0xd50] sm:$0xff]
        %v831 = vld [vmem:[%s341 + $0xd58] sm:$0xff]
        %v832 = vld [vmem:[%s341 + $0xd60] sm:$0xff]
        %v833 = vld [vmem:[%s341 + $0xd68] sm:$0xff]
        %v834 = vld [vmem:[%s341 + $0xd70] sm:$0xff]
        %v835 = vld [vmem:[%s341 + $0xd78] sm:$0xff]
        %v836 = vld [vmem:[%s341 + $0xd80] sm:$0xff]
        %v837 = vld [vmem:[%s341 + $0xd88] sm:$0xff]
        %v838 = vld [vmem:[%s341 + $0xd90] sm:$0xff]
        %v839 = vld [vmem:[%s341 + $0xd98] sm:$0xff]
        %v840 = vld [vmem:[%s341 + $0xda0] sm:$0xff]
        %v841 = vld [vmem:[%s341 + $0xda8] sm:$0xff]
        %v842 = vld [vmem:[%s341 + $0xdb0] sm:$0xff]
        %v843 = vld [vmem:[%s341 + $0xdb8] sm:$0xff]
        %v844 = vld [vmem:[%s341 + $0xdc0] sm:$0xff]
        %v845 = vld [vmem:[%s341 + $0xdc8] sm:$0xff]
        %v846 = vld [vmem:[%s341 + $0xdd0] sm:$0xff]
        %v847 = vld [vmem:[%s341 + $0xdd8] sm:$0xff]
        %v848 = vld [vmem:[%s341 + $0xde0] sm:$0xff]
        %v849 = vld [vmem:[%s341 + $0xde8] sm:$0xff]
        %v850 = vld [vmem:[%s341 + $0xdf0] sm:$0xff]
        %v851 = vld [vmem:[%s341 + $0xdf8] sm:$0xff]
        %v852 = vld [vmem:[%s341 + $0xe00] sm:$0xff]
        %v853 = vld [vmem:[%s341 + $0xe08] sm:$0xff]
        %v854 = vld [vmem:[%s341 + $0xe10] sm:$0xff]
        %v855 = vld [vmem:[%s341 + $0xe18] sm:$0xff]
        %v856 = vld [vmem:[%s341 + $0xe20] sm:$0xff]
        %v857 = vld [vmem:[%s341 + $0xe28] sm:$0xff]
        %v858 = vld [vmem:[%s341 + $0xe30] sm:$0xff]
        %v859 = vld [vmem:[%s341 + $0xe38] sm:$0xff]
        %v860 = vld [vmem:[%s341 + $0xe40] sm:$0xff]
        %v861 = vld [vmem:[%s341 + $0xe48] sm:$0xff]
        %v862 = vld [vmem:[%s341 + $0xe50] sm:$0xff]
        %v863 = vld [vmem:[%s341 + $0xe58] sm:$0xff]
        %v864 = vld [vmem:[%s341 + $0xe60] sm:$0xff]
        %v865 = vld [vmem:[%s341 + $0xe68] sm:$0xff]
        %v866 = vld [vmem:[%s341 + $0xe70] sm:$0xff]
        %v867 = vld [vmem:[%s341 + $0xe78] sm:$0xff]
        %v868 = vld [vmem:[%s341 + $0xe80] sm:$0xff]
        %v869 = vld [vmem:[%s341 + $0xe88] sm:$0xff]
        %v870 = vld [vmem:[%s341 + $0xe90] sm:$0xff]
        %v871 = vld [vmem:[%s341 + $0xe98] sm:$0xff]
        %v872 = vld [vmem:[%s341 + $0xea0] sm:$0xff]
        %v873 = vld [vmem:[%s341 + $0xea8] sm:$0xff]
        %v874 = vld [vmem:[%s341 + $0xeb0] sm:$0xff]
        %v875 = vld [vmem:[%s341 + $0xeb8] sm:$0xff]
        %v876 = vld [vmem:[%s341 + $0xec0] sm:$0xff]
        %v877 = vld [vmem:[%s341 + $0xec8] sm:$0xff]
        %v878 = vld [vmem:[%s341 + $0xed0] sm:$0xff]
        %v879 = vld [vmem:[%s341 + $0xed8] sm:$0xff]
        %v880 = vld [vmem:[%s341 + $0xee0] sm:$0xff]
        %v881 = vld [vmem:[%s341 + $0xee8] sm:$0xff]
        %v882 = vld [vmem:[%s341 + $0xef0] sm:$0xff]
        %v883 = vld [vmem:[%s341 + $0xef8] sm:$0xff]
        %v884 = vld [vmem:[%s341 + $0xf00] sm:$0xff]
        %v885 = vld [vmem:[%s341 + $0xf08] sm:$0xff]
        %v886 = vld [vmem:[%s341 + $0xf10] sm:$0xff]
        %v887 = vld [vmem:[%s341 + $0xf18] sm:$0xff]
        %v888 = vld [vmem:[%s341 + $0xf20] sm:$0xff]
        %v889 = vld [vmem:[%s341 + $0xf28] sm:$0xff]
        %v890 = vld [vmem:[%s341 + $0xf30] sm:$0xff]
        %v891 = vld [vmem:[%s341 + $0xf38] sm:$0xff]
        %v892 = vld [vmem:[%s341 + $0xf40] sm:$0xff]
        %v893 = vld [vmem:[%s341 + $0xf48] sm:$0xff]
        %v894 = vld [vmem:[%s341 + $0xf50] sm:$0xff]
        %v895 = vld [vmem:[%s341 + $0xf58] sm:$0xff]
        %v896 = vld [vmem:[%s341 + $0xf60] sm:$0xff]
        %v897 = vld [vmem:[%s341 + $0xf68] sm:$0xff]
        %v898 = vld [vmem:[%s341 + $0xf70] sm:$0xff]
        %v899 = vld [vmem:[%s341 + $0xf78] sm:$0xff]
        %v900 = vld [vmem:[%s341 + $0xf80] sm:$0xff]
        %v901 = vld [vmem:[%s341 + $0xf88] sm:$0xff]
        %v902 = vld [vmem:[%s341 + $0xf90] sm:$0xff]
        %v903 = vld [vmem:[%s341 + $0xf98] sm:$0xff]
        %v904 = vld [vmem:[%s341 + $0xfa0] sm:$0xff]
        %v905 = vld [vmem:[%s341 + $0xfa8] sm:$0xff]
        %v906 = vld [vmem:[%s341 + $0xfb0] sm:$0xff]
        %v907 = vld [vmem:[%s341 + $0xfb8] sm:$0xff]
        %v908 = vld [vmem:[%s341 + $0xfc0] sm:$0xff]
        %v909 = vld [vmem:[%s341 + $0xfc8] sm:$0xff]
        %v910 = vld [vmem:[%s341 + $0xfd0] sm:$0xff]
        %v911 = vld [vmem:[%s341 + $0xfd8] sm:$0xff]
        %v912 = vld [vmem:[%s341 + $0xfe0] sm:$0xff]
        %v913 = vld [vmem:[%s341 + $0xfe8] sm:$0xff]
        %v914 = vld [vmem:[%s341 + $0xff0] sm:$0xff]
        %v915 = vld [vmem:[%s341 + $0xff8] sm:$0xff]
        %v916 = vunpack.c.l.s8.bf16 %v404
        %v917 = vunpack.c.l.s8.bf16 %v405
        %v918 = vunpack.c.h.s8.bf16 %v404
        %v919 = vunpack.c.h.s8.bf16 %v405
        %v920 = vunpack.c.l.s8.bf16 %v406
        %v921 = vunpack.c.l.s8.bf16 %v407
        %v922 = vunpack.c.h.s8.bf16 %v406
        %v923 = vunpack.c.h.s8.bf16 %v407
        %v924 = vunpack.c.l.s8.bf16 %v408
        %v925 = vunpack.c.l.s8.bf16 %v409
        %v926 = vunpack.c.h.s8.bf16 %v408
        %v927 = vunpack.c.h.s8.bf16 %v409
        %v928 = vunpack.c.l.s8.bf16 %v410
        %v929 = vunpack.c.l.s8.bf16 %v411
        %v930 = vunpack.c.h.s8.bf16 %v410
        %v931 = vunpack.c.h.s8.bf16 %v411
        %v932 = vunpack.c.l.s8.bf16 %v412
        %v933 = vunpack.c.l.s8.bf16 %v413
        %v934 = vunpack.c.h.s8.bf16 %v412
        %v935 = vunpack.c.h.s8.bf16 %v413
        %v936 = vunpack.c.l.s8.bf16 %v414
        %v937 = vunpack.c.l.s8.bf16 %v415
        %v938 = vunpack.c.h.s8.bf16 %v414
        %v939 = vunpack.c.h.s8.bf16 %v415
        %v940 = vunpack.c.l.s8.bf16 %v416
        %v941 = vunpack.c.l.s8.bf16 %v417
        %v942 = vunpack.c.h.s8.bf16 %v416
        %v943 = vunpack.c.h.s8.bf16 %v417
        %v944 = vunpack.c.l.s8.bf16 %v418
        %v945 = vunpack.c.l.s8.bf16 %v419
        %v946 = vunpack.c.h.s8.bf16 %v418
        %v947 = vunpack.c.h.s8.bf16 %v419
        %v948 = vunpack.c.l.s8.bf16 %v420
        %v949 = vunpack.c.l.s8.bf16 %v421
        %v950 = vunpack.c.h.s8.bf16 %v420
        %v951 = vunpack.c.h.s8.bf16 %v421
        %v952 = vunpack.c.l.s8.bf16 %v422
        %v953 = vunpack.c.l.s8.bf16 %v423
        %v954 = vunpack.c.h.s8.bf16 %v422
        %v955 = vunpack.c.h.s8.bf16 %v423
        %v956 = vunpack.c.l.s8.bf16 %v424
        %v957 = vunpack.c.l.s8.bf16 %v425
        %v958 = vunpack.c.h.s8.bf16 %v424
        %v959 = vunpack.c.h.s8.bf16 %v425
        %v960 = vunpack.c.l.s8.bf16 %v426
        %v961 = vunpack.c.l.s8.bf16 %v427
        %v962 = vunpack.c.h.s8.bf16 %v426
        %v963 = vunpack.c.h.s8.bf16 %v427
        %v964 = vunpack.c.l.s8.bf16 %v428
        %v965 = vunpack.c.l.s8.bf16 %v429
        %v966 = vunpack.c.h.s8.bf16 %v428
        %v967 = vunpack.c.h.s8.bf16 %v429
        %v968 = vunpack.c.l.s8.bf16 %v430
        %v969 = vunpack.c.l.s8.bf16 %v431
        %v970 = vunpack.c.h.s8.bf16 %v430
        %v971 = vunpack.c.h.s8.bf16 %v431
        %v972 = vunpack.c.l.s8.bf16 %v432
        %v973 = vunpack.c.l.s8.bf16 %v433
        %v974 = vunpack.c.h.s8.bf16 %v432
        %v975 = vunpack.c.h.s8.bf16 %v433
        %v976 = vunpack.c.l.s8.bf16 %v434
        %v977 = vunpack.c.l.s8.bf16 %v435
        %v978 = vunpack.c.h.s8.bf16 %v434
        %v979 = vunpack.c.h.s8.bf16 %v435
        %v980 = vunpack.c.l.s8.bf16 %v436
        %v981 = vunpack.c.l.s8.bf16 %v437
        %v982 = vunpack.c.h.s8.bf16 %v436
        %v983 = vunpack.c.h.s8.bf16 %v437
        %v984 = vunpack.c.l.s8.bf16 %v438
        %v985 = vunpack.c.l.s8.bf16 %v439
        %v986 = vunpack.c.h.s8.bf16 %v438
        %v987 = vunpack.c.h.s8.bf16 %v439
        %v988 = vunpack.c.l.s8.bf16 %v440
        %v989 = vunpack.c.l.s8.bf16 %v441
        %v990 = vunpack.c.h.s8.bf16 %v440
        %v991 = vunpack.c.h.s8.bf16 %v441
        %v992 = vunpack.c.l.s8.bf16 %v442
        %v993 = vunpack.c.l.s8.bf16 %v443
        %v994 = vunpack.c.h.s8.bf16 %v442
        %v995 = vunpack.c.h.s8.bf16 %v443
        %v996 = vunpack.c.l.s8.bf16 %v444
        %v997 = vunpack.c.l.s8.bf16 %v445
        %v998 = vunpack.c.h.s8.bf16 %v444
        %v999 = vunpack.c.h.s8.bf16 %v445
        %v1000 = vunpack.c.l.s8.bf16 %v446
        %v1001 = vunpack.c.l.s8.bf16 %v447
        %v1002 = vunpack.c.h.s8.bf16 %v446
        %v1003 = vunpack.c.h.s8.bf16 %v447
        %v1004 = vunpack.c.l.s8.bf16 %v448
        %v1005 = vunpack.c.l.s8.bf16 %v449
        %v1006 = vunpack.c.h.s8.bf16 %v448
        %v1007 = vunpack.c.h.s8.bf16 %v449
        %v1008 = vunpack.c.l.s8.bf16 %v450
        %v1009 = vunpack.c.l.s8.bf16 %v451
        %v1010 = vunpack.c.h.s8.bf16 %v450
        %v1011 = vunpack.c.h.s8.bf16 %v451
        %v1012 = vunpack.c.l.s8.bf16 %v452
        %v1013 = vunpack.c.l.s8.bf16 %v453
        %v1014 = vunpack.c.h.s8.bf16 %v452
        %v1015 = vunpack.c.h.s8.bf16 %v453
        %v1016 = vunpack.c.l.s8.bf16 %v454
        %v1017 = vunpack.c.l.s8.bf16 %v455
        %v1018 = vunpack.c.h.s8.bf16 %v454
        %v1019 = vunpack.c.h.s8.bf16 %v455
        %v1020 = vunpack.c.l.s8.bf16 %v456
        %v1021 = vunpack.c.l.s8.bf16 %v457
        %v1022 = vunpack.c.h.s8.bf16 %v456
        %v1023 = vunpack.c.h.s8.bf16 %v457
        %v1024 = vunpack.c.l.s8.bf16 %v458
        %v1025 = vunpack.c.l.s8.bf16 %v459
        %v1026 = vunpack.c.h.s8.bf16 %v458
        %v1027 = vunpack.c.h.s8.bf16 %v459
        %v1028 = vunpack.c.l.s8.bf16 %v460
        %v1029 = vunpack.c.l.s8.bf16 %v461
        %v1030 = vunpack.c.h.s8.bf16 %v460
        %v1031 = vunpack.c.h.s8.bf16 %v461
        %v1032 = vunpack.c.l.s8.bf16 %v462
        %v1033 = vunpack.c.l.s8.bf16 %v463
        %v1034 = vunpack.c.h.s8.bf16 %v462
        %v1035 = vunpack.c.h.s8.bf16 %v463
        %v1036 = vunpack.c.l.s8.bf16 %v464
        %v1037 = vunpack.c.l.s8.bf16 %v465
        %v1038 = vunpack.c.h.s8.bf16 %v464
        %v1039 = vunpack.c.h.s8.bf16 %v465
        %v1040 = vunpack.c.l.s8.bf16 %v466
        %v1041 = vunpack.c.l.s8.bf16 %v467
        %v1042 = vunpack.c.h.s8.bf16 %v466
        %v1043 = vunpack.c.h.s8.bf16 %v467
        %v1044 = vunpack.c.l.s8.bf16 %v468
        %v1045 = vunpack.c.l.s8.bf16 %v469
        %v1046 = vunpack.c.h.s8.bf16 %v468
        %v1047 = vunpack.c.h.s8.bf16 %v469
        %v1048 = vunpack.c.l.s8.bf16 %v470
        %v1049 = vunpack.c.l.s8.bf16 %v471
        %v1050 = vunpack.c.h.s8.bf16 %v470
        %v1051 = vunpack.c.h.s8.bf16 %v471
        %v1052 = vunpack.c.l.s8.bf16 %v472
        %v1053 = vunpack.c.l.s8.bf16 %v473
        %v1054 = vunpack.c.h.s8.bf16 %v472
        %v1055 = vunpack.c.h.s8.bf16 %v473
        %v1056 = vunpack.c.l.s8.bf16 %v474
        %v1057 = vunpack.c.l.s8.bf16 %v475
        %v1058 = vunpack.c.h.s8.bf16 %v474
        %v1059 = vunpack.c.h.s8.bf16 %v475
        %v1060 = vunpack.c.l.s8.bf16 %v476
        %v1061 = vunpack.c.l.s8.bf16 %v477
        %v1062 = vunpack.c.h.s8.bf16 %v476
        %v1063 = vunpack.c.h.s8.bf16 %v477
        %v1064 = vunpack.c.l.s8.bf16 %v478
        %v1065 = vunpack.c.l.s8.bf16 %v479
        %v1066 = vunpack.c.h.s8.bf16 %v478
        %v1067 = vunpack.c.h.s8.bf16 %v479
        %v1068 = vunpack.c.l.s8.bf16 %v480
        %v1069 = vunpack.c.l.s8.bf16 %v481
        %v1070 = vunpack.c.h.s8.bf16 %v480
        %v1071 = vunpack.c.h.s8.bf16 %v481
        %v1072 = vunpack.c.l.s8.bf16 %v482
        %v1073 = vunpack.c.l.s8.bf16 %v483
        %v1074 = vunpack.c.h.s8.bf16 %v482
        %v1075 = vunpack.c.h.s8.bf16 %v483
        %v1076 = vunpack.c.l.s8.bf16 %v484
        %v1077 = vunpack.c.l.s8.bf16 %v485
        %v1078 = vunpack.c.h.s8.bf16 %v484
        %v1079 = vunpack.c.h.s8.bf16 %v485
        %v1080 = vunpack.c.l.s8.bf16 %v486
        %v1081 = vunpack.c.l.s8.bf16 %v487
        %v1082 = vunpack.c.h.s8.bf16 %v486
        %v1083 = vunpack.c.h.s8.bf16 %v487
        %v1084 = vunpack.c.l.s8.bf16 %v488
        %v1085 = vunpack.c.l.s8.bf16 %v489
        %v1086 = vunpack.c.h.s8.bf16 %v488
        %v1087 = vunpack.c.h.s8.bf16 %v489
        %v1088 = vunpack.c.l.s8.bf16 %v490
        %v1089 = vunpack.c.l.s8.bf16 %v491
        %v1090 = vunpack.c.h.s8.bf16 %v490
        %v1091 = vunpack.c.h.s8.bf16 %v491
        %v1092 = vunpack.c.l.s8.bf16 %v492
        %v1093 = vunpack.c.l.s8.bf16 %v493
        %v1094 = vunpack.c.h.s8.bf16 %v492
        %v1095 = vunpack.c.h.s8.bf16 %v493
        %v1096 = vunpack.c.l.s8.bf16 %v494
        %v1097 = vunpack.c.l.s8.bf16 %v495
        %v1098 = vunpack.c.h.s8.bf16 %v494
        %v1099 = vunpack.c.h.s8.bf16 %v495
        %v1100 = vunpack.c.l.s8.bf16 %v496
        %v1101 = vunpack.c.l.s8.bf16 %v497
        %v1102 = vunpack.c.h.s8.bf16 %v496
        %v1103 = vunpack.c.h.s8.bf16 %v497
        %v1104 = vunpack.c.l.s8.bf16 %v498
        %v1105 = vunpack.c.l.s8.bf16 %v499
        %v1106 = vunpack.c.h.s8.bf16 %v498
        %v1107 = vunpack.c.h.s8.bf16 %v499
        %v1108 = vunpack.c.l.s8.bf16 %v500
        %v1109 = vunpack.c.l.s8.bf16 %v501
        %v1110 = vunpack.c.h.s8.bf16 %v500
        %v1111 = vunpack.c.h.s8.bf16 %v501
        %v1112 = vunpack.c.l.s8.bf16 %v502
        %v1113 = vunpack.c.l.s8.bf16 %v503
        %v1114 = vunpack.c.h.s8.bf16 %v502
        %v1115 = vunpack.c.h.s8.bf16 %v503
        %v1116 = vunpack.c.l.s8.bf16 %v504
        %v1117 = vunpack.c.l.s8.bf16 %v505
        %v1118 = vunpack.c.h.s8.bf16 %v504
        %v1119 = vunpack.c.h.s8.bf16 %v505
        %v1120 = vunpack.c.l.s8.bf16 %v506
        %v1121 = vunpack.c.l.s8.bf16 %v507
        %v1122 = vunpack.c.h.s8.bf16 %v506
        %v1123 = vunpack.c.h.s8.bf16 %v507
        %v1124 = vunpack.c.l.s8.bf16 %v508
        %v1125 = vunpack.c.l.s8.bf16 %v509
        %v1126 = vunpack.c.h.s8.bf16 %v508
        %v1127 = vunpack.c.h.s8.bf16 %v509
        %v1128 = vunpack.c.l.s8.bf16 %v510
        %v1129 = vunpack.c.l.s8.bf16 %v511
        %v1130 = vunpack.c.h.s8.bf16 %v510
        %v1131 = vunpack.c.h.s8.bf16 %v511
        %v1132 = vunpack.c.l.s8.bf16 %v512
        %v1133 = vunpack.c.l.s8.bf16 %v513
        %v1134 = vunpack.c.h.s8.bf16 %v512
        %v1135 = vunpack.c.h.s8.bf16 %v513
        %v1136 = vunpack.c.l.s8.bf16 %v514
        %v1137 = vunpack.c.l.s8.bf16 %v515
        %v1138 = vunpack.c.h.s8.bf16 %v514
        %v1139 = vunpack.c.h.s8.bf16 %v515
        %v1140 = vunpack.c.l.s8.bf16 %v516
        %v1141 = vunpack.c.l.s8.bf16 %v517
        %v1142 = vunpack.c.h.s8.bf16 %v516
        %v1143 = vunpack.c.h.s8.bf16 %v517
        %v1144 = vunpack.c.l.s8.bf16 %v518
        %v1145 = vunpack.c.l.s8.bf16 %v519
        %v1146 = vunpack.c.h.s8.bf16 %v518
        %v1147 = vunpack.c.h.s8.bf16 %v519
        %v1148 = vunpack.c.l.s8.bf16 %v520
        %v1149 = vunpack.c.l.s8.bf16 %v521
        %v1150 = vunpack.c.h.s8.bf16 %v520
        %v1151 = vunpack.c.h.s8.bf16 %v521
        %v1152 = vunpack.c.l.s8.bf16 %v522
        %v1153 = vunpack.c.l.s8.bf16 %v523
        %v1154 = vunpack.c.h.s8.bf16 %v522
        %v1155 = vunpack.c.h.s8.bf16 %v523
        %v1156 = vunpack.c.l.s8.bf16 %v524
        %v1157 = vunpack.c.l.s8.bf16 %v525
        %v1158 = vunpack.c.h.s8.bf16 %v524
        %v1159 = vunpack.c.h.s8.bf16 %v525
        %v1160 = vunpack.c.l.s8.bf16 %v526
        %v1161 = vunpack.c.l.s8.bf16 %v527
        %v1162 = vunpack.c.h.s8.bf16 %v526
        %v1163 = vunpack.c.h.s8.bf16 %v527
        %v1164 = vunpack.c.l.s8.bf16 %v528
        %v1165 = vunpack.c.l.s8.bf16 %v529
        %v1166 = vunpack.c.h.s8.bf16 %v528
        %v1167 = vunpack.c.h.s8.bf16 %v529
        %v1168 = vunpack.c.l.s8.bf16 %v530
        %v1169 = vunpack.c.l.s8.bf16 %v531
        %v1170 = vunpack.c.h.s8.bf16 %v530
        %v1171 = vunpack.c.h.s8.bf16 %v531
        %v1172 = vunpack.c.l.s8.bf16 %v532
        %v1173 = vunpack.c.l.s8.bf16 %v533
        %v1174 = vunpack.c.h.s8.bf16 %v532
        %v1175 = vunpack.c.h.s8.bf16 %v533
        %v1176 = vunpack.c.l.s8.bf16 %v534
        %v1177 = vunpack.c.l.s8.bf16 %v535
        %v1178 = vunpack.c.h.s8.bf16 %v534
        %v1179 = vunpack.c.h.s8.bf16 %v535
        %v1180 = vunpack.c.l.s8.bf16 %v536
        %v1181 = vunpack.c.l.s8.bf16 %v537
        %v1182 = vunpack.c.h.s8.bf16 %v536
        %v1183 = vunpack.c.h.s8.bf16 %v537
        %v1184 = vunpack.c.l.s8.bf16 %v538
        %v1185 = vunpack.c.l.s8.bf16 %v539
        %v1186 = vunpack.c.h.s8.bf16 %v538
        %v1187 = vunpack.c.h.s8.bf16 %v539
        %v1188 = vunpack.c.l.s8.bf16 %v540
        %v1189 = vunpack.c.l.s8.bf16 %v541
        %v1190 = vunpack.c.h.s8.bf16 %v540
        %v1191 = vunpack.c.h.s8.bf16 %v541
        %v1192 = vunpack.c.l.s8.bf16 %v542
        %v1193 = vunpack.c.l.s8.bf16 %v543
        %v1194 = vunpack.c.h.s8.bf16 %v542
        %v1195 = vunpack.c.h.s8.bf16 %v543
        %v1196 = vunpack.c.l.s8.bf16 %v544
        %v1197 = vunpack.c.l.s8.bf16 %v545
        %v1198 = vunpack.c.h.s8.bf16 %v544
        %v1199 = vunpack.c.h.s8.bf16 %v545
        %v1200 = vunpack.c.l.s8.bf16 %v546
        %v1201 = vunpack.c.l.s8.bf16 %v547
        %v1202 = vunpack.c.h.s8.bf16 %v546
        %v1203 = vunpack.c.h.s8.bf16 %v547
        %v1204 = vunpack.c.l.s8.bf16 %v548
        %v1205 = vunpack.c.l.s8.bf16 %v549
        %v1206 = vunpack.c.h.s8.bf16 %v548
        %v1207 = vunpack.c.h.s8.bf16 %v549
        %v1208 = vunpack.c.l.s8.bf16 %v550
        %v1209 = vunpack.c.l.s8.bf16 %v551
        %v1210 = vunpack.c.h.s8.bf16 %v550
        %v1211 = vunpack.c.h.s8.bf16 %v551
        %v1212 = vunpack.c.l.s8.bf16 %v552
        %v1213 = vunpack.c.l.s8.bf16 %v553
        %v1214 = vunpack.c.h.s8.bf16 %v552
        %v1215 = vunpack.c.h.s8.bf16 %v553
        %v1216 = vunpack.c.l.s8.bf16 %v554
        %v1217 = vunpack.c.l.s8.bf16 %v555
        %v1218 = vunpack.c.h.s8.bf16 %v554
        %v1219 = vunpack.c.h.s8.bf16 %v555
        %v1220 = vunpack.c.l.s8.bf16 %v556
        %v1221 = vunpack.c.l.s8.bf16 %v557
        %v1222 = vunpack.c.h.s8.bf16 %v556
        %v1223 = vunpack.c.h.s8.bf16 %v557
        %v1224 = vunpack.c.l.s8.bf16 %v558
        %v1225 = vunpack.c.l.s8.bf16 %v559
        %v1226 = vunpack.c.h.s8.bf16 %v558
        %v1227 = vunpack.c.h.s8.bf16 %v559
        %v1228 = vunpack.c.l.s8.bf16 %v560
        %v1229 = vunpack.c.l.s8.bf16 %v561
        %v1230 = vunpack.c.h.s8.bf16 %v560
        %v1231 = vunpack.c.h.s8.bf16 %v561
        %v1232 = vunpack.c.l.s8.bf16 %v562
        %v1233 = vunpack.c.l.s8.bf16 %v563
        %v1234 = vunpack.c.h.s8.bf16 %v562
        %v1235 = vunpack.c.h.s8.bf16 %v563
        %v1236 = vunpack.c.l.s8.bf16 %v564
        %v1237 = vunpack.c.l.s8.bf16 %v565
        %v1238 = vunpack.c.h.s8.bf16 %v564
        %v1239 = vunpack.c.h.s8.bf16 %v565
        %v1240 = vunpack.c.l.s8.bf16 %v566
        %v1241 = vunpack.c.l.s8.bf16 %v567
        %v1242 = vunpack.c.h.s8.bf16 %v566
        %v1243 = vunpack.c.h.s8.bf16 %v567
        %v1244 = vunpack.c.l.s8.bf16 %v568
        %v1245 = vunpack.c.l.s8.bf16 %v569
        %v1246 = vunpack.c.h.s8.bf16 %v568
        %v1247 = vunpack.c.h.s8.bf16 %v569
        %v1248 = vunpack.c.l.s8.bf16 %v570
        %v1249 = vunpack.c.l.s8.bf16 %v571
        %v1250 = vunpack.c.h.s8.bf16 %v570
        %v1251 = vunpack.c.h.s8.bf16 %v571
        %v1252 = vunpack.c.l.s8.bf16 %v572
        %v1253 = vunpack.c.l.s8.bf16 %v573
        %v1254 = vunpack.c.h.s8.bf16 %v572
        %v1255 = vunpack.c.h.s8.bf16 %v573
        %v1256 = vunpack.c.l.s8.bf16 %v574
        %v1257 = vunpack.c.l.s8.bf16 %v575
        %v1258 = vunpack.c.h.s8.bf16 %v574
        %v1259 = vunpack.c.h.s8.bf16 %v575
        %v1260 = vunpack.c.l.s8.bf16 %v576
        %v1261 = vunpack.c.l.s8.bf16 %v577
        %v1262 = vunpack.c.h.s8.bf16 %v576
        %v1263 = vunpack.c.h.s8.bf16 %v577
        %v1264 = vunpack.c.l.s8.bf16 %v578
        %v1265 = vunpack.c.l.s8.bf16 %v579
        %v1266 = vunpack.c.h.s8.bf16 %v578
        %v1267 = vunpack.c.h.s8.bf16 %v579
        %v1268 = vunpack.c.l.s8.bf16 %v580
        %v1269 = vunpack.c.l.s8.bf16 %v581
        %v1270 = vunpack.c.h.s8.bf16 %v580
        %v1271 = vunpack.c.h.s8.bf16 %v581
        %v1272 = vunpack.c.l.s8.bf16 %v582
        %v1273 = vunpack.c.l.s8.bf16 %v583
        %v1274 = vunpack.c.h.s8.bf16 %v582
        %v1275 = vunpack.c.h.s8.bf16 %v583
        %v1276 = vunpack.c.l.s8.bf16 %v584
        %v1277 = vunpack.c.l.s8.bf16 %v585
        %v1278 = vunpack.c.h.s8.bf16 %v584
        %v1279 = vunpack.c.h.s8.bf16 %v585
        %v1280 = vunpack.c.l.s8.bf16 %v586
        %v1281 = vunpack.c.l.s8.bf16 %v587
        %v1282 = vunpack.c.h.s8.bf16 %v586
        %v1283 = vunpack.c.h.s8.bf16 %v587
        %v1284 = vunpack.c.l.s8.bf16 %v588
        %v1285 = vunpack.c.l.s8.bf16 %v589
        %v1286 = vunpack.c.h.s8.bf16 %v588
        %v1287 = vunpack.c.h.s8.bf16 %v589
        %v1288 = vunpack.c.l.s8.bf16 %v590
        %v1289 = vunpack.c.l.s8.bf16 %v591
        %v1290 = vunpack.c.h.s8.bf16 %v590
        %v1291 = vunpack.c.h.s8.bf16 %v591
        %v1292 = vunpack.c.l.s8.bf16 %v592
        %v1293 = vunpack.c.l.s8.bf16 %v593
        %v1294 = vunpack.c.h.s8.bf16 %v592
        %v1295 = vunpack.c.h.s8.bf16 %v593
        %v1296 = vunpack.c.l.s8.bf16 %v594
        %v1297 = vunpack.c.l.s8.bf16 %v595
        %v1298 = vunpack.c.h.s8.bf16 %v594
        %v1299 = vunpack.c.h.s8.bf16 %v595
        %v1300 = vunpack.c.l.s8.bf16 %v596
        %v1301 = vunpack.c.l.s8.bf16 %v597
        %v1302 = vunpack.c.h.s8.bf16 %v596
        %v1303 = vunpack.c.h.s8.bf16 %v597
        %v1304 = vunpack.c.l.s8.bf16 %v598
        %v1305 = vunpack.c.l.s8.bf16 %v599
        %v1306 = vunpack.c.h.s8.bf16 %v598
        %v1307 = vunpack.c.h.s8.bf16 %v599
        %v1308 = vunpack.c.l.s8.bf16 %v600
        %v1309 = vunpack.c.l.s8.bf16 %v601
        %v1310 = vunpack.c.h.s8.bf16 %v600
        %v1311 = vunpack.c.h.s8.bf16 %v601
        %v1312 = vunpack.c.l.s8.bf16 %v602
        %v1313 = vunpack.c.l.s8.bf16 %v603
        %v1314 = vunpack.c.h.s8.bf16 %v602
        %v1315 = vunpack.c.h.s8.bf16 %v603
        %v1316 = vunpack.c.l.s8.bf16 %v604
        %v1317 = vunpack.c.l.s8.bf16 %v605
        %v1318 = vunpack.c.h.s8.bf16 %v604
        %v1319 = vunpack.c.h.s8.bf16 %v605
        %v1320 = vunpack.c.l.s8.bf16 %v606
        %v1321 = vunpack.c.l.s8.bf16 %v607
        %v1322 = vunpack.c.h.s8.bf16 %v606
        %v1323 = vunpack.c.h.s8.bf16 %v607
        %v1324 = vunpack.c.l.s8.bf16 %v608
        %v1325 = vunpack.c.l.s8.bf16 %v609
        %v1326 = vunpack.c.h.s8.bf16 %v608
        %v1327 = vunpack.c.h.s8.bf16 %v609
        %v1328 = vunpack.c.l.s8.bf16 %v610
        %v1329 = vunpack.c.l.s8.bf16 %v611
        %v1330 = vunpack.c.h.s8.bf16 %v610
        %v1331 = vunpack.c.h.s8.bf16 %v611
        %v1332 = vunpack.c.l.s8.bf16 %v612
        %v1333 = vunpack.c.l.s8.bf16 %v613
        %v1334 = vunpack.c.h.s8.bf16 %v612
        %v1335 = vunpack.c.h.s8.bf16 %v613
        %v1336 = vunpack.c.l.s8.bf16 %v614
        %v1337 = vunpack.c.l.s8.bf16 %v615
        %v1338 = vunpack.c.h.s8.bf16 %v614
        %v1339 = vunpack.c.h.s8.bf16 %v615
        %v1340 = vunpack.c.l.s8.bf16 %v616
        %v1341 = vunpack.c.l.s8.bf16 %v617
        %v1342 = vunpack.c.h.s8.bf16 %v616
        %v1343 = vunpack.c.h.s8.bf16 %v617
        %v1344 = vunpack.c.l.s8.bf16 %v618
        %v1345 = vunpack.c.l.s8.bf16 %v619
        %v1346 = vunpack.c.h.s8.bf16 %v618
        %v1347 = vunpack.c.h.s8.bf16 %v619
        %v1348 = vunpack.c.l.s8.bf16 %v620
        %v1349 = vunpack.c.l.s8.bf16 %v621
        %v1350 = vunpack.c.h.s8.bf16 %v620
        %v1351 = vunpack.c.h.s8.bf16 %v621
        %v1352 = vunpack.c.l.s8.bf16 %v622
        %v1353 = vunpack.c.l.s8.bf16 %v623
        %v1354 = vunpack.c.h.s8.bf16 %v622
        %v1355 = vunpack.c.h.s8.bf16 %v623
        %v1356 = vunpack.c.l.s8.bf16 %v624
        %v1357 = vunpack.c.l.s8.bf16 %v625
        %v1358 = vunpack.c.h.s8.bf16 %v624
        %v1359 = vunpack.c.h.s8.bf16 %v625
        %v1360 = vunpack.c.l.s8.bf16 %v626
        %v1361 = vunpack.c.l.s8.bf16 %v627
        %v1362 = vunpack.c.h.s8.bf16 %v626
        %v1363 = vunpack.c.h.s8.bf16 %v627
        %v1364 = vunpack.c.l.s8.bf16 %v628
        %v1365 = vunpack.c.l.s8.bf16 %v629
        %v1366 = vunpack.c.h.s8.bf16 %v628
        %v1367 = vunpack.c.h.s8.bf16 %v629
        %v1368 = vunpack.c.l.s8.bf16 %v630
        %v1369 = vunpack.c.l.s8.bf16 %v631
        %v1370 = vunpack.c.h.s8.bf16 %v630
        %v1371 = vunpack.c.h.s8.bf16 %v631
        %v1372 = vunpack.c.l.s8.bf16 %v632
        %v1373 = vunpack.c.l.s8.bf16 %v633
        %v1374 = vunpack.c.h.s8.bf16 %v632
        %v1375 = vunpack.c.h.s8.bf16 %v633
        %v1376 = vunpack.c.l.s8.bf16 %v634
        %v1377 = vunpack.c.l.s8.bf16 %v635
        %v1378 = vunpack.c.h.s8.bf16 %v634
        %v1379 = vunpack.c.h.s8.bf16 %v635
        %v1380 = vunpack.c.l.s8.bf16 %v636
        %v1381 = vunpack.c.l.s8.bf16 %v637
        %v1382 = vunpack.c.h.s8.bf16 %v636
        %v1383 = vunpack.c.h.s8.bf16 %v637
        %v1384 = vunpack.c.l.s8.bf16 %v638
        %v1385 = vunpack.c.l.s8.bf16 %v639
        %v1386 = vunpack.c.h.s8.bf16 %v638
        %v1387 = vunpack.c.h.s8.bf16 %v639
        %v1388 = vunpack.c.l.s8.bf16 %v640
        %v1389 = vunpack.c.l.s8.bf16 %v641
        %v1390 = vunpack.c.h.s8.bf16 %v640
        %v1391 = vunpack.c.h.s8.bf16 %v641
        %v1392 = vunpack.c.l.s8.bf16 %v642
        %v1393 = vunpack.c.l.s8.bf16 %v643
        %v1394 = vunpack.c.h.s8.bf16 %v642
        %v1395 = vunpack.c.h.s8.bf16 %v643
        %v1396 = vunpack.c.l.s8.bf16 %v644
        %v1397 = vunpack.c.l.s8.bf16 %v645
        %v1398 = vunpack.c.h.s8.bf16 %v644
        %v1399 = vunpack.c.h.s8.bf16 %v645
        %v1400 = vunpack.c.l.s8.bf16 %v646
        %v1401 = vunpack.c.l.s8.bf16 %v647
        %v1402 = vunpack.c.h.s8.bf16 %v646
        %v1403 = vunpack.c.h.s8.bf16 %v647
        %v1404 = vunpack.c.l.s8.bf16 %v648
        %v1405 = vunpack.c.l.s8.bf16 %v649
        %v1406 = vunpack.c.h.s8.bf16 %v648
        %v1407 = vunpack.c.h.s8.bf16 %v649
        %v1408 = vunpack.c.l.s8.bf16 %v650
        %v1409 = vunpack.c.l.s8.bf16 %v651
        %v1410 = vunpack.c.h.s8.bf16 %v650
        %v1411 = vunpack.c.h.s8.bf16 %v651
        %v1412 = vunpack.c.l.s8.bf16 %v652
        %v1413 = vunpack.c.l.s8.bf16 %v653
        %v1414 = vunpack.c.h.s8.bf16 %v652
        %v1415 = vunpack.c.h.s8.bf16 %v653
        %v1416 = vunpack.c.l.s8.bf16 %v654
        %v1417 = vunpack.c.l.s8.bf16 %v655
        %v1418 = vunpack.c.h.s8.bf16 %v654
        %v1419 = vunpack.c.h.s8.bf16 %v655
        %v1420 = vunpack.c.l.s8.bf16 %v656
        %v1421 = vunpack.c.l.s8.bf16 %v657
        %v1422 = vunpack.c.h.s8.bf16 %v656
        %v1423 = vunpack.c.h.s8.bf16 %v657
        %v1424 = vunpack.c.l.s8.bf16 %v658
        %v1425 = vunpack.c.l.s8.bf16 %v659
        %v1426 = vunpack.c.h.s8.bf16 %v658
        %v1427 = vunpack.c.h.s8.bf16 %v659
        %v1428 = vunpack.c.l.s8.bf16 %v660
        %v1429 = vunpack.c.l.s8.bf16 %v661
        %v1430 = vunpack.c.h.s8.bf16 %v660
        %v1431 = vunpack.c.h.s8.bf16 %v661
        %v1432 = vunpack.c.l.s8.bf16 %v662
        %v1433 = vunpack.c.l.s8.bf16 %v663
        %v1434 = vunpack.c.h.s8.bf16 %v662
        %v1435 = vunpack.c.h.s8.bf16 %v663
        %v1436 = vunpack.c.l.s8.bf16 %v664
        %v1437 = vunpack.c.l.s8.bf16 %v665
        %v1438 = vunpack.c.h.s8.bf16 %v664
        %v1439 = vunpack.c.h.s8.bf16 %v665
        %v1440 = vunpack.c.l.s8.bf16 %v666
        %v1441 = vunpack.c.l.s8.bf16 %v667
        %v1442 = vunpack.c.h.s8.bf16 %v666
        %v1443 = vunpack.c.h.s8.bf16 %v667
        %v1444 = vunpack.c.l.s8.bf16 %v668
        %v1445 = vunpack.c.l.s8.bf16 %v669
        %v1446 = vunpack.c.h.s8.bf16 %v668
        %v1447 = vunpack.c.h.s8.bf16 %v669
        %v1448 = vunpack.c.l.s8.bf16 %v670
        %v1449 = vunpack.c.l.s8.bf16 %v671
        %v1450 = vunpack.c.h.s8.bf16 %v670
        %v1451 = vunpack.c.h.s8.bf16 %v671
        %v1452 = vunpack.c.l.s8.bf16 %v672
        %v1453 = vunpack.c.l.s8.bf16 %v673
        %v1454 = vunpack.c.h.s8.bf16 %v672
        %v1455 = vunpack.c.h.s8.bf16 %v673
        %v1456 = vunpack.c.l.s8.bf16 %v674
        %v1457 = vunpack.c.l.s8.bf16 %v675
        %v1458 = vunpack.c.h.s8.bf16 %v674
        %v1459 = vunpack.c.h.s8.bf16 %v675
        %v1460 = vunpack.c.l.s8.bf16 %v676
        %v1461 = vunpack.c.l.s8.bf16 %v677
        %v1462 = vunpack.c.h.s8.bf16 %v676
        %v1463 = vunpack.c.h.s8.bf16 %v677
        %v1464 = vunpack.c.l.s8.bf16 %v678
        %v1465 = vunpack.c.l.s8.bf16 %v679
        %v1466 = vunpack.c.h.s8.bf16 %v678
        %v1467 = vunpack.c.h.s8.bf16 %v679
        %v1468 = vunpack.c.l.s8.bf16 %v680
        %v1469 = vunpack.c.l.s8.bf16 %v681
        %v1470 = vunpack.c.h.s8.bf16 %v680
        %v1471 = vunpack.c.h.s8.bf16 %v681
        %v1472 = vunpack.c.l.s8.bf16 %v682
        %v1473 = vunpack.c.l.s8.bf16 %v683
        %v1474 = vunpack.c.h.s8.bf16 %v682
        %v1475 = vunpack.c.h.s8.bf16 %v683
        %v1476 = vunpack.c.l.s8.bf16 %v684
        %v1477 = vunpack.c.l.s8.bf16 %v685
        %v1478 = vunpack.c.h.s8.bf16 %v684
        %v1479 = vunpack.c.h.s8.bf16 %v685
        %v1480 = vunpack.c.l.s8.bf16 %v686
        %v1481 = vunpack.c.l.s8.bf16 %v687
        %v1482 = vunpack.c.h.s8.bf16 %v686
        %v1483 = vunpack.c.h.s8.bf16 %v687
        %v1484 = vunpack.c.l.s8.bf16 %v688
        %v1485 = vunpack.c.l.s8.bf16 %v689
        %v1486 = vunpack.c.h.s8.bf16 %v688
        %v1487 = vunpack.c.h.s8.bf16 %v689
        %v1488 = vunpack.c.l.s8.bf16 %v690
        %v1489 = vunpack.c.l.s8.bf16 %v691
        %v1490 = vunpack.c.h.s8.bf16 %v690
        %v1491 = vunpack.c.h.s8.bf16 %v691
        %v1492 = vunpack.c.l.s8.bf16 %v692
        %v1493 = vunpack.c.l.s8.bf16 %v693
        %v1494 = vunpack.c.h.s8.bf16 %v692
        %v1495 = vunpack.c.h.s8.bf16 %v693
        %v1496 = vunpack.c.l.s8.bf16 %v694
        %v1497 = vunpack.c.l.s8.bf16 %v695
        %v1498 = vunpack.c.h.s8.bf16 %v694
        %v1499 = vunpack.c.h.s8.bf16 %v695
        %v1500 = vunpack.c.l.s8.bf16 %v696
        %v1501 = vunpack.c.l.s8.bf16 %v697
        %v1502 = vunpack.c.h.s8.bf16 %v696
        %v1503 = vunpack.c.h.s8.bf16 %v697
        %v1504 = vunpack.c.l.s8.bf16 %v698
        %v1505 = vunpack.c.l.s8.bf16 %v699
        %v1506 = vunpack.c.h.s8.bf16 %v698
        %v1507 = vunpack.c.h.s8.bf16 %v699
        %v1508 = vunpack.c.l.s8.bf16 %v700
        %v1509 = vunpack.c.l.s8.bf16 %v701
        %v1510 = vunpack.c.h.s8.bf16 %v700
        %v1511 = vunpack.c.h.s8.bf16 %v701
        %v1512 = vunpack.c.l.s8.bf16 %v702
        %v1513 = vunpack.c.l.s8.bf16 %v703
        %v1514 = vunpack.c.h.s8.bf16 %v702
        %v1515 = vunpack.c.h.s8.bf16 %v703
        %v1516 = vunpack.c.l.s8.bf16 %v704
        %v1517 = vunpack.c.l.s8.bf16 %v705
        %v1518 = vunpack.c.h.s8.bf16 %v704
        %v1519 = vunpack.c.h.s8.bf16 %v705
        %v1520 = vunpack.c.l.s8.bf16 %v706
        %v1521 = vunpack.c.l.s8.bf16 %v707
        %v1522 = vunpack.c.h.s8.bf16 %v706
        %v1523 = vunpack.c.h.s8.bf16 %v707
        %v1524 = vunpack.c.l.s8.bf16 %v708
        %v1525 = vunpack.c.l.s8.bf16 %v709
        %v1526 = vunpack.c.h.s8.bf16 %v708
        %v1527 = vunpack.c.h.s8.bf16 %v709
        %v1528 = vunpack.c.l.s8.bf16 %v710
        %v1529 = vunpack.c.l.s8.bf16 %v711
        %v1530 = vunpack.c.h.s8.bf16 %v710
        %v1531 = vunpack.c.h.s8.bf16 %v711
        %v1532 = vunpack.c.l.s8.bf16 %v712
        %v1533 = vunpack.c.l.s8.bf16 %v713
        %v1534 = vunpack.c.h.s8.bf16 %v712
        %v1535 = vunpack.c.h.s8.bf16 %v713
        %v1536 = vunpack.c.l.s8.bf16 %v714
        %v1537 = vunpack.c.l.s8.bf16 %v715
        %v1538 = vunpack.c.h.s8.bf16 %v714
        %v1539 = vunpack.c.h.s8.bf16 %v715
        %v1540 = vunpack.c.l.s8.bf16 %v716
        %v1541 = vunpack.c.l.s8.bf16 %v717
        %v1542 = vunpack.c.h.s8.bf16 %v716
        %v1543 = vunpack.c.h.s8.bf16 %v717
        %v1544 = vunpack.c.l.s8.bf16 %v718
        %v1545 = vunpack.c.l.s8.bf16 %v719
        %v1546 = vunpack.c.h.s8.bf16 %v718
        %v1547 = vunpack.c.h.s8.bf16 %v719
        %v1548 = vunpack.c.l.s8.bf16 %v720
        %v1549 = vunpack.c.l.s8.bf16 %v721
        %v1550 = vunpack.c.h.s8.bf16 %v720
        %v1551 = vunpack.c.h.s8.bf16 %v721
        %v1552 = vunpack.c.l.s8.bf16 %v722
        %v1553 = vunpack.c.l.s8.bf16 %v723
        %v1554 = vunpack.c.h.s8.bf16 %v722
        %v1555 = vunpack.c.h.s8.bf16 %v723
        %v1556 = vunpack.c.l.s8.bf16 %v724
        %v1557 = vunpack.c.l.s8.bf16 %v725
        %v1558 = vunpack.c.h.s8.bf16 %v724
        %v1559 = vunpack.c.h.s8.bf16 %v725
        %v1560 = vunpack.c.l.s8.bf16 %v726
        %v1561 = vunpack.c.l.s8.bf16 %v727
        %v1562 = vunpack.c.h.s8.bf16 %v726
        %v1563 = vunpack.c.h.s8.bf16 %v727
        %v1564 = vunpack.c.l.s8.bf16 %v728
        %v1565 = vunpack.c.l.s8.bf16 %v729
        %v1566 = vunpack.c.h.s8.bf16 %v728
        %v1567 = vunpack.c.h.s8.bf16 %v729
        %v1568 = vunpack.c.l.s8.bf16 %v730
        %v1569 = vunpack.c.l.s8.bf16 %v731
        %v1570 = vunpack.c.h.s8.bf16 %v730
        %v1571 = vunpack.c.h.s8.bf16 %v731
        %v1572 = vunpack.c.l.s8.bf16 %v732
        %v1573 = vunpack.c.l.s8.bf16 %v733
        %v1574 = vunpack.c.h.s8.bf16 %v732
        %v1575 = vunpack.c.h.s8.bf16 %v733
        %v1576 = vunpack.c.l.s8.bf16 %v734
        %v1577 = vunpack.c.l.s8.bf16 %v735
        %v1578 = vunpack.c.h.s8.bf16 %v734
        %v1579 = vunpack.c.h.s8.bf16 %v735
        %v1580 = vunpack.c.l.s8.bf16 %v736
        %v1581 = vunpack.c.l.s8.bf16 %v737
        %v1582 = vunpack.c.h.s8.bf16 %v736
        %v1583 = vunpack.c.h.s8.bf16 %v737
        %v1584 = vunpack.c.l.s8.bf16 %v738
        %v1585 = vunpack.c.l.s8.bf16 %v739
        %v1586 = vunpack.c.h.s8.bf16 %v738
        %v1587 = vunpack.c.h.s8.bf16 %v739
        %v1588 = vunpack.c.l.s8.bf16 %v740
        %v1589 = vunpack.c.l.s8.bf16 %v741
        %v1590 = vunpack.c.h.s8.bf16 %v740
        %v1591 = vunpack.c.h.s8.bf16 %v741
        %v1592 = vunpack.c.l.s8.bf16 %v742
        %v1593 = vunpack.c.l.s8.bf16 %v743
        %v1594 = vunpack.c.h.s8.bf16 %v742
        %v1595 = vunpack.c.h.s8.bf16 %v743
        %v1596 = vunpack.c.l.s8.bf16 %v744
        %v1597 = vunpack.c.l.s8.bf16 %v745
        %v1598 = vunpack.c.h.s8.bf16 %v744
        %v1599 = vunpack.c.h.s8.bf16 %v745
        %v1600 = vunpack.c.l.s8.bf16 %v746
        %v1601 = vunpack.c.l.s8.bf16 %v747
        %v1602 = vunpack.c.h.s8.bf16 %v746
        %v1603 = vunpack.c.h.s8.bf16 %v747
        %v1604 = vunpack.c.l.s8.bf16 %v748
        %v1605 = vunpack.c.l.s8.bf16 %v749
        %v1606 = vunpack.c.h.s8.bf16 %v748
        %v1607 = vunpack.c.h.s8.bf16 %v749
        %v1608 = vunpack.c.l.s8.bf16 %v750
        %v1609 = vunpack.c.l.s8.bf16 %v751
        %v1610 = vunpack.c.h.s8.bf16 %v750
        %v1611 = vunpack.c.h.s8.bf16 %v751
        %v1612 = vunpack.c.l.s8.bf16 %v752
        %v1613 = vunpack.c.l.s8.bf16 %v753
        %v1614 = vunpack.c.h.s8.bf16 %v752
        %v1615 = vunpack.c.h.s8.bf16 %v753
        %v1616 = vunpack.c.l.s8.bf16 %v754
        %v1617 = vunpack.c.l.s8.bf16 %v755
        %v1618 = vunpack.c.h.s8.bf16 %v754
        %v1619 = vunpack.c.h.s8.bf16 %v755
        %v1620 = vunpack.c.l.s8.bf16 %v756
        %v1621 = vunpack.c.l.s8.bf16 %v757
        %v1622 = vunpack.c.h.s8.bf16 %v756
        %v1623 = vunpack.c.h.s8.bf16 %v757
        %v1624 = vunpack.c.l.s8.bf16 %v758
        %v1625 = vunpack.c.l.s8.bf16 %v759
        %v1626 = vunpack.c.h.s8.bf16 %v758
        %v1627 = vunpack.c.h.s8.bf16 %v759
        %v1628 = vunpack.c.l.s8.bf16 %v760
        %v1629 = vunpack.c.l.s8.bf16 %v761
        %v1630 = vunpack.c.h.s8.bf16 %v760
        %v1631 = vunpack.c.h.s8.bf16 %v761
        %v1632 = vunpack.c.l.s8.bf16 %v762
        %v1633 = vunpack.c.l.s8.bf16 %v763
        %v1634 = vunpack.c.h.s8.bf16 %v762
        %v1635 = vunpack.c.h.s8.bf16 %v763
        %v1636 = vunpack.c.l.s8.bf16 %v764
        %v1637 = vunpack.c.l.s8.bf16 %v765
        %v1638 = vunpack.c.h.s8.bf16 %v764
        %v1639 = vunpack.c.h.s8.bf16 %v765
        %v1640 = vunpack.c.l.s8.bf16 %v766
        %v1641 = vunpack.c.l.s8.bf16 %v767
        %v1642 = vunpack.c.h.s8.bf16 %v766
        %v1643 = vunpack.c.h.s8.bf16 %v767
        %v1644 = vunpack.c.l.s8.bf16 %v768
        %v1645 = vunpack.c.l.s8.bf16 %v769
        %v1646 = vunpack.c.h.s8.bf16 %v768
        %v1647 = vunpack.c.h.s8.bf16 %v769
        %v1648 = vunpack.c.l.s8.bf16 %v770
        %v1649 = vunpack.c.l.s8.bf16 %v771
        %v1650 = vunpack.c.h.s8.bf16 %v770
        %v1651 = vunpack.c.h.s8.bf16 %v771
        %v1652 = vunpack.c.l.s8.bf16 %v772
        %v1653 = vunpack.c.l.s8.bf16 %v773
        %v1654 = vunpack.c.h.s8.bf16 %v772
        %v1655 = vunpack.c.h.s8.bf16 %v773
        %v1656 = vunpack.c.l.s8.bf16 %v774
        %v1657 = vunpack.c.l.s8.bf16 %v775
        %v1658 = vunpack.c.h.s8.bf16 %v774
        %v1659 = vunpack.c.h.s8.bf16 %v775
        %v1660 = vunpack.c.l.s8.bf16 %v776
        %v1661 = vunpack.c.l.s8.bf16 %v777
        %v1662 = vunpack.c.h.s8.bf16 %v776
        %v1663 = vunpack.c.h.s8.bf16 %v777
        %v1664 = vunpack.c.l.s8.bf16 %v778
        %v1665 = vunpack.c.l.s8.bf16 %v779
        %v1666 = vunpack.c.h.s8.bf16 %v778
        %v1667 = vunpack.c.h.s8.bf16 %v779
        %v1668 = vunpack.c.l.s8.bf16 %v780
        %v1669 = vunpack.c.l.s8.bf16 %v781
        %v1670 = vunpack.c.h.s8.bf16 %v780
        %v1671 = vunpack.c.h.s8.bf16 %v781
        %v1672 = vunpack.c.l.s8.bf16 %v782
        %v1673 = vunpack.c.l.s8.bf16 %v783
        %v1674 = vunpack.c.h.s8.bf16 %v782
        %v1675 = vunpack.c.h.s8.bf16 %v783
        %v1676 = vunpack.c.l.s8.bf16 %v784
        %v1677 = vunpack.c.l.s8.bf16 %v785
        %v1678 = vunpack.c.h.s8.bf16 %v784
        %v1679 = vunpack.c.h.s8.bf16 %v785
        %v1680 = vunpack.c.l.s8.bf16 %v786
        %v1681 = vunpack.c.l.s8.bf16 %v787
        %v1682 = vunpack.c.h.s8.bf16 %v786
        %v1683 = vunpack.c.h.s8.bf16 %v787
        %v1684 = vunpack.c.l.s8.bf16 %v788
        %v1685 = vunpack.c.l.s8.bf16 %v789
        %v1686 = vunpack.c.h.s8.bf16 %v788
        %v1687 = vunpack.c.h.s8.bf16 %v789
        %v1688 = vunpack.c.l.s8.bf16 %v790
        %v1689 = vunpack.c.l.s8.bf16 %v791
        %v1690 = vunpack.c.h.s8.bf16 %v790
        %v1691 = vunpack.c.h.s8.bf16 %v791
        %v1692 = vunpack.c.l.s8.bf16 %v792
        %v1693 = vunpack.c.l.s8.bf16 %v793
        %v1694 = vunpack.c.h.s8.bf16 %v792
        %v1695 = vunpack.c.h.s8.bf16 %v793
        %v1696 = vunpack.c.l.s8.bf16 %v794
        %v1697 = vunpack.c.l.s8.bf16 %v795
        %v1698 = vunpack.c.h.s8.bf16 %v794
        %v1699 = vunpack.c.h.s8.bf16 %v795
        %v1700 = vunpack.c.l.s8.bf16 %v796
        %v1701 = vunpack.c.l.s8.bf16 %v797
        %v1702 = vunpack.c.h.s8.bf16 %v796
        %v1703 = vunpack.c.h.s8.bf16 %v797
        %v1704 = vunpack.c.l.s8.bf16 %v798
        %v1705 = vunpack.c.l.s8.bf16 %v799
        %v1706 = vunpack.c.h.s8.bf16 %v798
        %v1707 = vunpack.c.h.s8.bf16 %v799
        %v1708 = vunpack.c.l.s8.bf16 %v800
        %v1709 = vunpack.c.l.s8.bf16 %v801
        %v1710 = vunpack.c.h.s8.bf16 %v800
        %v1711 = vunpack.c.h.s8.bf16 %v801
        %v1712 = vunpack.c.l.s8.bf16 %v802
        %v1713 = vunpack.c.l.s8.bf16 %v803
        %v1714 = vunpack.c.h.s8.bf16 %v802
        %v1715 = vunpack.c.h.s8.bf16 %v803
        %v1716 = vunpack.c.l.s8.bf16 %v804
        %v1717 = vunpack.c.l.s8.bf16 %v805
        %v1718 = vunpack.c.h.s8.bf16 %v804
        %v1719 = vunpack.c.h.s8.bf16 %v805
        %v1720 = vunpack.c.l.s8.bf16 %v806
        %v1721 = vunpack.c.l.s8.bf16 %v807
        %v1722 = vunpack.c.h.s8.bf16 %v806
        %v1723 = vunpack.c.h.s8.bf16 %v807
        %v1724 = vunpack.c.l.s8.bf16 %v808
        %v1725 = vunpack.c.l.s8.bf16 %v809
        %v1726 = vunpack.c.h.s8.bf16 %v808
        %v1727 = vunpack.c.h.s8.bf16 %v809
        %v1728 = vunpack.c.l.s8.bf16 %v810
        %v1729 = vunpack.c.l.s8.bf16 %v811
        %v1730 = vunpack.c.h.s8.bf16 %v810
        %v1731 = vunpack.c.h.s8.bf16 %v811
        %v1732 = vunpack.c.l.s8.bf16 %v812
        %v1733 = vunpack.c.l.s8.bf16 %v813
        %v1734 = vunpack.c.h.s8.bf16 %v812
        %v1735 = vunpack.c.h.s8.bf16 %v813
        %v1736 = vunpack.c.l.s8.bf16 %v814
        %v1737 = vunpack.c.l.s8.bf16 %v815
        %v1738 = vunpack.c.h.s8.bf16 %v814
        %v1739 = vunpack.c.h.s8.bf16 %v815
        %v1740 = vunpack.c.l.s8.bf16 %v816
        %v1741 = vunpack.c.l.s8.bf16 %v817
        %v1742 = vunpack.c.h.s8.bf16 %v816
        %v1743 = vunpack.c.h.s8.bf16 %v817
        %v1744 = vunpack.c.l.s8.bf16 %v818
        %v1745 = vunpack.c.l.s8.bf16 %v819
        %v1746 = vunpack.c.h.s8.bf16 %v818
        %v1747 = vunpack.c.h.s8.bf16 %v819
        %v1748 = vunpack.c.l.s8.bf16 %v820
        %v1749 = vunpack.c.l.s8.bf16 %v821
        %v1750 = vunpack.c.h.s8.bf16 %v820
        %v1751 = vunpack.c.h.s8.bf16 %v821
        %v1752 = vunpack.c.l.s8.bf16 %v822
        %v1753 = vunpack.c.l.s8.bf16 %v823
        %v1754 = vunpack.c.h.s8.bf16 %v822
        %v1755 = vunpack.c.h.s8.bf16 %v823
        %v1756 = vunpack.c.l.s8.bf16 %v824
        %v1757 = vunpack.c.l.s8.bf16 %v825
        %v1758 = vunpack.c.h.s8.bf16 %v824
        %v1759 = vunpack.c.h.s8.bf16 %v825
        %v1760 = vunpack.c.l.s8.bf16 %v826
        %v1761 = vunpack.c.l.s8.bf16 %v827
        %v1762 = vunpack.c.h.s8.bf16 %v826
        %v1763 = vunpack.c.h.s8.bf16 %v827
        %v1764 = vunpack.c.l.s8.bf16 %v828
        %v1765 = vunpack.c.l.s8.bf16 %v829
        %v1766 = vunpack.c.h.s8.bf16 %v828
        %v1767 = vunpack.c.h.s8.bf16 %v829
        %v1768 = vunpack.c.l.s8.bf16 %v830
        %v1769 = vunpack.c.l.s8.bf16 %v831
        %v1770 = vunpack.c.h.s8.bf16 %v830
        %v1771 = vunpack.c.h.s8.bf16 %v831
        %v1772 = vunpack.c.l.s8.bf16 %v832
        %v1773 = vunpack.c.l.s8.bf16 %v833
        %v1774 = vunpack.c.h.s8.bf16 %v832
        %v1775 = vunpack.c.h.s8.bf16 %v833
        %v1776 = vunpack.c.l.s8.bf16 %v834
        %v1777 = vunpack.c.l.s8.bf16 %v835
        %v1778 = vunpack.c.h.s8.bf16 %v834
        %v1779 = vunpack.c.h.s8.bf16 %v835
        %v1780 = vunpack.c.l.s8.bf16 %v836
        %v1781 = vunpack.c.l.s8.bf16 %v837
        %v1782 = vunpack.c.h.s8.bf16 %v836
        %v1783 = vunpack.c.h.s8.bf16 %v837
        %v1784 = vunpack.c.l.s8.bf16 %v838
        %v1785 = vunpack.c.l.s8.bf16 %v839
        %v1786 = vunpack.c.h.s8.bf16 %v838
        %v1787 = vunpack.c.h.s8.bf16 %v839
        %v1788 = vunpack.c.l.s8.bf16 %v840
        %v1789 = vunpack.c.l.s8.bf16 %v841
        %v1790 = vunpack.c.h.s8.bf16 %v840
        %v1791 = vunpack.c.h.s8.bf16 %v841
        %v1792 = vunpack.c.l.s8.bf16 %v842
        %v1793 = vunpack.c.l.s8.bf16 %v843
        %v1794 = vunpack.c.h.s8.bf16 %v842
        %v1795 = vunpack.c.h.s8.bf16 %v843
        %v1796 = vunpack.c.l.s8.bf16 %v844
        %v1797 = vunpack.c.l.s8.bf16 %v845
        %v1798 = vunpack.c.h.s8.bf16 %v844
        %v1799 = vunpack.c.h.s8.bf16 %v845
        %v1800 = vunpack.c.l.s8.bf16 %v846
        %v1801 = vunpack.c.l.s8.bf16 %v847
        %v1802 = vunpack.c.h.s8.bf16 %v846
        %v1803 = vunpack.c.h.s8.bf16 %v847
        %v1804 = vunpack.c.l.s8.bf16 %v848
        %v1805 = vunpack.c.l.s8.bf16 %v849
        %v1806 = vunpack.c.h.s8.bf16 %v848
        %v1807 = vunpack.c.h.s8.bf16 %v849
        %v1808 = vunpack.c.l.s8.bf16 %v850
        %v1809 = vunpack.c.l.s8.bf16 %v851
        %v1810 = vunpack.c.h.s8.bf16 %v850
        %v1811 = vunpack.c.h.s8.bf16 %v851
        %v1812 = vunpack.c.l.s8.bf16 %v852
        %v1813 = vunpack.c.l.s8.bf16 %v853
        %v1814 = vunpack.c.h.s8.bf16 %v852
        %v1815 = vunpack.c.h.s8.bf16 %v853
        %v1816 = vunpack.c.l.s8.bf16 %v854
        %v1817 = vunpack.c.l.s8.bf16 %v855
        %v1818 = vunpack.c.h.s8.bf16 %v854
        %v1819 = vunpack.c.h.s8.bf16 %v855
        %v1820 = vunpack.c.l.s8.bf16 %v856
        %v1821 = vunpack.c.l.s8.bf16 %v857
        %v1822 = vunpack.c.h.s8.bf16 %v856
        %v1823 = vunpack.c.h.s8.bf16 %v857
        %v1824 = vunpack.c.l.s8.bf16 %v858
        %v1825 = vunpack.c.l.s8.bf16 %v859
        %v1826 = vunpack.c.h.s8.bf16 %v858
        %v1827 = vunpack.c.h.s8.bf16 %v859
        %v1828 = vunpack.c.l.s8.bf16 %v860
        %v1829 = vunpack.c.l.s8.bf16 %v861
        %v1830 = vunpack.c.h.s8.bf16 %v860
        %v1831 = vunpack.c.h.s8.bf16 %v861
        %v1832 = vunpack.c.l.s8.bf16 %v862
        %v1833 = vunpack.c.l.s8.bf16 %v863
        %v1834 = vunpack.c.h.s8.bf16 %v862
        %v1835 = vunpack.c.h.s8.bf16 %v863
        %v1836 = vunpack.c.l.s8.bf16 %v864
        %v1837 = vunpack.c.l.s8.bf16 %v865
        %v1838 = vunpack.c.h.s8.bf16 %v864
        %v1839 = vunpack.c.h.s8.bf16 %v865
        %v1840 = vunpack.c.l.s8.bf16 %v866
        %v1841 = vunpack.c.l.s8.bf16 %v867
        %v1842 = vunpack.c.h.s8.bf16 %v866
        %v1843 = vunpack.c.h.s8.bf16 %v867
        %v1844 = vunpack.c.l.s8.bf16 %v868
        %v1845 = vunpack.c.l.s8.bf16 %v869
        %v1846 = vunpack.c.h.s8.bf16 %v868
        %v1847 = vunpack.c.h.s8.bf16 %v869
        %v1848 = vunpack.c.l.s8.bf16 %v870
        %v1849 = vunpack.c.l.s8.bf16 %v871
        %v1850 = vunpack.c.h.s8.bf16 %v870
        %v1851 = vunpack.c.h.s8.bf16 %v871
        %v1852 = vunpack.c.l.s8.bf16 %v872
        %v1853 = vunpack.c.l.s8.bf16 %v873
        %v1854 = vunpack.c.h.s8.bf16 %v872
        %v1855 = vunpack.c.h.s8.bf16 %v873
        %v1856 = vunpack.c.l.s8.bf16 %v874
        %v1857 = vunpack.c.l.s8.bf16 %v875
        %v1858 = vunpack.c.h.s8.bf16 %v874
        %v1859 = vunpack.c.h.s8.bf16 %v875
        %v1860 = vunpack.c.l.s8.bf16 %v876
        %v1861 = vunpack.c.l.s8.bf16 %v877
        %v1862 = vunpack.c.h.s8.bf16 %v876
        %v1863 = vunpack.c.h.s8.bf16 %v877
        %v1864 = vunpack.c.l.s8.bf16 %v878
        %v1865 = vunpack.c.l.s8.bf16 %v879
        %v1866 = vunpack.c.h.s8.bf16 %v878
        %v1867 = vunpack.c.h.s8.bf16 %v879
        %v1868 = vunpack.c.l.s8.bf16 %v880
        %v1869 = vunpack.c.l.s8.bf16 %v881
        %v1870 = vunpack.c.h.s8.bf16 %v880
        %v1871 = vunpack.c.h.s8.bf16 %v881
        %v1872 = vunpack.c.l.s8.bf16 %v882
        %v1873 = vunpack.c.l.s8.bf16 %v883
        %v1874 = vunpack.c.h.s8.bf16 %v882
        %v1875 = vunpack.c.h.s8.bf16 %v883
        %v1876 = vunpack.c.l.s8.bf16 %v884
        %v1877 = vunpack.c.l.s8.bf16 %v885
        %v1878 = vunpack.c.h.s8.bf16 %v884
        %v1879 = vunpack.c.h.s8.bf16 %v885
        %v1880 = vunpack.c.l.s8.bf16 %v886
        %v1881 = vunpack.c.l.s8.bf16 %v887
        %v1882 = vunpack.c.h.s8.bf16 %v886
        %v1883 = vunpack.c.h.s8.bf16 %v887
        %v1884 = vunpack.c.l.s8.bf16 %v888
        %v1885 = vunpack.c.l.s8.bf16 %v889
        %v1886 = vunpack.c.h.s8.bf16 %v888
        %v1887 = vunpack.c.h.s8.bf16 %v889
        %v1888 = vunpack.c.l.s8.bf16 %v890
        %v1889 = vunpack.c.l.s8.bf16 %v891
        %v1890 = vunpack.c.h.s8.bf16 %v890
        %v1891 = vunpack.c.h.s8.bf16 %v891
        %v1892 = vunpack.c.l.s8.bf16 %v892
        %v1893 = vunpack.c.l.s8.bf16 %v893
        %v1894 = vunpack.c.h.s8.bf16 %v892
        %v1895 = vunpack.c.h.s8.bf16 %v893
        %v1896 = vunpack.c.l.s8.bf16 %v894
        %v1897 = vunpack.c.l.s8.bf16 %v895
        %v1898 = vunpack.c.h.s8.bf16 %v894
        %v1899 = vunpack.c.h.s8.bf16 %v895
        %v1900 = vunpack.c.l.s8.bf16 %v896
        %v1901 = vunpack.c.l.s8.bf16 %v897
        %v1902 = vunpack.c.h.s8.bf16 %v896
        %v1903 = vunpack.c.h.s8.bf16 %v897
        %v1904 = vunpack.c.l.s8.bf16 %v898
        %v1905 = vunpack.c.l.s8.bf16 %v899
        %v1906 = vunpack.c.h.s8.bf16 %v898
        %v1907 = vunpack.c.h.s8.bf16 %v899
        %v1908 = vunpack.c.l.s8.bf16 %v900
        %v1909 = vunpack.c.l.s8.bf16 %v901
        %v1910 = vunpack.c.h.s8.bf16 %v900
        %v1911 = vunpack.c.h.s8.bf16 %v901
        %v1912 = vunpack.c.l.s8.bf16 %v902
        %v1913 = vunpack.c.l.s8.bf16 %v903
        %v1914 = vunpack.c.h.s8.bf16 %v902
        %v1915 = vunpack.c.h.s8.bf16 %v903
        %v1916 = vunpack.c.l.s8.bf16 %v904
        %v1917 = vunpack.c.l.s8.bf16 %v905
        %v1918 = vunpack.c.h.s8.bf16 %v904
        %v1919 = vunpack.c.h.s8.bf16 %v905
        %v1920 = vunpack.c.l.s8.bf16 %v906
        %v1921 = vunpack.c.l.s8.bf16 %v907
        %v1922 = vunpack.c.h.s8.bf16 %v906
        %v1923 = vunpack.c.h.s8.bf16 %v907
        %v1924 = vunpack.c.l.s8.bf16 %v908
        %v1925 = vunpack.c.l.s8.bf16 %v909
        %v1926 = vunpack.c.h.s8.bf16 %v908
        %v1927 = vunpack.c.h.s8.bf16 %v909
        %v1928 = vunpack.c.l.s8.bf16 %v910
        %v1929 = vunpack.c.l.s8.bf16 %v911
        %v1930 = vunpack.c.h.s8.bf16 %v910
        %v1931 = vunpack.c.h.s8.bf16 %v911
        %v1932 = vunpack.c.l.s8.bf16 %v912
        %v1933 = vunpack.c.l.s8.bf16 %v913
        %v1934 = vunpack.c.h.s8.bf16 %v912
        %v1935 = vunpack.c.h.s8.bf16 %v913
        %v1936 = vunpack.c.l.s8.bf16 %v914
        %v1937 = vunpack.c.l.s8.bf16 %v915
        %v1938 = vunpack.c.h.s8.bf16 %v914
        %v1939 = vunpack.c.h.s8.bf16 %v915
        %v1940 = vld [vmem:[#allocation2] sm:$0xf]
        %v1941 = vld [vmem:[%s396] sm:$0xff]
        %v1942 = vld [vmem:[%s396 + $0x8] sm:$0xff]
        %v1943 = vld [vmem:[%s396 + $0x10] sm:$0xff]
        %v1944 = vld [vmem:[%s396 + $0x18] sm:$0xff]
        %v1945 = vld [vmem:[%s396 + $0x20] sm:$0xff]
        %v1946 = vld [vmem:[%s396 + $0x28] sm:$0xff]
        %v1947 = vld [vmem:[%s396 + $0x30] sm:$0xff]
        %v1948 = vld [vmem:[%s396 + $0x38] sm:$0xff]
        %v1957 = vcombine.high %v1941, %v1941
        %v1959 = vunpack.c.l.s4 1966171168
        %v1960 = vunpack.c.0.s8 %v1959
        %v1961 = vlaneseq
        %v1962 = vshrl.u32 %v1961, 7
        %v1963 = vsub.s32 %v1960, %v1962
        %v1964 = vrot.slane %v1941, %v1963
        %v1966 = vunpack.c.l.s4 1966171168
        %v1967 = vunpack.c.0.s8 %v1966
        %v1968 = vlaneseq
        %v1969 = vshrl.u32 %v1968, 7
        %v1970 = vsub.s32 %v1967, %v1969
        %v1971 = vrot.slane %v1957, %v1970
        %v1972 = vcombine.high %v1964, %v1964
        %v1973 = vcombine.high %v1971, %v1971
        %v1975 = vunpack.c.l.s4 1966171168
        %v1976 = vunpack.c.0.s8 %v1975
        %v1977 = vlaneseq
        %v1978 = vshrl.u32 %v1977, 7
        %v1979 = vsub.s32 %v1976, %v1978
        %v1980 = vrot.slane %v1964, %v1979
        %v1982 = vunpack.c.l.s4 1966171168
        %v1983 = vunpack.c.0.s8 %v1982
        %v1984 = vlaneseq
        %v1985 = vshrl.u32 %v1984, 7
        %v1986 = vsub.s32 %v1983, %v1985
        %v1987 = vrot.slane %v1971, %v1986
        %v1989 = vunpack.c.l.s4 1966171168
        %v1990 = vunpack.c.0.s8 %v1989
        %v1991 = vlaneseq
        %v1992 = vshrl.u32 %v1991, 7
        %v1993 = vsub.s32 %v1990, %v1992
        %v1994 = vrot.slane %v1972, %v1993
        %v1996 = vunpack.c.l.s4 1966171168
        %v1997 = vunpack.c.0.s8 %v1996
        %v1998 = vlaneseq
        %v1999 = vshrl.u32 %v1998, 7
        %v2000 = vsub.s32 %v1997, %v1999
        %v2001 = vrot.slane %v1973, %v2000
        %v2002 = vcombine.high %v1980, %v1980
        %v2003 = vcombine.high %v1987, %v1987
        %v2004 = vcombine.high %v1994, %v1994
        %v2005 = vcombine.high %v2001, %v2001
        %v2006 = vcombine.high %v1942, %v1942
        %v2008 = vunpack.c.l.s4 1966171168
        %v2009 = vunpack.c.0.s8 %v2008
        %v2010 = vlaneseq
        %v2011 = vshrl.u32 %v2010, 7
        %v2012 = vsub.s32 %v2009, %v2011
        %v2013 = vrot.slane %v1942, %v2012
        %v2015 = vunpack.c.l.s4 1966171168
        %v2016 = vunpack.c.0.s8 %v2015
        %v2017 = vlaneseq
        %v2018 = vshrl.u32 %v2017, 7
        %v2019 = vsub.s32 %v2016, %v2018
        %v2020 = vrot.slane %v2006, %v2019
        %v2021 = vcombine.high %v2013, %v2013
        %v2022 = vcombine.high %v2020, %v2020
        %v2024 = vunpack.c.l.s4 1966171168
        %v2025 = vunpack.c.0.s8 %v2024
        %v2026 = vlaneseq
        %v2027 = vshrl.u32 %v2026, 7
        %v2028 = vsub.s32 %v2025, %v2027
        %v2029 = vrot.slane %v2013, %v2028
        %v2031 = vunpack.c.l.s4 1966171168
        %v2032 = vunpack.c.0.s8 %v2031
        %v2033 = vlaneseq
        %v2034 = vshrl.u32 %v2033, 7
        %v2035 = vsub.s32 %v2032, %v2034
        %v2036 = vrot.slane %v2020, %v2035
        %v2038 = vunpack.c.l.s4 1966171168
        %v2039 = vunpack.c.0.s8 %v2038
        %v2040 = vlaneseq
        %v2041 = vshrl.u32 %v2040, 7
        %v2042 = vsub.s32 %v2039, %v2041
        %v2043 = vrot.slane %v2021, %v2042
        %v2045 = vunpack.c.l.s4 1966171168
        %v2046 = vunpack.c.0.s8 %v2045
        %v2047 = vlaneseq
        %v2048 = vshrl.u32 %v2047, 7
        %v2049 = vsub.s32 %v2046, %v2048
        %v2050 = vrot.slane %v2022, %v2049
        %v2051 = vcombine.high %v2029, %v2029
        %v2052 = vcombine.high %v2036, %v2036
        %v2053 = vcombine.high %v2043, %v2043
        %v2054 = vcombine.high %v2050, %v2050
        %v2055 = vcombine.high %v1943, %v1943
        %v2057 = vunpack.c.l.s4 1966171168
        %v2058 = vunpack.c.0.s8 %v2057
        %v2059 = vlaneseq
        %v2060 = vshrl.u32 %v2059, 7
        %v2061 = vsub.s32 %v2058, %v2060
        %v2062 = vrot.slane %v1943, %v2061
        %v2064 = vunpack.c.l.s4 1966171168
        %v2065 = vunpack.c.0.s8 %v2064
        %v2066 = vlaneseq
        %v2067 = vshrl.u32 %v2066, 7
        %v2068 = vsub.s32 %v2065, %v2067
        %v2069 = vrot.slane %v2055, %v2068
        %v2070 = vcombine.high %v2062, %v2062
        %v2071 = vcombine.high %v2069, %v2069
        %v2073 = vunpack.c.l.s4 1966171168
        %v2074 = vunpack.c.0.s8 %v2073
        %v2075 = vlaneseq
        %v2076 = vshrl.u32 %v2075, 7
        %v2077 = vsub.s32 %v2074, %v2076
        %v2078 = vrot.slane %v2062, %v2077
        %v2080 = vunpack.c.l.s4 1966171168
        %v2081 = vunpack.c.0.s8 %v2080
        %v2082 = vlaneseq
        %v2083 = vshrl.u32 %v2082, 7
        %v2084 = vsub.s32 %v2081, %v2083
        %v2085 = vrot.slane %v2069, %v2084
        %v2087 = vunpack.c.l.s4 1966171168
        %v2088 = vunpack.c.0.s8 %v2087
        %v2089 = vlaneseq
        %v2090 = vshrl.u32 %v2089, 7
        %v2091 = vsub.s32 %v2088, %v2090
        %v2092 = vrot.slane %v2070, %v2091
        %v2094 = vunpack.c.l.s4 1966171168
        %v2095 = vunpack.c.0.s8 %v2094
        %v2096 = vlaneseq
        %v2097 = vshrl.u32 %v2096, 7
        %v2098 = vsub.s32 %v2095, %v2097
        %v2099 = vrot.slane %v2071, %v2098
        %v2100 = vcombine.high %v2078, %v2078
        %v2101 = vcombine.high %v2085, %v2085
        %v2102 = vcombine.high %v2092, %v2092
        %v2103 = vcombine.high %v2099, %v2099
        %v2104 = vcombine.high %v1944, %v1944
        %v2106 = vunpack.c.l.s4 1966171168
        %v2107 = vunpack.c.0.s8 %v2106
        %v2108 = vlaneseq
        %v2109 = vshrl.u32 %v2108, 7
        %v2110 = vsub.s32 %v2107, %v2109
        %v2111 = vrot.slane %v1944, %v2110
        %v2113 = vunpack.c.l.s4 1966171168
        %v2114 = vunpack.c.0.s8 %v2113
        %v2115 = vlaneseq
        %v2116 = vshrl.u32 %v2115, 7
        %v2117 = vsub.s32 %v2114, %v2116
        %v2118 = vrot.slane %v2104, %v2117
        %v2119 = vcombine.high %v2111, %v2111
        %v2120 = vcombine.high %v2118, %v2118
        %v2122 = vunpack.c.l.s4 1966171168
        %v2123 = vunpack.c.0.s8 %v2122
        %v2124 = vlaneseq
        %v2125 = vshrl.u32 %v2124, 7
        %v2126 = vsub.s32 %v2123, %v2125
        %v2127 = vrot.slane %v2111, %v2126
        %v2129 = vunpack.c.l.s4 1966171168
        %v2130 = vunpack.c.0.s8 %v2129
        %v2131 = vlaneseq
        %v2132 = vshrl.u32 %v2131, 7
        %v2133 = vsub.s32 %v2130, %v2132
        %v2134 = vrot.slane %v2118, %v2133
        %v2136 = vunpack.c.l.s4 1966171168
        %v2137 = vunpack.c.0.s8 %v2136
        %v2138 = vlaneseq
        %v2139 = vshrl.u32 %v2138, 7
        %v2140 = vsub.s32 %v2137, %v2139
        %v2141 = vrot.slane %v2119, %v2140
        %v2143 = vunpack.c.l.s4 1966171168
        %v2144 = vunpack.c.0.s8 %v2143
        %v2145 = vlaneseq
        %v2146 = vshrl.u32 %v2145, 7
        %v2147 = vsub.s32 %v2144, %v2146
        %v2148 = vrot.slane %v2120, %v2147
        %v2149 = vcombine.high %v2127, %v2127
        %v2150 = vcombine.high %v2134, %v2134
        %v2151 = vcombine.high %v2141, %v2141
        %v2152 = vcombine.high %v2148, %v2148
        %v2153 = vcombine.high %v1945, %v1945
        %v2155 = vunpack.c.l.s4 1966171168
        %v2156 = vunpack.c.0.s8 %v2155
        %v2157 = vlaneseq
        %v2158 = vshrl.u32 %v2157, 7
        %v2159 = vsub.s32 %v2156, %v2158
        %v2160 = vrot.slane %v1945, %v2159
        %v2162 = vunpack.c.l.s4 1966171168
        %v2163 = vunpack.c.0.s8 %v2162
        %v2164 = vlaneseq
        %v2165 = vshrl.u32 %v2164, 7
        %v2166 = vsub.s32 %v2163, %v2165
        %v2167 = vrot.slane %v2153, %v2166
        %v2168 = vcombine.high %v2160, %v2160
        %v2169 = vcombine.high %v2167, %v2167
        %v2171 = vunpack.c.l.s4 1966171168
        %v2172 = vunpack.c.0.s8 %v2171
        %v2173 = vlaneseq
        %v2174 = vshrl.u32 %v2173, 7
        %v2175 = vsub.s32 %v2172, %v2174
        %v2176 = vrot.slane %v2160, %v2175
        %v2178 = vunpack.c.l.s4 1966171168
        %v2179 = vunpack.c.0.s8 %v2178
        %v2180 = vlaneseq
        %v2181 = vshrl.u32 %v2180, 7
        %v2182 = vsub.s32 %v2179, %v2181
        %v2183 = vrot.slane %v2167, %v2182
        %v2185 = vunpack.c.l.s4 1966171168
        %v2186 = vunpack.c.0.s8 %v2185
        %v2187 = vlaneseq
        %v2188 = vshrl.u32 %v2187, 7
        %v2189 = vsub.s32 %v2186, %v2188
        %v2190 = vrot.slane %v2168, %v2189
        %v2192 = vunpack.c.l.s4 1966171168
        %v2193 = vunpack.c.0.s8 %v2192
        %v2194 = vlaneseq
        %v2195 = vshrl.u32 %v2194, 7
        %v2196 = vsub.s32 %v2193, %v2195
        %v2197 = vrot.slane %v2169, %v2196
        %v2198 = vcombine.high %v2176, %v2176
        %v2199 = vcombine.high %v2183, %v2183
        %v2200 = vcombine.high %v2190, %v2190
        %v2201 = vcombine.high %v2197, %v2197
        %v2202 = vcombine.high %v1946, %v1946
        %v2204 = vunpack.c.l.s4 1966171168
        %v2205 = vunpack.c.0.s8 %v2204
        %v2206 = vlaneseq
        %v2207 = vshrl.u32 %v2206, 7
        %v2208 = vsub.s32 %v2205, %v2207
        %v2209 = vrot.slane %v1946, %v2208
        %v2211 = vunpack.c.l.s4 1966171168
        %v2212 = vunpack.c.0.s8 %v2211
        %v2213 = vlaneseq
        %v2214 = vshrl.u32 %v2213, 7
        %v2215 = vsub.s32 %v2212, %v2214
        %v2216 = vrot.slane %v2202, %v2215
        %v2217 = vcombine.high %v2209, %v2209
        %v2218 = vcombine.high %v2216, %v2216
        %v2220 = vunpack.c.l.s4 1966171168
        %v2221 = vunpack.c.0.s8 %v2220
        %v2222 = vlaneseq
        %v2223 = vshrl.u32 %v2222, 7
        %v2224 = vsub.s32 %v2221, %v2223
        %v2225 = vrot.slane %v2209, %v2224
        %v2227 = vunpack.c.l.s4 1966171168
        %v2228 = vunpack.c.0.s8 %v2227
        %v2229 = vlaneseq
        %v2230 = vshrl.u32 %v2229, 7
        %v2231 = vsub.s32 %v2228, %v2230
        %v2232 = vrot.slane %v2216, %v2231
        %v2234 = vunpack.c.l.s4 1966171168
        %v2235 = vunpack.c.0.s8 %v2234
        %v2236 = vlaneseq
        %v2237 = vshrl.u32 %v2236, 7
        %v2238 = vsub.s32 %v2235, %v2237
        %v2239 = vrot.slane %v2217, %v2238
        %v2241 = vunpack.c.l.s4 1966171168
        %v2242 = vunpack.c.0.s8 %v2241
        %v2243 = vlaneseq
        %v2244 = vshrl.u32 %v2243, 7
        %v2245 = vsub.s32 %v2242, %v2244
        %v2246 = vrot.slane %v2218, %v2245
        %v2247 = vcombine.high %v2225, %v2225
        %v2248 = vcombine.high %v2232, %v2232
        %v2249 = vcombine.high %v2239, %v2239
        %v2250 = vcombine.high %v2246, %v2246
        %v2251 = vcombine.high %v1947, %v1947
        %v2253 = vunpack.c.l.s4 1966171168
        %v2254 = vunpack.c.0.s8 %v2253
        %v2255 = vlaneseq
        %v2256 = vshrl.u32 %v2255, 7
        %v2257 = vsub.s32 %v2254, %v2256
        %v2258 = vrot.slane %v1947, %v2257
        %v2260 = vunpack.c.l.s4 1966171168
        %v2261 = vunpack.c.0.s8 %v2260
        %v2262 = vlaneseq
        %v2263 = vshrl.u32 %v2262, 7
        %v2264 = vsub.s32 %v2261, %v2263
        %v2265 = vrot.slane %v2251, %v2264
        %v2266 = vcombine.high %v2258, %v2258
        %v2267 = vcombine.high %v2265, %v2265
        %v2269 = vunpack.c.l.s4 1966171168
        %v2270 = vunpack.c.0.s8 %v2269
        %v2271 = vlaneseq
        %v2272 = vshrl.u32 %v2271, 7
        %v2273 = vsub.s32 %v2270, %v2272
        %v2274 = vrot.slane %v2258, %v2273
        %v2276 = vunpack.c.l.s4 1966171168
        %v2277 = vunpack.c.0.s8 %v2276
        %v2278 = vlaneseq
        %v2279 = vshrl.u32 %v2278, 7
        %v2280 = vsub.s32 %v2277, %v2279
        %v2281 = vrot.slane %v2265, %v2280
        %v2283 = vunpack.c.l.s4 1966171168
        %v2284 = vunpack.c.0.s8 %v2283
        %v2285 = vlaneseq
        %v2286 = vshrl.u32 %v2285, 7
        %v2287 = vsub.s32 %v2284, %v2286
        %v2288 = vrot.slane %v2266, %v2287
        %v2290 = vunpack.c.l.s4 1966171168
        %v2291 = vunpack.c.0.s8 %v2290
        %v2292 = vlaneseq
        %v2293 = vshrl.u32 %v2292, 7
        %v2294 = vsub.s32 %v2291, %v2293
        %v2295 = vrot.slane %v2267, %v2294
        %v2296 = vcombine.high %v2274, %v2274
        %v2297 = vcombine.high %v2281, %v2281
        %v2298 = vcombine.high %v2288, %v2288
        %v2299 = vcombine.high %v2295, %v2295
        %v2300 = vcombine.high %v1948, %v1948
        %v2302 = vunpack.c.l.s4 1966171168
        %v2303 = vunpack.c.0.s8 %v2302
        %v2304 = vlaneseq
        %v2305 = vshrl.u32 %v2304, 7
        %v2306 = vsub.s32 %v2303, %v2305
        %v2307 = vrot.slane %v1948, %v2306
        %v2309 = vunpack.c.l.s4 1966171168
        %v2310 = vunpack.c.0.s8 %v2309
        %v2311 = vlaneseq
        %v2312 = vshrl.u32 %v2311, 7
        %v2313 = vsub.s32 %v2310, %v2312
        %v2314 = vrot.slane %v2300, %v2313
        %v2315 = vcombine.high %v2307, %v2307
        %v2316 = vcombine.high %v2314, %v2314
        %v2318 = vunpack.c.l.s4 1966171168
        %v2319 = vunpack.c.0.s8 %v2318
        %v2320 = vlaneseq
        %v2321 = vshrl.u32 %v2320, 7
        %v2322 = vsub.s32 %v2319, %v2321
        %v2323 = vrot.slane %v2307, %v2322
        %v2325 = vunpack.c.l.s4 1966171168
        %v2326 = vunpack.c.0.s8 %v2325
        %v2327 = vlaneseq
        %v2328 = vshrl.u32 %v2327, 7
        %v2329 = vsub.s32 %v2326, %v2328
        %v2330 = vrot.slane %v2314, %v2329
        %v2332 = vunpack.c.l.s4 1966171168
        %v2333 = vunpack.c.0.s8 %v2332
        %v2334 = vlaneseq
        %v2335 = vshrl.u32 %v2334, 7
        %v2336 = vsub.s32 %v2333, %v2335
        %v2337 = vrot.slane %v2315, %v2336
        %v2339 = vunpack.c.l.s4 1966171168
        %v2340 = vunpack.c.0.s8 %v2339
        %v2341 = vlaneseq
        %v2342 = vshrl.u32 %v2341, 7
        %v2343 = vsub.s32 %v2340, %v2342
        %v2344 = vrot.slane %v2316, %v2343
        %v2345 = vcombine.high %v2323, %v2323
        %v2346 = vcombine.high %v2330, %v2330
        %v2347 = vcombine.high %v2337, %v2337
        %v2348 = vcombine.high %v2344, %v2344
        %2413 = vmatprep.subr.bf16.mxu0 %v917
        %2414 = vmatpush1.bf16.msra.mxu0 %v916
        %2415 = vmatprep.subr.bf16.mxu0 %v919
        %2416 = vmatpush1.bf16.msra.mxu0 %v918
        %2417 = vmatprep.subr.bf16.mxu0 %v921
        %2418 = vmatpush1.bf16.msra.mxu0 %v920
        %2419 = vmatprep.subr.bf16.mxu0 %v923
        %2420 = vmatpush1.bf16.msra.mxu0 %v922
        %2421 = vmatprep.subr.bf16.mxu0 %v925
        %2422 = vmatpush1.bf16.msra.mxu0 %v924
        %2423 = vmatprep.subr.bf16.mxu0 %v927
        %2424 = vmatpush1.bf16.msra.mxu0 %v926
        %2425 = vmatprep.subr.bf16.mxu0 %v929
        %2426 = vmatpush1.bf16.msra.mxu0 %v928
        %2427 = vmatprep.subr.bf16.mxu0 %v931
        %2428 = vmatpush1.bf16.msra.mxu0 %v930
        %2429 = vmatprep.subr.bf16.mxu0 %v933
        %2430 = vmatpush1.bf16.msra.mxu0 %v932
        %2431 = vmatprep.subr.bf16.mxu0 %v935
        %2432 = vmatpush1.bf16.msra.mxu0 %v934
        %2433 = vmatprep.subr.bf16.mxu0 %v937
        %2434 = vmatpush1.bf16.msra.mxu0 %v936
        %2435 = vmatprep.subr.bf16.mxu0 %v939
        %2436 = vmatpush1.bf16.msra.mxu0 %v938
        %2437 = vmatprep.subr.bf16.mxu0 %v941
        %2438 = vmatpush1.bf16.msra.mxu0 %v940
        %2439 = vmatprep.subr.bf16.mxu0 %v943
        %2440 = vmatpush1.bf16.msra.mxu0 %v942
        %2441 = vmatprep.subr.bf16.mxu0 %v945
        %2442 = vmatpush1.bf16.msra.mxu0 %v944
        %2443 = vmatprep.subr.bf16.mxu0 %v947
        %2444 = vmatpush1.bf16.msra.mxu0 %v946
        %2445 = vmatprep.mubr.bf16.mxu0 %v1994
        %2446 = vmatmul.mubr.bf16.gmra.mrb[0].mxu0 %v1980
        %v2447 = vpop.f32.mrb[0].mxu0
        %v2448 = vadd.f32 0.0, %v2447
        %v2449 = vpop.f32.mrb[0].mxu0
        %v2450 = vadd.f32 0.0, %v2449
        %v2451 = vpop.f32.mrb[0].mxu0
        %v2452 = vpop.f32.mrb[0].mxu0
        %2453 = vdwg.mxu0
        %2454 = vmatprep.subr.bf16.mxu0 %v949
        %2455 = vmatpush1.bf16.msra.mxu0 %v948
        %2456 = vmatprep.subr.bf16.mxu0 %v951
        %2457 = vmatpush1.bf16.msra.mxu0 %v950
        %2458 = vmatprep.subr.bf16.mxu0 %v953
        %2459 = vmatpush1.bf16.msra.mxu0 %v952
        %2460 = vmatprep.subr.bf16.mxu0 %v955
        %2461 = vmatpush1.bf16.msra.mxu0 %v954
        %2462 = vmatprep.subr.bf16.mxu0 %v957
        %2463 = vmatpush1.bf16.msra.mxu0 %v956
        %2464 = vmatprep.subr.bf16.mxu0 %v959
        %2465 = vmatpush1.bf16.msra.mxu0 %v958
        %2466 = vmatprep.subr.bf16.mxu0 %v961
        %2467 = vmatpush1.bf16.msra.mxu0 %v960
        %2468 = vmatprep.subr.bf16.mxu0 %v963
        %2469 = vmatpush1.bf16.msra.mxu0 %v962
        %2470 = vmatprep.subr.bf16.mxu0 %v965
        %2471 = vmatpush1.bf16.msra.mxu0 %v964
        %2472 = vmatprep.subr.bf16.mxu0 %v967
        %2473 = vmatpush1.bf16.msra.mxu0 %v966
        %2474 = vmatprep.subr.bf16.mxu0 %v969
        %2475 = vmatpush1.bf16.msra.mxu0 %v968
        %2476 = vmatprep.subr.bf16.mxu0 %v971
        %2477 = vmatpush1.bf16.msra.mxu0 %v970
        %2478 = vmatprep.subr.bf16.mxu0 %v973
        %2479 = vmatpush1.bf16.msra.mxu0 %v972
        %2480 = vmatprep.subr.bf16.mxu0 %v975
        %2481 = vmatpush1.bf16.msra.mxu0 %v974
        %2482 = vmatprep.subr.bf16.mxu0 %v977
        %2483 = vmatpush1.bf16.msra.mxu0 %v976
        %2484 = vmatprep.subr.bf16.mxu0 %v979
        %2485 = vmatpush1.bf16.msra.mxu0 %v978
        %2486 = vmatprep.mubr.bf16.mxu0 %v2004
        %2487 = vmatmul.mubr.bf16.gmra.mrb[0].mxu0 %v2002
        %v2488 = vpop.f32.mrb[0].mxu0
        %v2489 = vadd.f32 %v2448, %v2488
        %v2490 = vpop.f32.mrb[0].mxu0
        %v2491 = vadd.f32 %v2450, %v2490
        %v2492 = vpop.f32.mrb[0].mxu0
        %v2493 = vpop.f32.mrb[0].mxu0
        %2494 = vdwg.mxu0
        %2495 = vmatprep.subr.bf16.mxu0 %v981
        %2496 = vmatpush1.bf16.msra.mxu0 %v980
        %2497 = vmatprep.subr.bf16.mxu0 %v983
        %2498 = vmatpush1.bf16.msra.mxu0 %v982
        %2499 = vmatprep.subr.bf16.mxu0 %v985
        %2500 = vmatpush1.bf16.msra.mxu0 %v984
        %2501 = vmatprep.subr.bf16.mxu0 %v987
        %2502 = vmatpush1.bf16.msra.mxu0 %v986
        %2503 = vmatprep.subr.bf16.mxu0 %v989
        %2504 = vmatpush1.bf16.msra.mxu0 %v988
        %2505 = vmatprep.subr.bf16.mxu0 %v991
        %2506 = vmatpush1.bf16.msra.mxu0 %v990
        %2507 = vmatprep.subr.bf16.mxu0 %v993
        %2508 = vmatpush1.bf16.msra.mxu0 %v992
        %2509 = vmatprep.subr.bf16.mxu0 %v995
        %2510 = vmatpush1.bf16.msra.mxu0 %v994
        %2511 = vmatprep.subr.bf16.mxu0 %v997
        %2512 = vmatpush1.bf16.msra.mxu0 %v996
        %2513 = vmatprep.subr.bf16.mxu0 %v999
        %2514 = vmatpush1.bf16.msra.mxu0 %v998
        %2515 = vmatprep.subr.bf16.mxu0 %v1001
        %2516 = vmatpush1.bf16.msra.mxu0 %v1000
        %2517 = vmatprep.subr.bf16.mxu0 %v1003
        %2518 = vmatpush1.bf16.msra.mxu0 %v1002
        %2519 = vmatprep.subr.bf16.mxu0 %v1005
        %2520 = vmatpush1.bf16.msra.mxu0 %v1004
        %2521 = vmatprep.subr.bf16.mxu0 %v1007
        %2522 = vmatpush1.bf16.msra.mxu0 %v1006
        %2523 = vmatprep.subr.bf16.mxu0 %v1009
        %2524 = vmatpush1.bf16.msra.mxu0 %v1008
        %2525 = vmatprep.subr.bf16.mxu0 %v1011
        %2526 = vmatpush1.bf16.msra.mxu0 %v1010
        %2527 = vmatprep.mubr.bf16.mxu0 %v2001
        %2528 = vmatmul.mubr.bf16.gmra.mrb[0].mxu0 %v1987
        %v2529 = vpop.f32.mrb[0].mxu0
        %v2530 = vadd.f32 %v2489, %v2529
        %v2531 = vpop.f32.mrb[0].mxu0
        %v2532 = vadd.f32 %v2491, %v2531
        %v2533 = vpop.f32.mrb[0].mxu0
        %v2534 = vpop.f32.mrb[0].mxu0
        %2535 = vdwg.mxu0
        %2536 = vmatprep.subr.bf16.mxu0 %v1013
        %2537 = vmatpush1.bf16.msra.mxu0 %v1012
        %2538 = vmatprep.subr.bf16.mxu0 %v1015
        %2539 = vmatpush1.bf16.msra.mxu0 %v1014
        %2540 = vmatprep.subr.bf16.mxu0 %v1017
        %2541 = vmatpush1.bf16.msra.mxu0 %v1016
        %2542 = vmatprep.subr.bf16.mxu0 %v1019
        %2543 = vmatpush1.bf16.msra.mxu0 %v1018
        %2544 = vmatprep.subr.bf16.mxu0 %v1021
        %2545 = vmatpush1.bf16.msra.mxu0 %v1020
        %2546 = vmatprep.subr.bf16.mxu0 %v1023
        %2547 = vmatpush1.bf16.msra.mxu0 %v1022
        %2548 = vmatprep.subr.bf16.mxu0 %v1025
        %2549 = vmatpush1.bf16.msra.mxu0 %v1024
        %2550 = vmatprep.subr.bf16.mxu0 %v1027
        %2551 = vmatpush1.bf16.msra.mxu0 %v1026
        %2552 = vmatprep.subr.bf16.mxu0 %v1029
        %2553 = vmatpush1.bf16.msra.mxu0 %v1028
        %2554 = vmatprep.subr.bf16.mxu0 %v1031
        %2555 = vmatpush1.bf16.msra.mxu0 %v1030
        %2556 = vmatprep.subr.bf16.mxu0 %v1033
        %2557 = vmatpush1.bf16.msra.mxu0 %v1032
        %2558 = vmatprep.subr.bf16.mxu0 %v1035
        %2559 = vmatpush1.bf16.msra.mxu0 %v1034
        %2560 = vmatprep.subr.bf16.mxu0 %v1037
        %2561 = vmatpush1.bf16.msra.mxu0 %v1036
        %2562 = vmatprep.subr.bf16.mxu0 %v1039
        %2563 = vmatpush1.bf16.msra.mxu0 %v1038
        %2564 = vmatprep.subr.bf16.mxu0 %v1041
        %2565 = vmatpush1.bf16.msra.mxu0 %v1040
        %2566 = vmatprep.subr.bf16.mxu0 %v1043
        %2567 = vmatpush1.bf16.msra.mxu0 %v1042
        %2568 = vmatprep.mubr.bf16.mxu0 %v2005
        %2569 = vmatmul.mubr.bf16.gmra.mrb[0].mxu0 %v2003
        %v2570 = vpop.f32.mrb[0].mxu0
        %v2571 = vadd.f32 %v2530, %v2570
        %v2572 = vpop.f32.mrb[0].mxu0
        %v2573 = vadd.f32 %v2532, %v2572
        %v2574 = vpop.f32.mrb[0].mxu0
        %v2575 = vpop.f32.mrb[0].mxu0
        %2576 = vdwg.mxu0
        %2577 = vmatprep.subr.bf16.mxu0 %v1045
        %2578 = vmatpush1.bf16.msra.mxu0 %v1044
        %2579 = vmatprep.subr.bf16.mxu0 %v1047
        %2580 = vmatpush1.bf16.msra.mxu0 %v1046
        %2581 = vmatprep.subr.bf16.mxu0 %v1049
        %2582 = vmatpush1.bf16.msra.mxu0 %v1048
        %2583 = vmatprep.subr.bf16.mxu0 %v1051
        %2584 = vmatpush1.bf16.msra.mxu0 %v1050
        %2585 = vmatprep.subr.bf16.mxu0 %v1053
        %2586 = vmatpush1.bf16.msra.mxu0 %v1052
        %2587 = vmatprep.subr.bf16.mxu0 %v1055
        %2588 = vmatpush1.bf16.msra.mxu0 %v1054
        %2589 = vmatprep.subr.bf16.mxu0 %v1057
        %2590 = vmatpush1.bf16.msra.mxu0 %v1056
        %2591 = vmatprep.subr.bf16.mxu0 %v1059
        %2592 = vmatpush1.bf16.msra.mxu0 %v1058
        %2593 = vmatprep.subr.bf16.mxu0 %v1061
        %2594 = vmatpush1.bf16.msra.mxu0 %v1060
        %2595 = vmatprep.subr.bf16.mxu0 %v1063
        %2596 = vmatpush1.bf16.msra.mxu0 %v1062
        %2597 = vmatprep.subr.bf16.mxu0 %v1065
        %2598 = vmatpush1.bf16.msra.mxu0 %v1064
        %2599 = vmatprep.subr.bf16.mxu0 %v1067
        %2600 = vmatpush1.bf16.msra.mxu0 %v1066
        %2601 = vmatprep.subr.bf16.mxu0 %v1069
        %2602 = vmatpush1.bf16.msra.mxu0 %v1068
        %2603 = vmatprep.subr.bf16.mxu0 %v1071
        %2604 = vmatpush1.bf16.msra.mxu0 %v1070
        %2605 = vmatprep.subr.bf16.mxu0 %v1073
        %2606 = vmatpush1.bf16.msra.mxu0 %v1072
        %2607 = vmatprep.subr.bf16.mxu0 %v1075
        %2608 = vmatpush1.bf16.msra.mxu0 %v1074
        %2609 = vmatprep.mubr.bf16.mxu0 %v2043
        %2610 = vmatmul.mubr.bf16.gmra.mrb[0].mxu0 %v2029
        %v2611 = vpop.f32.mrb[0].mxu0
        %v2612 = vadd.f32 %v2571, %v2611
        %v2613 = vpop.f32.mrb[0].mxu0
        %v2614 = vadd.f32 %v2573, %v2613
        %v2615 = vpop.f32.mrb[0].mxu0
        %v2616 = vpop.f32.mrb[0].mxu0
        %2617 = vdwg.mxu0
        %2618 = vmatprep.subr.bf16.mxu0 %v1077
        %2619 = vmatpush1.bf16.msra.mxu0 %v1076
        %2620 = vmatprep.subr.bf16.mxu0 %v1079
        %2621 = vmatpush1.bf16.msra.mxu0 %v1078
        %2622 = vmatprep.subr.bf16.mxu0 %v1081
        %2623 = vmatpush1.bf16.msra.mxu0 %v1080
        %2624 = vmatprep.subr.bf16.mxu0 %v1083
        %2625 = vmatpush1.bf16.msra.mxu0 %v1082
        %2626 = vmatprep.subr.bf16.mxu0 %v1085
        %2627 = vmatpush1.bf16.msra.mxu0 %v1084
        %2628 = vmatprep.subr.bf16.mxu0 %v1087
        %2629 = vmatpush1.bf16.msra.mxu0 %v1086
        %2630 = vmatprep.subr.bf16.mxu0 %v1089
        %2631 = vmatpush1.bf16.msra.mxu0 %v1088
        %2632 = vmatprep.subr.bf16.mxu0 %v1091
        %2633 = vmatpush1.bf16.msra.mxu0 %v1090
        %2634 = vmatprep.subr.bf16.mxu0 %v1093
        %2635 = vmatpush1.bf16.msra.mxu0 %v1092
        %2636 = vmatprep.subr.bf16.mxu0 %v1095
        %2637 = vmatpush1.bf16.msra.mxu0 %v1094
        %2638 = vmatprep.subr.bf16.mxu0 %v1097
        %2639 = vmatpush1.bf16.msra.mxu0 %v1096
        %2640 = vmatprep.subr.bf16.mxu0 %v1099
        %2641 = vmatpush1.bf16.msra.mxu0 %v1098
        %2642 = vmatprep.subr.bf16.mxu0 %v1101
        %2643 = vmatpush1.bf16.msra.mxu0 %v1100
        %2644 = vmatprep.subr.bf16.mxu0 %v1103
        %2645 = vmatpush1.bf16.msra.mxu0 %v1102
        %2646 = vmatprep.subr.bf16.mxu0 %v1105
        %2647 = vmatpush1.bf16.msra.mxu0 %v1104
        %2648 = vmatprep.subr.bf16.mxu0 %v1107
        %2649 = vmatpush1.bf16.msra.mxu0 %v1106
        %2650 = vmatprep.mubr.bf16.mxu0 %v2053
        %2651 = vmatmul.mubr.bf16.gmra.mrb[0].mxu0 %v2051
        %v2652 = vpop.f32.mrb[0].mxu0
        %v2653 = vadd.f32 %v2612, %v2652
        %v2654 = vpop.f32.mrb[0].mxu0
        %v2655 = vadd.f32 %v2614, %v2654
        %v2656 = vpop.f32.mrb[0].mxu0
        %v2657 = vpop.f32.mrb[0].mxu0
        %2658 = vdwg.mxu0
        %2659 = vmatprep.subr.bf16.mxu0 %v1109
        %2660 = vmatpush1.bf16.msra.mxu0 %v1108
        %2661 = vmatprep.subr.bf16.mxu0 %v1111
        %2662 = vmatpush1.bf16.msra.mxu0 %v1110
        %2663 = vmatprep.subr.bf16.mxu0 %v1113
        %2664 = vmatpush1.bf16.msra.mxu0 %v1112
        %2665 = vmatprep.subr.bf16.mxu0 %v1115
        %2666 = vmatpush1.bf16.msra.mxu0 %v1114
        %2667 = vmatprep.subr.bf16.mxu0 %v1117
        %2668 = vmatpush1.bf16.msra.mxu0 %v1116
        %2669 = vmatprep.subr.bf16.mxu0 %v1119
        %2670 = vmatpush1.bf16.msra.mxu0 %v1118
        %2671 = vmatprep.subr.bf16.mxu0 %v1121
        %2672 = vmatpush1.bf16.msra.mxu0 %v1120
        %2673 = vmatprep.subr.bf16.mxu0 %v1123
        %2674 = vmatpush1.bf16.msra.mxu0 %v1122
        %2675 = vmatprep.subr.bf16.mxu0 %v1125
        %2676 = vmatpush1.bf16.msra.mxu0 %v1124
        %2677 = vmatprep.subr.bf16.mxu0 %v1127
        %2678 = vmatpush1.bf16.msra.mxu0 %v1126
        %2679 = vmatprep.subr.bf16.mxu0 %v1129
        %2680 = vmatpush1.bf16.msra.mxu0 %v1128
        %2681 = vmatprep.subr.bf16.mxu0 %v1131
        %2682 = vmatpush1.bf16.msra.mxu0 %v1130
        %2683 = vmatprep.subr.bf16.mxu0 %v1133
        %2684 = vmatpush1.bf16.msra.mxu0 %v1132
        %2685 = vmatprep.subr.bf16.mxu0 %v1135
        %2686 = vmatpush1.bf16.msra.mxu0 %v1134
        %2687 = vmatprep.subr.bf16.mxu0 %v1137
        %2688 = vmatpush1.bf16.msra.mxu0 %v1136
        %2689 = vmatprep.subr.bf16.mxu0 %v1139
        %2690 = vmatpush1.bf16.msra.mxu0 %v1138
        %2691 = vmatprep.mubr.bf16.mxu0 %v2050
        %2692 = vmatmul.mubr.bf16.gmra.mrb[0].mxu0 %v2036
        %v2693 = vpop.f32.mrb[0].mxu0
        %v2694 = vadd.f32 %v2653, %v2693
        %v2695 = vpop.f32.mrb[0].mxu0
        %v2696 = vadd.f32 %v2655, %v2695
        %v2697 = vpop.f32.mrb[0].mxu0
        %v2698 = vpop.f32.mrb[0].mxu0
        %2699 = vdwg.mxu0
        %2700 = vmatprep.subr.bf16.mxu0 %v1141
        %2701 = vmatpush1.bf16.msra.mxu0 %v1140
        %2702 = vmatprep.subr.bf16.mxu0 %v1143
        %2703 = vmatpush1.bf16.msra.mxu0 %v1142
        %2704 = vmatprep.subr.bf16.mxu0 %v1145
        %2705 = vmatpush1.bf16.msra.mxu0 %v1144
        %2706 = vmatprep.subr.bf16.mxu0 %v1147
        %2707 = vmatpush1.bf16.msra.mxu0 %v1146
        %2708 = vmatprep.subr.bf16.mxu0 %v1149
        %2709 = vmatpush1.bf16.msra.mxu0 %v1148
        %2710 = vmatprep.subr.bf16.mxu0 %v1151
        %2711 = vmatpush1.bf16.msra.mxu0 %v1150
        %2712 = vmatprep.subr.bf16.mxu0 %v1153
        %2713 = vmatpush1.bf16.msra.mxu0 %v1152
        %2714 = vmatprep.subr.bf16.mxu0 %v1155
        %2715 = vmatpush1.bf16.msra.mxu0 %v1154
        %2716 = vmatprep.subr.bf16.mxu0 %v1157
        %2717 = vmatpush1.bf16.msra.mxu0 %v1156
        %2718 = vmatprep.subr.bf16.mxu0 %v1159
        %2719 = vmatpush1.bf16.msra.mxu0 %v1158
        %2720 = vmatprep.subr.bf16.mxu0 %v1161
        %2721 = vmatpush1.bf16.msra.mxu0 %v1160
        %2722 = vmatprep.subr.bf16.mxu0 %v1163
        %2723 = vmatpush1.bf16.msra.mxu0 %v1162
        %2724 = vmatprep.subr.bf16.mxu0 %v1165
        %2725 = vmatpush1.bf16.msra.mxu0 %v1164
        %2726 = vmatprep.subr.bf16.mxu0 %v1167
        %2727 = vmatpush1.bf16.msra.mxu0 %v1166
        %2728 = vmatprep.subr.bf16.mxu0 %v1169
        %2729 = vmatpush1.bf16.msra.mxu0 %v1168
        %2730 = vmatprep.subr.bf16.mxu0 %v1171
        %2731 = vmatpush1.bf16.msra.mxu0 %v1170
        %2732 = vmatprep.mubr.bf16.mxu0 %v2054
        %2733 = vmatmul.mubr.bf16.gmra.mrb[0].mxu0 %v2052
        %v2734 = vpop.f32.mrb[0].mxu0
        %v2735 = vadd.f32 %v2694, %v2734
        %v2736 = vpop.f32.mrb[0].mxu0
        %v2737 = vadd.f32 %v2696, %v2736
        %v2738 = vpop.f32.mrb[0].mxu0
        %v2739 = vpop.f32.mrb[0].mxu0
        %2740 = vdwg.mxu0
        %2741 = vmatprep.subr.bf16.mxu0 %v1173
        %2742 = vmatpush1.bf16.msra.mxu0 %v1172
        %2743 = vmatprep.subr.bf16.mxu0 %v1175
        %2744 = vmatpush1.bf16.msra.mxu0 %v1174
        %2745 = vmatprep.subr.bf16.mxu0 %v1177
        %2746 = vmatpush1.bf16.msra.mxu0 %v1176
        %2747 = vmatprep.subr.bf16.mxu0 %v1179
        %2748 = vmatpush1.bf16.msra.mxu0 %v1178
        %2749 = vmatprep.subr.bf16.mxu0 %v1181
        %2750 = vmatpush1.bf16.msra.mxu0 %v1180
        %2751 = vmatprep.subr.bf16.mxu0 %v1183
        %2752 = vmatpush1.bf16.msra.mxu0 %v1182
        %2753 = vmatprep.subr.bf16.mxu0 %v1185
        %2754 = vmatpush1.bf16.msra.mxu0 %v1184
        %2755 = vmatprep.subr.bf16.mxu0 %v1187
        %2756 = vmatpush1.bf16.msra.mxu0 %v1186
        %2757 = vmatprep.subr.bf16.mxu0 %v1189
        %2758 = vmatpush1.bf16.msra.mxu0 %v1188
        %2759 = vmatprep.subr.bf16.mxu0 %v1191
        %2760 = vmatpush1.bf16.msra.mxu0 %v1190
        %2761 = vmatprep.subr.bf16.mxu0 %v1193
        %2762 = vmatpush1.bf16.msra.mxu0 %v1192
        %2763 = vmatprep.subr.bf16.mxu0 %v1195
        %2764 = vmatpush1.bf16.msra.mxu0 %v1194
        %2765 = vmatprep.subr.bf16.mxu0 %v1197
        %2766 = vmatpush1.bf16.msra.mxu0 %v1196
        %2767 = vmatprep.subr.bf16.mxu0 %v1199
        %2768 = vmatpush1.bf16.msra.mxu0 %v1198
        %2769 = vmatprep.subr.bf16.mxu0 %v1201
        %2770 = vmatpush1.bf16.msra.mxu0 %v1200
        %2771 = vmatprep.subr.bf16.mxu0 %v1203
        %2772 = vmatpush1.bf16.msra.mxu0 %v1202
        %2773 = vmatprep.mubr.bf16.mxu0 %v2092
        %2774 = vmatmul.mubr.bf16.gmra.mrb[0].mxu0 %v2078
        %v2775 = vpop.f32.mrb[0].mxu0
        %v2776 = vadd.f32 %v2735, %v2775
        %v2777 = vpop.f32.mrb[0].mxu0
        %v2778 = vadd.f32 %v2737, %v2777
        %v2779 = vpop.f32.mrb[0].mxu0
        %v2780 = vpop.f32.mrb[0].mxu0
        %2781 = vdwg.mxu0
        %2782 = vmatprep.subr.bf16.mxu0 %v1205
        %2783 = vmatpush1.bf16.msra.mxu0 %v1204
        %2784 = vmatprep.subr.bf16.mxu0 %v1207
        %2785 = vmatpush1.bf16.msra.mxu0 %v1206
        %2786 = vmatprep.subr.bf16.mxu0 %v1209
        %2787 = vmatpush1.bf16.msra.mxu0 %v1208
        %2788 = vmatprep.subr.bf16.mxu0 %v1211
        %2789 = vmatpush1.bf16.msra.mxu0 %v1210
        %2790 = vmatprep.subr.bf16.mxu0 %v1213
        %2791 = vmatpush1.bf16.msra.mxu0 %v1212
        %2792 = vmatprep.subr.bf16.mxu0 %v1215
        %2793 = vmatpush1.bf16.msra.mxu0 %v1214
        %2794 = vmatprep.subr.bf16.mxu0 %v1217
        %2795 = vmatpush1.bf16.msra.mxu0 %v1216
        %2796 = vmatprep.subr.bf16.mxu0 %v1219
        %2797 = vmatpush1.bf16.msra.mxu0 %v1218
        %2798 = vmatprep.subr.bf16.mxu0 %v1221
        %2799 = vmatpush1.bf16.msra.mxu0 %v1220
        %2800 = vmatprep.subr.bf16.mxu0 %v1223
        %2801 = vmatpush1.bf16.msra.mxu0 %v1222
        %2802 = vmatprep.subr.bf16.mxu0 %v1225
        %2803 = vmatpush1.bf16.msra.mxu0 %v1224
        %2804 = vmatprep.subr.bf16.mxu0 %v1227
        %2805 = vmatpush1.bf16.msra.mxu0 %v1226
        %2806 = vmatprep.subr.bf16.mxu0 %v1229
        %2807 = vmatpush1.bf16.msra.mxu0 %v1228
        %2808 = vmatprep.subr.bf16.mxu0 %v1231
        %2809 = vmatpush1.bf16.msra.mxu0 %v1230
        %2810 = vmatprep.subr.bf16.mxu0 %v1233
        %2811 = vmatpush1.bf16.msra.mxu0 %v1232
        %2812 = vmatprep.subr.bf16.mxu0 %v1235
        %2813 = vmatpush1.bf16.msra.mxu0 %v1234
        %2814 = vmatprep.mubr.bf16.mxu0 %v2102
        %2815 = vmatmul.mubr.bf16.gmra.mrb[0].mxu0 %v2100
        %v2816 = vpop.f32.mrb[0].mxu0
        %v2817 = vadd.f32 %v2776, %v2816
        %v2818 = vpop.f32.mrb[0].mxu0
        %v2819 = vadd.f32 %v2778, %v2818
        %v2820 = vpop.f32.mrb[0].mxu0
        %v2821 = vpop.f32.mrb[0].mxu0
        %2822 = vdwg.mxu0
        %2823 = vmatprep.subr.bf16.mxu0 %v1237
        %2824 = vmatpush1.bf16.msra.mxu0 %v1236
        %2825 = vmatprep.subr.bf16.mxu0 %v1239
        %2826 = vmatpush1.bf16.msra.mxu0 %v1238
        %2827 = vmatprep.subr.bf16.mxu0 %v1241
        %2828 = vmatpush1.bf16.msra.mxu0 %v1240
        %2829 = vmatprep.subr.bf16.mxu0 %v1243
        %2830 = vmatpush1.bf16.msra.mxu0 %v1242
        %2831 = vmatprep.subr.bf16.mxu0 %v1245
        %2832 = vmatpush1.bf16.msra.mxu0 %v1244
        %2833 = vmatprep.subr.bf16.mxu0 %v1247
        %2834 = vmatpush1.bf16.msra.mxu0 %v1246
        %2835 = vmatprep.subr.bf16.mxu0 %v1249
        %2836 = vmatpush1.bf16.msra.mxu0 %v1248
        %2837 = vmatprep.subr.bf16.mxu0 %v1251
        %2838 = vmatpush1.bf16.msra.mxu0 %v1250
        %2839 = vmatprep.subr.bf16.mxu0 %v1253
        %2840 = vmatpush1.bf16.msra.mxu0 %v1252
        %2841 = vmatprep.subr.bf16.mxu0 %v1255
        %2842 = vmatpush1.bf16.msra.mxu0 %v1254
        %2843 = vmatprep.subr.bf16.mxu0 %v1257
        %2844 = vmatpush1.bf16.msra.mxu0 %v1256
        %2845 = vmatprep.subr.bf16.mxu0 %v1259
        %2846 = vmatpush1.bf16.msra.mxu0 %v1258
        %2847 = vmatprep.subr.bf16.mxu0 %v1261
        %2848 = vmatpush1.bf16.msra.mxu0 %v1260
        %2849 = vmatprep.subr.bf16.mxu0 %v1263
        %2850 = vmatpush1.bf16.msra.mxu0 %v1262
        %2851 = vmatprep.subr.bf16.mxu0 %v1265
        %2852 = vmatpush1.bf16.msra.mxu0 %v1264
        %2853 = vmatprep.subr.bf16.mxu0 %v1267
        %2854 = vmatpush1.bf16.msra.mxu0 %v1266
        %2855 = vmatprep.mubr.bf16.mxu0 %v2099
        %2856 = vmatmul.mubr.bf16.gmra.mrb[0].mxu0 %v2085
        %v2857 = vpop.f32.mrb[0].mxu0
        %v2858 = vadd.f32 %v2817, %v2857
        %v2859 = vpop.f32.mrb[0].mxu0
        %v2860 = vadd.f32 %v2819, %v2859
        %v2861 = vpop.f32.mrb[0].mxu0
        %v2862 = vpop.f32.mrb[0].mxu0
        %2863 = vdwg.mxu0
        %2864 = vmatprep.subr.bf16.mxu0 %v1269
        %2865 = vmatpush1.bf16.msra.mxu0 %v1268
        %2866 = vmatprep.subr.bf16.mxu0 %v1271
        %2867 = vmatpush1.bf16.msra.mxu0 %v1270
        %2868 = vmatprep.subr.bf16.mxu0 %v1273
        %2869 = vmatpush1.bf16.msra.mxu0 %v1272
        %2870 = vmatprep.subr.bf16.mxu0 %v1275
        %2871 = vmatpush1.bf16.msra.mxu0 %v1274
        %2872 = vmatprep.subr.bf16.mxu0 %v1277
        %2873 = vmatpush1.bf16.msra.mxu0 %v1276
        %2874 = vmatprep.subr.bf16.mxu0 %v1279
        %2875 = vmatpush1.bf16.msra.mxu0 %v1278
        %2876 = vmatprep.subr.bf16.mxu0 %v1281
        %2877 = vmatpush1.bf16.msra.mxu0 %v1280
        %2878 = vmatprep.subr.bf16.mxu0 %v1283
        %2879 = vmatpush1.bf16.msra.mxu0 %v1282
        %2880 = vmatprep.subr.bf16.mxu0 %v1285
        %2881 = vmatpush1.bf16.msra.mxu0 %v1284
        %2882 = vmatprep.subr.bf16.mxu0 %v1287
        %2883 = vmatpush1.bf16.msra.mxu0 %v1286
        %2884 = vmatprep.subr.bf16.mxu0 %v1289
        %2885 = vmatpush1.bf16.msra.mxu0 %v1288
        %2886 = vmatprep.subr.bf16.mxu0 %v1291
        %2887 = vmatpush1.bf16.msra.mxu0 %v1290
        %2888 = vmatprep.subr.bf16.mxu0 %v1293
        %2889 = vmatpush1.bf16.msra.mxu0 %v1292
        %2890 = vmatprep.subr.bf16.mxu0 %v1295
        %2891 = vmatpush1.bf16.msra.mxu0 %v1294
        %2892 = vmatprep.subr.bf16.mxu0 %v1297
        %2893 = vmatpush1.bf16.msra.mxu0 %v1296
        %2894 = vmatprep.subr.bf16.mxu0 %v1299
        %2895 = vmatpush1.bf16.msra.mxu0 %v1298
        %2896 = vmatprep.mubr.bf16.mxu0 %v2103
        %2897 = vmatmul.mubr.bf16.gmra.mrb[0].mxu0 %v2101
        %v2898 = vpop.f32.mrb[0].mxu0
        %v2899 = vadd.f32 %v2858, %v2898
        %v2900 = vpop.f32.mrb[0].mxu0
        %v2901 = vadd.f32 %v2860, %v2900
        %v2902 = vpop.f32.mrb[0].mxu0
        %v2903 = vpop.f32.mrb[0].mxu0
        %2904 = vdwg.mxu0
        %2905 = vmatprep.subr.bf16.mxu0 %v1301
        %2906 = vmatpush1.bf16.msra.mxu0 %v1300
        %2907 = vmatprep.subr.bf16.mxu0 %v1303
        %2908 = vmatpush1.bf16.msra.mxu0 %v1302
        %2909 = vmatprep.subr.bf16.mxu0 %v1305
        %2910 = vmatpush1.bf16.msra.mxu0 %v1304
        %2911 = vmatprep.subr.bf16.mxu0 %v1307
        %2912 = vmatpush1.bf16.msra.mxu0 %v1306
        %2913 = vmatprep.subr.bf16.mxu0 %v1309
        %2914 = vmatpush1.bf16.msra.mxu0 %v1308
        %2915 = vmatprep.subr.bf16.mxu0 %v1311
        %2916 = vmatpush1.bf16.msra.mxu0 %v1310
        %2917 = vmatprep.subr.bf16.mxu0 %v1313
        %2918 = vmatpush1.bf16.msra.mxu0 %v1312
        %2919 = vmatprep.subr.bf16.mxu0 %v1315
        %2920 = vmatpush1.bf16.msra.mxu0 %v1314
        %2921 = vmatprep.subr.bf16.mxu0 %v1317
        %2922 = vmatpush1.bf16.msra.mxu0 %v1316
        %2923 = vmatprep.subr.bf16.mxu0 %v1319
        %2924 = vmatpush1.bf16.msra.mxu0 %v1318
        %2925 = vmatprep.subr.bf16.mxu0 %v1321
        %2926 = vmatpush1.bf16.msra.mxu0 %v1320
        %2927 = vmatprep.subr.bf16.mxu0 %v1323
        %2928 = vmatpush1.bf16.msra.mxu0 %v1322
        %2929 = vmatprep.subr.bf16.mxu0 %v1325
        %2930 = vmatpush1.bf16.msra.mxu0 %v1324
        %2931 = vmatprep.subr.bf16.mxu0 %v1327
        %2932 = vmatpush1.bf16.msra.mxu0 %v1326
        %2933 = vmatprep.subr.bf16.mxu0 %v1329
        %2934 = vmatpush1.bf16.msra.mxu0 %v1328
        %2935 = vmatprep.subr.bf16.mxu0 %v1331
        %2936 = vmatpush1.bf16.msra.mxu0 %v1330
        %2937 = vmatprep.mubr.bf16.mxu0 %v2141
        %2938 = vmatmul.mubr.bf16.gmra.mrb[0].mxu0 %v2127
        %v2939 = vpop.f32.mrb[0].mxu0
        %v2940 = vadd.f32 %v2899, %v2939
        %v2941 = vpop.f32.mrb[0].mxu0
        %v2942 = vadd.f32 %v2901, %v2941
        %v2943 = vpop.f32.mrb[0].mxu0
        %v2944 = vpop.f32.mrb[0].mxu0
        %2945 = vdwg.mxu0
        %2946 = vmatprep.subr.bf16.mxu0 %v1333
        %2947 = vmatpush1.bf16.msra.mxu0 %v1332
        %2948 = vmatprep.subr.bf16.mxu0 %v1335
        %2949 = vmatpush1.bf16.msra.mxu0 %v1334
        %2950 = vmatprep.subr.bf16.mxu0 %v1337
        %2951 = vmatpush1.bf16.msra.mxu0 %v1336
        %2952 = vmatprep.subr.bf16.mxu0 %v1339
        %2953 = vmatpush1.bf16.msra.mxu0 %v1338
        %2954 = vmatprep.subr.bf16.mxu0 %v1341
        %2955 = vmatpush1.bf16.msra.mxu0 %v1340
        %2956 = vmatprep.subr.bf16.mxu0 %v1343
        %2957 = vmatpush1.bf16.msra.mxu0 %v1342
        %2958 = vmatprep.subr.bf16.mxu0 %v1345
        %2959 = vmatpush1.bf16.msra.mxu0 %v1344
        %2960 = vmatprep.subr.bf16.mxu0 %v1347
        %2961 = vmatpush1.bf16.msra.mxu0 %v1346
        %2962 = vmatprep.subr.bf16.mxu0 %v1349
        %2963 = vmatpush1.bf16.msra.mxu0 %v1348
        %2964 = vmatprep.subr.bf16.mxu0 %v1351
        %2965 = vmatpush1.bf16.msra.mxu0 %v1350
        %2966 = vmatprep.subr.bf16.mxu0 %v1353
        %2967 = vmatpush1.bf16.msra.mxu0 %v1352
        %2968 = vmatprep.subr.bf16.mxu0 %v1355
        %2969 = vmatpush1.bf16.msra.mxu0 %v1354
        %2970 = vmatprep.subr.bf16.mxu0 %v1357
        %2971 = vmatpush1.bf16.msra.mxu0 %v1356
        %2972 = vmatprep.subr.bf16.mxu0 %v1359
        %2973 = vmatpush1.bf16.msra.mxu0 %v1358
        %2974 = vmatprep.subr.bf16.mxu0 %v1361
        %2975 = vmatpush1.bf16.msra.mxu0 %v1360
        %2976 = vmatprep.subr.bf16.mxu0 %v1363
        %2977 = vmatpush1.bf16.msra.mxu0 %v1362
        %2978 = vmatprep.mubr.bf16.mxu0 %v2151
        %2979 = vmatmul.mubr.bf16.gmra.mrb[0].mxu0 %v2149
        %v2980 = vpop.f32.mrb[0].mxu0
        %v2981 = vadd.f32 %v2940, %v2980
        %v2982 = vpop.f32.mrb[0].mxu0
        %v2983 = vadd.f32 %v2942, %v2982
        %v2984 = vpop.f32.mrb[0].mxu0
        %v2985 = vpop.f32.mrb[0].mxu0
        %2986 = vdwg.mxu0
        %2987 = vmatprep.subr.bf16.mxu0 %v1365
        %2988 = vmatpush1.bf16.msra.mxu0 %v1364
        %2989 = vmatprep.subr.bf16.mxu0 %v1367
        %2990 = vmatpush1.bf16.msra.mxu0 %v1366
        %2991 = vmatprep.subr.bf16.mxu0 %v1369
        %2992 = vmatpush1.bf16.msra.mxu0 %v1368
        %2993 = vmatprep.subr.bf16.mxu0 %v1371
        %2994 = vmatpush1.bf16.msra.mxu0 %v1370
        %2995 = vmatprep.subr.bf16.mxu0 %v1373
        %2996 = vmatpush1.bf16.msra.mxu0 %v1372
        %2997 = vmatprep.subr.bf16.mxu0 %v1375
        %2998 = vmatpush1.bf16.msra.mxu0 %v1374
        %2999 = vmatprep.subr.bf16.mxu0 %v1377
        %3000 = vmatpush1.bf16.msra.mxu0 %v1376
        %3001 = vmatprep.subr.bf16.mxu0 %v1379
        %3002 = vmatpush1.bf16.msra.mxu0 %v1378
        %3003 = vmatprep.subr.bf16.mxu0 %v1381
        %3004 = vmatpush1.bf16.msra.mxu0 %v1380
        %3005 = vmatprep.subr.bf16.mxu0 %v1383
        %3006 = vmatpush1.bf16.msra.mxu0 %v1382
        %3007 = vmatprep.subr.bf16.mxu0 %v1385
        %3008 = vmatpush1.bf16.msra.mxu0 %v1384
        %3009 = vmatprep.subr.bf16.mxu0 %v1387
        %3010 = vmatpush1.bf16.msra.mxu0 %v1386
        %3011 = vmatprep.subr.bf16.mxu0 %v1389
        %3012 = vmatpush1.bf16.msra.mxu0 %v1388
        %3013 = vmatprep.subr.bf16.mxu0 %v1391
        %3014 = vmatpush1.bf16.msra.mxu0 %v1390
        %3015 = vmatprep.subr.bf16.mxu0 %v1393
        %3016 = vmatpush1.bf16.msra.mxu0 %v1392
        %3017 = vmatprep.subr.bf16.mxu0 %v1395
        %3018 = vmatpush1.bf16.msra.mxu0 %v1394
        %3019 = vmatprep.mubr.bf16.mxu0 %v2148
        %3020 = vmatmul.mubr.bf16.gmra.mrb[0].mxu0 %v2134
        %v3021 = vpop.f32.mrb[0].mxu0
        %v3022 = vadd.f32 %v2981, %v3021
        %v3023 = vpop.f32.mrb[0].mxu0
        %v3024 = vadd.f32 %v2983, %v3023
        %v3025 = vpop.f32.mrb[0].mxu0
        %v3026 = vpop.f32.mrb[0].mxu0
        %3027 = vdwg.mxu0
        %3028 = vmatprep.subr.bf16.mxu0 %v1397
        %3029 = vmatpush1.bf16.msra.mxu0 %v1396
        %3030 = vmatprep.subr.bf16.mxu0 %v1399
        %3031 = vmatpush1.bf16.msra.mxu0 %v1398
        %3032 = vmatprep.subr.bf16.mxu0 %v1401
        %3033 = vmatpush1.bf16.msra.mxu0 %v1400
        %3034 = vmatprep.subr.bf16.mxu0 %v1403
        %3035 = vmatpush1.bf16.msra.mxu0 %v1402
        %3036 = vmatprep.subr.bf16.mxu0 %v1405
        %3037 = vmatpush1.bf16.msra.mxu0 %v1404
        %3038 = vmatprep.subr.bf16.mxu0 %v1407
        %3039 = vmatpush1.bf16.msra.mxu0 %v1406
        %3040 = vmatprep.subr.bf16.mxu0 %v1409
        %3041 = vmatpush1.bf16.msra.mxu0 %v1408
        %3042 = vmatprep.subr.bf16.mxu0 %v1411
        %3043 = vmatpush1.bf16.msra.mxu0 %v1410
        %3044 = vmatprep.subr.bf16.mxu0 %v1413
        %3045 = vmatpush1.bf16.msra.mxu0 %v1412
        %3046 = vmatprep.subr.bf16.mxu0 %v1415
        %3047 = vmatpush1.bf16.msra.mxu0 %v1414
        %3048 = vmatprep.subr.bf16.mxu0 %v1417
        %3049 = vmatpush1.bf16.msra.mxu0 %v1416
        %3050 = vmatprep.subr.bf16.mxu0 %v1419
        %3051 = vmatpush1.bf16.msra.mxu0 %v1418
        %3052 = vmatprep.subr.bf16.mxu0 %v1421
        %3053 = vmatpush1.bf16.msra.mxu0 %v1420
        %3054 = vmatprep.subr.bf16.mxu0 %v1423
        %3055 = vmatpush1.bf16.msra.mxu0 %v1422
        %3056 = vmatprep.subr.bf16.mxu0 %v1425
        %3057 = vmatpush1.bf16.msra.mxu0 %v1424
        %3058 = vmatprep.subr.bf16.mxu0 %v1427
        %3059 = vmatpush1.bf16.msra.mxu0 %v1426
        %3060 = vmatprep.mubr.bf16.mxu0 %v2152
        %3061 = vmatmul.mubr.bf16.gmra.mrb[0].mxu0 %v2150
        %v3062 = vpop.f32.mrb[0].mxu0
        %v3063 = vadd.f32 %v3022, %v3062
        %v3064 = vpop.f32.mrb[0].mxu0
        %v3065 = vadd.f32 %v3024, %v3064
        %v3066 = vpop.f32.mrb[0].mxu0
        %v3067 = vpop.f32.mrb[0].mxu0
        %3068 = vdwg.mxu0
        %3069 = vmatprep.subr.bf16.mxu0 %v1429
        %3070 = vmatpush1.bf16.msra.mxu0 %v1428
        %3071 = vmatprep.subr.bf16.mxu0 %v1431
        %3072 = vmatpush1.bf16.msra.mxu0 %v1430
        %3073 = vmatprep.subr.bf16.mxu0 %v1433
        %3074 = vmatpush1.bf16.msra.mxu0 %v1432
        %3075 = vmatprep.subr.bf16.mxu0 %v1435
        %3076 = vmatpush1.bf16.msra.mxu0 %v1434
        %3077 = vmatprep.subr.bf16.mxu0 %v1437
        %3078 = vmatpush1.bf16.msra.mxu0 %v1436
        %3079 = vmatprep.subr.bf16.mxu0 %v1439
        %3080 = vmatpush1.bf16.msra.mxu0 %v1438
        %3081 = vmatprep.subr.bf16.mxu0 %v1441
        %3082 = vmatpush1.bf16.msra.mxu0 %v1440
        %3083 = vmatprep.subr.bf16.mxu0 %v1443
        %3084 = vmatpush1.bf16.msra.mxu0 %v1442
        %3085 = vmatprep.subr.bf16.mxu0 %v1445
        %3086 = vmatpush1.bf16.msra.mxu0 %v1444
        %3087 = vmatprep.subr.bf16.mxu0 %v1447
        %3088 = vmatpush1.bf16.msra.mxu0 %v1446
        %3089 = vmatprep.subr.bf16.mxu0 %v1449
        %3090 = vmatpush1.bf16.msra.mxu0 %v1448
        %3091 = vmatprep.subr.bf16.mxu0 %v1451
        %3092 = vmatpush1.bf16.msra.mxu0 %v1450
        %3093 = vmatprep.subr.bf16.mxu0 %v1453
        %3094 = vmatpush1.bf16.msra.mxu0 %v1452
        %3095 = vmatprep.subr.bf16.mxu0 %v1455
        %3096 = vmatpush1.bf16.msra.mxu0 %v1454
        %3097 = vmatprep.subr.bf16.mxu0 %v1457
        %3098 = vmatpush1.bf16.msra.mxu0 %v1456
        %3099 = vmatprep.subr.bf16.mxu0 %v1459
        %3100 = vmatpush1.bf16.msra.mxu0 %v1458
        %3101 = vmatprep.mubr.bf16.mxu0 %v2190
        %3102 = vmatmul.mubr.bf16.gmra.mrb[0].mxu0 %v2176
        %v3103 = vpop.f32.mrb[0].mxu0
        %v3104 = vadd.f32 %v3063, %v3103
        %v3105 = vpop.f32.mrb[0].mxu0
        %v3106 = vadd.f32 %v3065, %v3105
        %v3107 = vpop.f32.mrb[0].mxu0
        %v3108 = vpop.f32.mrb[0].mxu0
        %3109 = vdwg.mxu0
        %3110 = vmatprep.subr.bf16.mxu0 %v1461
        %3111 = vmatpush1.bf16.msra.mxu0 %v1460
        %3112 = vmatprep.subr.bf16.mxu0 %v1463
        %3113 = vmatpush1.bf16.msra.mxu0 %v1462
        %3114 = vmatprep.subr.bf16.mxu0 %v1465
        %3115 = vmatpush1.bf16.msra.mxu0 %v1464
        %3116 = vmatprep.subr.bf16.mxu0 %v1467
        %3117 = vmatpush1.bf16.msra.mxu0 %v1466
        %3118 = vmatprep.subr.bf16.mxu0 %v1469
        %3119 = vmatpush1.bf16.msra.mxu0 %v1468
        %3120 = vmatprep.subr.bf16.mxu0 %v1471
        %3121 = vmatpush1.bf16.msra.mxu0 %v1470
        %3122 = vmatprep.subr.bf16.mxu0 %v1473
        %3123 = vmatpush1.bf16.msra.mxu0 %v1472
        %3124 = vmatprep.subr.bf16.mxu0 %v1475
        %3125 = vmatpush1.bf16.msra.mxu0 %v1474
        %3126 = vmatprep.subr.bf16.mxu0 %v1477
        %3127 = vmatpush1.bf16.msra.mxu0 %v1476
        %3128 = vmatprep.subr.bf16.mxu0 %v1479
        %3129 = vmatpush1.bf16.msra.mxu0 %v1478
        %3130 = vmatprep.subr.bf16.mxu0 %v1481
        %3131 = vmatpush1.bf16.msra.mxu0 %v1480
        %3132 = vmatprep.subr.bf16.mxu0 %v1483
        %3133 = vmatpush1.bf16.msra.mxu0 %v1482
        %3134 = vmatprep.subr.bf16.mxu0 %v1485
        %3135 = vmatpush1.bf16.msra.mxu0 %v1484
        %3136 = vmatprep.subr.bf16.mxu0 %v1487
        %3137 = vmatpush1.bf16.msra.mxu0 %v1486
        %3138 = vmatprep.subr.bf16.mxu0 %v1489
        %3139 = vmatpush1.bf16.msra.mxu0 %v1488
        %3140 = vmatprep.subr.bf16.mxu0 %v1491
        %3141 = vmatpush1.bf16.msra.mxu0 %v1490
        %3142 = vmatprep.mubr.bf16.mxu0 %v2200
        %3143 = vmatmul.mubr.bf16.gmra.mrb[0].mxu0 %v2198
        %v3144 = vpop.f32.mrb[0].mxu0
        %v3145 = vadd.f32 %v3104, %v3144
        %v3146 = vpop.f32.mrb[0].mxu0
        %v3147 = vadd.f32 %v3106, %v3146
        %v3148 = vpop.f32.mrb[0].mxu0
        %v3149 = vpop.f32.mrb[0].mxu0
        %3150 = vdwg.mxu0
        %3151 = vmatprep.subr.bf16.mxu0 %v1493
        %3152 = vmatpush1.bf16.msra.mxu0 %v1492
        %3153 = vmatprep.subr.bf16.mxu0 %v1495
        %3154 = vmatpush1.bf16.msra.mxu0 %v1494
        %3155 = vmatprep.subr.bf16.mxu0 %v1497
        %3156 = vmatpush1.bf16.msra.mxu0 %v1496
        %3157 = vmatprep.subr.bf16.mxu0 %v1499
        %3158 = vmatpush1.bf16.msra.mxu0 %v1498
        %3159 = vmatprep.subr.bf16.mxu0 %v1501
        %3160 = vmatpush1.bf16.msra.mxu0 %v1500
        %3161 = vmatprep.subr.bf16.mxu0 %v1503
        %3162 = vmatpush1.bf16.msra.mxu0 %v1502
        %3163 = vmatprep.subr.bf16.mxu0 %v1505
        %3164 = vmatpush1.bf16.msra.mxu0 %v1504
        %3165 = vmatprep.subr.bf16.mxu0 %v1507
        %3166 = vmatpush1.bf16.msra.mxu0 %v1506
        %3167 = vmatprep.subr.bf16.mxu0 %v1509
        %3168 = vmatpush1.bf16.msra.mxu0 %v1508
        %3169 = vmatprep.subr.bf16.mxu0 %v1511
        %3170 = vmatpush1.bf16.msra.mxu0 %v1510
        %3171 = vmatprep.subr.bf16.mxu0 %v1513
        %3172 = vmatpush1.bf16.msra.mxu0 %v1512
        %3173 = vmatprep.subr.bf16.mxu0 %v1515
        %3174 = vmatpush1.bf16.msra.mxu0 %v1514
        %3175 = vmatprep.subr.bf16.mxu0 %v1517
        %3176 = vmatpush1.bf16.msra.mxu0 %v1516
        %3177 = vmatprep.subr.bf16.mxu0 %v1519
        %3178 = vmatpush1.bf16.msra.mxu0 %v1518
        %3179 = vmatprep.subr.bf16.mxu0 %v1521
        %3180 = vmatpush1.bf16.msra.mxu0 %v1520
        %3181 = vmatprep.subr.bf16.mxu0 %v1523
        %3182 = vmatpush1.bf16.msra.mxu0 %v1522
        %3183 = vmatprep.mubr.bf16.mxu0 %v2197
        %3184 = vmatmul.mubr.bf16.gmra.mrb[0].mxu0 %v2183
        %v3185 = vpop.f32.mrb[0].mxu0
        %v3186 = vadd.f32 %v3145, %v3185
        %v3187 = vpop.f32.mrb[0].mxu0
        %v3188 = vadd.f32 %v3147, %v3187
        %v3189 = vpop.f32.mrb[0].mxu0
        %v3190 = vpop.f32.mrb[0].mxu0
        %3191 = vdwg.mxu0
        %3192 = vmatprep.subr.bf16.mxu0 %v1525
        %3193 = vmatpush1.bf16.msra.mxu0 %v1524
        %3194 = vmatprep.subr.bf16.mxu0 %v1527
        %3195 = vmatpush1.bf16.msra.mxu0 %v1526
        %3196 = vmatprep.subr.bf16.mxu0 %v1529
        %3197 = vmatpush1.bf16.msra.mxu0 %v1528
        %3198 = vmatprep.subr.bf16.mxu0 %v1531
        %3199 = vmatpush1.bf16.msra.mxu0 %v1530
        %3200 = vmatprep.subr.bf16.mxu0 %v1533
        %3201 = vmatpush1.bf16.msra.mxu0 %v1532
        %3202 = vmatprep.subr.bf16.mxu0 %v1535
        %3203 = vmatpush1.bf16.msra.mxu0 %v1534
        %3204 = vmatprep.subr.bf16.mxu0 %v1537
        %3205 = vmatpush1.bf16.msra.mxu0 %v1536
        %3206 = vmatprep.subr.bf16.mxu0 %v1539
        %3207 = vmatpush1.bf16.msra.mxu0 %v1538
        %3208 = vmatprep.subr.bf16.mxu0 %v1541
        %3209 = vmatpush1.bf16.msra.mxu0 %v1540
        %3210 = vmatprep.subr.bf16.mxu0 %v1543
        %3211 = vmatpush1.bf16.msra.mxu0 %v1542
        %3212 = vmatprep.subr.bf16.mxu0 %v1545
        %3213 = vmatpush1.bf16.msra.mxu0 %v1544
        %3214 = vmatprep.subr.bf16.mxu0 %v1547
        %3215 = vmatpush1.bf16.msra.mxu0 %v1546
        %3216 = vmatprep.subr.bf16.mxu0 %v1549
        %3217 = vmatpush1.bf16.msra.mxu0 %v1548
        %3218 = vmatprep.subr.bf16.mxu0 %v1551
        %3219 = vmatpush1.bf16.msra.mxu0 %v1550
        %3220 = vmatprep.subr.bf16.mxu0 %v1553
        %3221 = vmatpush1.bf16.msra.mxu0 %v1552
        %3222 = vmatprep.subr.bf16.mxu0 %v1555
        %3223 = vmatpush1.bf16.msra.mxu0 %v1554
        %3224 = vmatprep.mubr.bf16.mxu0 %v2201
        %3225 = vmatmul.mubr.bf16.gmra.mrb[0].mxu0 %v2199
        %v3226 = vpop.f32.mrb[0].mxu0
        %v3227 = vadd.f32 %v3186, %v3226
        %v3228 = vpop.f32.mrb[0].mxu0
        %v3229 = vadd.f32 %v3188, %v3228
        %v3230 = vpop.f32.mrb[0].mxu0
        %v3231 = vpop.f32.mrb[0].mxu0
        %3232 = vdwg.mxu0
        %3233 = vmatprep.subr.bf16.mxu0 %v1557
        %3234 = vmatpush1.bf16.msra.mxu0 %v1556
        %3235 = vmatprep.subr.bf16.mxu0 %v1559
        %3236 = vmatpush1.bf16.msra.mxu0 %v1558
        %3237 = vmatprep.subr.bf16.mxu0 %v1561
        %3238 = vmatpush1.bf16.msra.mxu0 %v1560
        %3239 = vmatprep.subr.bf16.mxu0 %v1563
        %3240 = vmatpush1.bf16.msra.mxu0 %v1562
        %3241 = vmatprep.subr.bf16.mxu0 %v1565
        %3242 = vmatpush1.bf16.msra.mxu0 %v1564
        %3243 = vmatprep.subr.bf16.mxu0 %v1567
        %3244 = vmatpush1.bf16.msra.mxu0 %v1566
        %3245 = vmatprep.subr.bf16.mxu0 %v1569
        %3246 = vmatpush1.bf16.msra.mxu0 %v1568
        %3247 = vmatprep.subr.bf16.mxu0 %v1571
        %3248 = vmatpush1.bf16.msra.mxu0 %v1570
        %3249 = vmatprep.subr.bf16.mxu0 %v1573
        %3250 = vmatpush1.bf16.msra.mxu0 %v1572
        %3251 = vmatprep.subr.bf16.mxu0 %v1575
        %3252 = vmatpush1.bf16.msra.mxu0 %v1574
        %3253 = vmatprep.subr.bf16.mxu0 %v1577
        %3254 = vmatpush1.bf16.msra.mxu0 %v1576
        %3255 = vmatprep.subr.bf16.mxu0 %v1579
        %3256 = vmatpush1.bf16.msra.mxu0 %v1578
        %3257 = vmatprep.subr.bf16.mxu0 %v1581
        %3258 = vmatpush1.bf16.msra.mxu0 %v1580
        %3259 = vmatprep.subr.bf16.mxu0 %v1583
        %3260 = vmatpush1.bf16.msra.mxu0 %v1582
        %3261 = vmatprep.subr.bf16.mxu0 %v1585
        %3262 = vmatpush1.bf16.msra.mxu0 %v1584
        %3263 = vmatprep.subr.bf16.mxu0 %v1587
        %3264 = vmatpush1.bf16.msra.mxu0 %v1586
        %3265 = vmatprep.mubr.bf16.mxu0 %v2239
        %3266 = vmatmul.mubr.bf16.gmra.mrb[0].mxu0 %v2225
        %v3267 = vpop.f32.mrb[0].mxu0
        %v3268 = vadd.f32 %v3227, %v3267
        %v3269 = vpop.f32.mrb[0].mxu0
        %v3270 = vadd.f32 %v3229, %v3269
        %v3271 = vpop.f32.mrb[0].mxu0
        %v3272 = vpop.f32.mrb[0].mxu0
        %3273 = vdwg.mxu0
        %3274 = vmatprep.subr.bf16.mxu0 %v1589
        %3275 = vmatpush1.bf16.msra.mxu0 %v1588
        %3276 = vmatprep.subr.bf16.mxu0 %v1591
        %3277 = vmatpush1.bf16.msra.mxu0 %v1590
        %3278 = vmatprep.subr.bf16.mxu0 %v1593
        %3279 = vmatpush1.bf16.msra.mxu0 %v1592
        %3280 = vmatprep.subr.bf16.mxu0 %v1595
        %3281 = vmatpush1.bf16.msra.mxu0 %v1594
        %3282 = vmatprep.subr.bf16.mxu0 %v1597
        %3283 = vmatpush1.bf16.msra.mxu0 %v1596
        %3284 = vmatprep.subr.bf16.mxu0 %v1599
        %3285 = vmatpush1.bf16.msra.mxu0 %v1598
        %3286 = vmatprep.subr.bf16.mxu0 %v1601
        %3287 = vmatpush1.bf16.msra.mxu0 %v1600
        %3288 = vmatprep.subr.bf16.mxu0 %v1603
        %3289 = vmatpush1.bf16.msra.mxu0 %v1602
        %3290 = vmatprep.subr.bf16.mxu0 %v1605
        %3291 = vmatpush1.bf16.msra.mxu0 %v1604
        %3292 = vmatprep.subr.bf16.mxu0 %v1607
        %3293 = vmatpush1.bf16.msra.mxu0 %v1606
        %3294 = vmatprep.subr.bf16.mxu0 %v1609
        %3295 = vmatpush1.bf16.msra.mxu0 %v1608
        %3296 = vmatprep.subr.bf16.mxu0 %v1611
        %3297 = vmatpush1.bf16.msra.mxu0 %v1610
        %3298 = vmatprep.subr.bf16.mxu0 %v1613
        %3299 = vmatpush1.bf16.msra.mxu0 %v1612
        %3300 = vmatprep.subr.bf16.mxu0 %v1615
        %3301 = vmatpush1.bf16.msra.mxu0 %v1614
        %3302 = vmatprep.subr.bf16.mxu0 %v1617
        %3303 = vmatpush1.bf16.msra.mxu0 %v1616
        %3304 = vmatprep.subr.bf16.mxu0 %v1619
        %3305 = vmatpush1.bf16.msra.mxu0 %v1618
        %3306 = vmatprep.mubr.bf16.mxu0 %v2249
        %3307 = vmatmul.mubr.bf16.gmra.mrb[0].mxu0 %v2247
        %v3308 = vpop.f32.mrb[0].mxu0
        %v3309 = vadd.f32 %v3268, %v3308
        %v3310 = vpop.f32.mrb[0].mxu0
        %v3311 = vadd.f32 %v3270, %v3310
        %v3312 = vpop.f32.mrb[0].mxu0
        %v3313 = vpop.f32.mrb[0].mxu0
        %3314 = vdwg.mxu0
        %3315 = vmatprep.subr.bf16.mxu0 %v1621
        %3316 = vmatpush1.bf16.msra.mxu0 %v1620
        %3317 = vmatprep.subr.bf16.mxu0 %v1623
        %3318 = vmatpush1.bf16.msra.mxu0 %v1622
        %3319 = vmatprep.subr.bf16.mxu0 %v1625
        %3320 = vmatpush1.bf16.msra.mxu0 %v1624
        %3321 = vmatprep.subr.bf16.mxu0 %v1627
        %3322 = vmatpush1.bf16.msra.mxu0 %v1626
        %3323 = vmatprep.subr.bf16.mxu0 %v1629
        %3324 = vmatpush1.bf16.msra.mxu0 %v1628
        %3325 = vmatprep.subr.bf16.mxu0 %v1631
        %3326 = vmatpush1.bf16.msra.mxu0 %v1630
        %3327 = vmatprep.subr.bf16.mxu0 %v1633
        %3328 = vmatpush1.bf16.msra.mxu0 %v1632
        %3329 = vmatprep.subr.bf16.mxu0 %v1635
        %3330 = vmatpush1.bf16.msra.mxu0 %v1634
        %3331 = vmatprep.subr.bf16.mxu0 %v1637
        %3332 = vmatpush1.bf16.msra.mxu0 %v1636
        %3333 = vmatprep.subr.bf16.mxu0 %v1639
        %3334 = vmatpush1.bf16.msra.mxu0 %v1638
        %3335 = vmatprep.subr.bf16.mxu0 %v1641
        %3336 = vmatpush1.bf16.msra.mxu0 %v1640
        %3337 = vmatprep.subr.bf16.mxu0 %v1643
        %3338 = vmatpush1.bf16.msra.mxu0 %v1642
        %3339 = vmatprep.subr.bf16.mxu0 %v1645
        %3340 = vmatpush1.bf16.msra.mxu0 %v1644
        %3341 = vmatprep.subr.bf16.mxu0 %v1647
        %3342 = vmatpush1.bf16.msra.mxu0 %v1646
        %3343 = vmatprep.subr.bf16.mxu0 %v1649
        %3344 = vmatpush1.bf16.msra.mxu0 %v1648
        %3345 = vmatprep.subr.bf16.mxu0 %v1651
        %3346 = vmatpush1.bf16.msra.mxu0 %v1650
        %3347 = vmatprep.mubr.bf16.mxu0 %v2246
        %3348 = vmatmul.mubr.bf16.gmra.mrb[0].mxu0 %v2232
        %v3349 = vpop.f32.mrb[0].mxu0
        %v3350 = vadd.f32 %v3309, %v3349
        %v3351 = vpop.f32.mrb[0].mxu0
        %v3352 = vadd.f32 %v3311, %v3351
        %v3353 = vpop.f32.mrb[0].mxu0
        %v3354 = vpop.f32.mrb[0].mxu0
        %3355 = vdwg.mxu0
        %3356 = vmatprep.subr.bf16.mxu0 %v1653
        %3357 = vmatpush1.bf16.msra.mxu0 %v1652
        %3358 = vmatprep.subr.bf16.mxu0 %v1655
        %3359 = vmatpush1.bf16.msra.mxu0 %v1654
        %3360 = vmatprep.subr.bf16.mxu0 %v1657
        %3361 = vmatpush1.bf16.msra.mxu0 %v1656
        %3362 = vmatprep.subr.bf16.mxu0 %v1659
        %3363 = vmatpush1.bf16.msra.mxu0 %v1658
        %3364 = vmatprep.subr.bf16.mxu0 %v1661
        %3365 = vmatpush1.bf16.msra.mxu0 %v1660
        %3366 = vmatprep.subr.bf16.mxu0 %v1663
        %3367 = vmatpush1.bf16.msra.mxu0 %v1662
        %3368 = vmatprep.subr.bf16.mxu0 %v1665
        %3369 = vmatpush1.bf16.msra.mxu0 %v1664
        %3370 = vmatprep.subr.bf16.mxu0 %v1667
        %3371 = vmatpush1.bf16.msra.mxu0 %v1666
        %3372 = vmatprep.subr.bf16.mxu0 %v1669
        %3373 = vmatpush1.bf16.msra.mxu0 %v1668
        %3374 = vmatprep.subr.bf16.mxu0 %v1671
        %3375 = vmatpush1.bf16.msra.mxu0 %v1670
        %3376 = vmatprep.subr.bf16.mxu0 %v1673
        %3377 = vmatpush1.bf16.msra.mxu0 %v1672
        %3378 = vmatprep.subr.bf16.mxu0 %v1675
        %3379 = vmatpush1.bf16.msra.mxu0 %v1674
        %3380 = vmatprep.subr.bf16.mxu0 %v1677
        %3381 = vmatpush1.bf16.msra.mxu0 %v1676
        %3382 = vmatprep.subr.bf16.mxu0 %v1679
        %3383 = vmatpush1.bf16.msra.mxu0 %v1678
        %3384 = vmatprep.subr.bf16.mxu0 %v1681
        %3385 = vmatpush1.bf16.msra.mxu0 %v1680
        %3386 = vmatprep.subr.bf16.mxu0 %v1683
        %3387 = vmatpush1.bf16.msra.mxu0 %v1682
        %3388 = vmatprep.mubr.bf16.mxu0 %v2250
        %3389 = vmatmul.mubr.bf16.gmra.mrb[0].mxu0 %v2248
        %v3390 = vpop.f32.mrb[0].mxu0
        %v3391 = vadd.f32 %v3350, %v3390
        %v3392 = vpop.f32.mrb[0].mxu0
        %v3393 = vadd.f32 %v3352, %v3392
        %v3394 = vpop.f32.mrb[0].mxu0
        %v3395 = vpop.f32.mrb[0].mxu0
        %3396 = vdwg.mxu0
        %3397 = vmatprep.subr.bf16.mxu0 %v1685
        %3398 = vmatpush1.bf16.msra.mxu0 %v1684
        %3399 = vmatprep.subr.bf16.mxu0 %v1687
        %3400 = vmatpush1.bf16.msra.mxu0 %v1686
        %3401 = vmatprep.subr.bf16.mxu0 %v1689
        %3402 = vmatpush1.bf16.msra.mxu0 %v1688
        %3403 = vmatprep.subr.bf16.mxu0 %v1691
        %3404 = vmatpush1.bf16.msra.mxu0 %v1690
        %3405 = vmatprep.subr.bf16.mxu0 %v1693
        %3406 = vmatpush1.bf16.msra.mxu0 %v1692
        %3407 = vmatprep.subr.bf16.mxu0 %v1695
        %3408 = vmatpush1.bf16.msra.mxu0 %v1694
        %3409 = vmatprep.subr.bf16.mxu0 %v1697
        %3410 = vmatpush1.bf16.msra.mxu0 %v1696
        %3411 = vmatprep.subr.bf16.mxu0 %v1699
        %3412 = vmatpush1.bf16.msra.mxu0 %v1698
        %3413 = vmatprep.subr.bf16.mxu0 %v1701
        %3414 = vmatpush1.bf16.msra.mxu0 %v1700
        %3415 = vmatprep.subr.bf16.mxu0 %v1703
        %3416 = vmatpush1.bf16.msra.mxu0 %v1702
        %3417 = vmatprep.subr.bf16.mxu0 %v1705
        %3418 = vmatpush1.bf16.msra.mxu0 %v1704
        %3419 = vmatprep.subr.bf16.mxu0 %v1707
        %3420 = vmatpush1.bf16.msra.mxu0 %v1706
        %3421 = vmatprep.subr.bf16.mxu0 %v1709
        %3422 = vmatpush1.bf16.msra.mxu0 %v1708
        %3423 = vmatprep.subr.bf16.mxu0 %v1711
        %3424 = vmatpush1.bf16.msra.mxu0 %v1710
        %3425 = vmatprep.subr.bf16.mxu0 %v1713
        %3426 = vmatpush1.bf16.msra.mxu0 %v1712
        %3427 = vmatprep.subr.bf16.mxu0 %v1715
        %3428 = vmatpush1.bf16.msra.mxu0 %v1714
        %3429 = vmatprep.mubr.bf16.mxu0 %v2288
        %3430 = vmatmul.mubr.bf16.gmra.mrb[0].mxu0 %v2274
        %v3431 = vpop.f32.mrb[0].mxu0
        %v3432 = vadd.f32 %v3391, %v3431
        %v3433 = vpop.f32.mrb[0].mxu0
        %v3434 = vadd.f32 %v3393, %v3433
        %v3435 = vpop.f32.mrb[0].mxu0
        %v3436 = vpop.f32.mrb[0].mxu0
        %3437 = vdwg.mxu0
        %3438 = vmatprep.subr.bf16.mxu0 %v1717
        %3439 = vmatpush1.bf16.msra.mxu0 %v1716
        %3440 = vmatprep.subr.bf16.mxu0 %v1719
        %3441 = vmatpush1.bf16.msra.mxu0 %v1718
        %3442 = vmatprep.subr.bf16.mxu0 %v1721
        %3443 = vmatpush1.bf16.msra.mxu0 %v1720
        %3444 = vmatprep.subr.bf16.mxu0 %v1723
        %3445 = vmatpush1.bf16.msra.mxu0 %v1722
        %3446 = vmatprep.subr.bf16.mxu0 %v1725
        %3447 = vmatpush1.bf16.msra.mxu0 %v1724
        %3448 = vmatprep.subr.bf16.mxu0 %v1727
        %3449 = vmatpush1.bf16.msra.mxu0 %v1726
        %3450 = vmatprep.subr.bf16.mxu0 %v1729
        %3451 = vmatpush1.bf16.msra.mxu0 %v1728
        %3452 = vmatprep.subr.bf16.mxu0 %v1731
        %3453 = vmatpush1.bf16.msra.mxu0 %v1730
        %3454 = vmatprep.subr.bf16.mxu0 %v1733
        %3455 = vmatpush1.bf16.msra.mxu0 %v1732
        %3456 = vmatprep.subr.bf16.mxu0 %v1735
        %3457 = vmatpush1.bf16.msra.mxu0 %v1734
        %3458 = vmatprep.subr.bf16.mxu0 %v1737
        %3459 = vmatpush1.bf16.msra.mxu0 %v1736
        %3460 = vmatprep.subr.bf16.mxu0 %v1739
        %3461 = vmatpush1.bf16.msra.mxu0 %v1738
        %3462 = vmatprep.subr.bf16.mxu0 %v1741
        %3463 = vmatpush1.bf16.msra.mxu0 %v1740
        %3464 = vmatprep.subr.bf16.mxu0 %v1743
        %3465 = vmatpush1.bf16.msra.mxu0 %v1742
        %3466 = vmatprep.subr.bf16.mxu0 %v1745
        %3467 = vmatpush1.bf16.msra.mxu0 %v1744
        %3468 = vmatprep.subr.bf16.mxu0 %v1747
        %3469 = vmatpush1.bf16.msra.mxu0 %v1746
        %3470 = vmatprep.mubr.bf16.mxu0 %v2298
        %3471 = vmatmul.mubr.bf16.gmra.mrb[0].mxu0 %v2296
        %v3472 = vpop.f32.mrb[0].mxu0
        %v3473 = vadd.f32 %v3432, %v3472
        %v3474 = vpop.f32.mrb[0].mxu0
        %v3475 = vadd.f32 %v3434, %v3474
        %v3476 = vpop.f32.mrb[0].mxu0
        %v3477 = vpop.f32.mrb[0].mxu0
        %3478 = vdwg.mxu0
        %3479 = vmatprep.subr.bf16.mxu0 %v1749
        %3480 = vmatpush1.bf16.msra.mxu0 %v1748
        %3481 = vmatprep.subr.bf16.mxu0 %v1751
        %3482 = vmatpush1.bf16.msra.mxu0 %v1750
        %3483 = vmatprep.subr.bf16.mxu0 %v1753
        %3484 = vmatpush1.bf16.msra.mxu0 %v1752
        %3485 = vmatprep.subr.bf16.mxu0 %v1755
        %3486 = vmatpush1.bf16.msra.mxu0 %v1754
        %3487 = vmatprep.subr.bf16.mxu0 %v1757
        %3488 = vmatpush1.bf16.msra.mxu0 %v1756
        %3489 = vmatprep.subr.bf16.mxu0 %v1759
        %3490 = vmatpush1.bf16.msra.mxu0 %v1758
        %3491 = vmatprep.subr.bf16.mxu0 %v1761
        %3492 = vmatpush1.bf16.msra.mxu0 %v1760
        %3493 = vmatprep.subr.bf16.mxu0 %v1763
        %3494 = vmatpush1.bf16.msra.mxu0 %v1762
        %3495 = vmatprep.subr.bf16.mxu0 %v1765
        %3496 = vmatpush1.bf16.msra.mxu0 %v1764
        %3497 = vmatprep.subr.bf16.mxu0 %v1767
        %3498 = vmatpush1.bf16.msra.mxu0 %v1766
        %3499 = vmatprep.subr.bf16.mxu0 %v1769
        %3500 = vmatpush1.bf16.msra.mxu0 %v1768
        %3501 = vmatprep.subr.bf16.mxu0 %v1771
        %3502 = vmatpush1.bf16.msra.mxu0 %v1770
        %3503 = vmatprep.subr.bf16.mxu0 %v1773
        %3504 = vmatpush1.bf16.msra.mxu0 %v1772
        %3505 = vmatprep.subr.bf16.mxu0 %v1775
        %3506 = vmatpush1.bf16.msra.mxu0 %v1774
        %3507 = vmatprep.subr.bf16.mxu0 %v1777
        %3508 = vmatpush1.bf16.msra.mxu0 %v1776
        %3509 = vmatprep.subr.bf16.mxu0 %v1779
        %3510 = vmatpush1.bf16.msra.mxu0 %v1778
        %3511 = vmatprep.mubr.bf16.mxu0 %v2295
        %3512 = vmatmul.mubr.bf16.gmra.mrb[0].mxu0 %v2281
        %v3513 = vpop.f32.mrb[0].mxu0
        %v3514 = vadd.f32 %v3473, %v3513
        %v3515 = vpop.f32.mrb[0].mxu0
        %v3516 = vadd.f32 %v3475, %v3515
        %v3517 = vpop.f32.mrb[0].mxu0
        %v3518 = vpop.f32.mrb[0].mxu0
        %3519 = vdwg.mxu0
        %3520 = vmatprep.subr.bf16.mxu0 %v1781
        %3521 = vmatpush1.bf16.msra.mxu0 %v1780
        %3522 = vmatprep.subr.bf16.mxu0 %v1783
        %3523 = vmatpush1.bf16.msra.mxu0 %v1782
        %3524 = vmatprep.subr.bf16.mxu0 %v1785
        %3525 = vmatpush1.bf16.msra.mxu0 %v1784
        %3526 = vmatprep.subr.bf16.mxu0 %v1787
        %3527 = vmatpush1.bf16.msra.mxu0 %v1786
        %3528 = vmatprep.subr.bf16.mxu0 %v1789
        %3529 = vmatpush1.bf16.msra.mxu0 %v1788
        %3530 = vmatprep.subr.bf16.mxu0 %v1791
        %3531 = vmatpush1.bf16.msra.mxu0 %v1790
        %3532 = vmatprep.subr.bf16.mxu0 %v1793
        %3533 = vmatpush1.bf16.msra.mxu0 %v1792
        %3534 = vmatprep.subr.bf16.mxu0 %v1795
        %3535 = vmatpush1.bf16.msra.mxu0 %v1794
        %3536 = vmatprep.subr.bf16.mxu0 %v1797
        %3537 = vmatpush1.bf16.msra.mxu0 %v1796
        %3538 = vmatprep.subr.bf16.mxu0 %v1799
        %3539 = vmatpush1.bf16.msra.mxu0 %v1798
        %3540 = vmatprep.subr.bf16.mxu0 %v1801
        %3541 = vmatpush1.bf16.msra.mxu0 %v1800
        %3542 = vmatprep.subr.bf16.mxu0 %v1803
        %3543 = vmatpush1.bf16.msra.mxu0 %v1802
        %3544 = vmatprep.subr.bf16.mxu0 %v1805
        %3545 = vmatpush1.bf16.msra.mxu0 %v1804
        %3546 = vmatprep.subr.bf16.mxu0 %v1807
        %3547 = vmatpush1.bf16.msra.mxu0 %v1806
        %3548 = vmatprep.subr.bf16.mxu0 %v1809
        %3549 = vmatpush1.bf16.msra.mxu0 %v1808
        %3550 = vmatprep.subr.bf16.mxu0 %v1811
        %3551 = vmatpush1.bf16.msra.mxu0 %v1810
        %3552 = vmatprep.mubr.bf16.mxu0 %v2299
        %3553 = vmatmul.mubr.bf16.gmra.mrb[0].mxu0 %v2297
        %v3554 = vpop.f32.mrb[0].mxu0
        %v3555 = vadd.f32 %v3514, %v3554
        %v3556 = vpop.f32.mrb[0].mxu0
        %v3557 = vadd.f32 %v3516, %v3556
        %v3558 = vpop.f32.mrb[0].mxu0
        %v3559 = vpop.f32.mrb[0].mxu0
        %3560 = vdwg.mxu0
        %3561 = vmatprep.subr.bf16.mxu0 %v1813
        %3562 = vmatpush1.bf16.msra.mxu0 %v1812
        %3563 = vmatprep.subr.bf16.mxu0 %v1815
        %3564 = vmatpush1.bf16.msra.mxu0 %v1814
        %3565 = vmatprep.subr.bf16.mxu0 %v1817
        %3566 = vmatpush1.bf16.msra.mxu0 %v1816
        %3567 = vmatprep.subr.bf16.mxu0 %v1819
        %3568 = vmatpush1.bf16.msra.mxu0 %v1818
        %3569 = vmatprep.subr.bf16.mxu0 %v1821
        %3570 = vmatpush1.bf16.msra.mxu0 %v1820
        %3571 = vmatprep.subr.bf16.mxu0 %v1823
        %3572 = vmatpush1.bf16.msra.mxu0 %v1822
        %3573 = vmatprep.subr.bf16.mxu0 %v1825
        %3574 = vmatpush1.bf16.msra.mxu0 %v1824
        %3575 = vmatprep.subr.bf16.mxu0 %v1827
        %3576 = vmatpush1.bf16.msra.mxu0 %v1826
        %3577 = vmatprep.subr.bf16.mxu0 %v1829
        %3578 = vmatpush1.bf16.msra.mxu0 %v1828
        %3579 = vmatprep.subr.bf16.mxu0 %v1831
        %3580 = vmatpush1.bf16.msra.mxu0 %v1830
        %3581 = vmatprep.subr.bf16.mxu0 %v1833
        %3582 = vmatpush1.bf16.msra.mxu0 %v1832
        %3583 = vmatprep.subr.bf16.mxu0 %v1835
        %3584 = vmatpush1.bf16.msra.mxu0 %v1834
        %3585 = vmatprep.subr.bf16.mxu0 %v1837
        %3586 = vmatpush1.bf16.msra.mxu0 %v1836
        %3587 = vmatprep.subr.bf16.mxu0 %v1839
        %3588 = vmatpush1.bf16.msra.mxu0 %v1838
        %3589 = vmatprep.subr.bf16.mxu0 %v1841
        %3590 = vmatpush1.bf16.msra.mxu0 %v1840
        %3591 = vmatprep.subr.bf16.mxu0 %v1843
        %3592 = vmatpush1.bf16.msra.mxu0 %v1842
        %3593 = vmatprep.mubr.bf16.mxu0 %v2337
        %3594 = vmatmul.mubr.bf16.gmra.mrb[0].mxu0 %v2323
        %v3595 = vpop.f32.mrb[0].mxu0
        %v3596 = vadd.f32 %v3555, %v3595
        %v3597 = vpop.f32.mrb[0].mxu0
        %v3598 = vadd.f32 %v3557, %v3597
        %v3599 = vpop.f32.mrb[0].mxu0
        %v3600 = vpop.f32.mrb[0].mxu0
        %3601 = vdwg.mxu0
        %3602 = vmatprep.subr.bf16.mxu0 %v1845
        %3603 = vmatpush1.bf16.msra.mxu0 %v1844
        %3604 = vmatprep.subr.bf16.mxu0 %v1847
        %3605 = vmatpush1.bf16.msra.mxu0 %v1846
        %3606 = vmatprep.subr.bf16.mxu0 %v1849
        %3607 = vmatpush1.bf16.msra.mxu0 %v1848
        %3608 = vmatprep.subr.bf16.mxu0 %v1851
        %3609 = vmatpush1.bf16.msra.mxu0 %v1850
        %3610 = vmatprep.subr.bf16.mxu0 %v1853
        %3611 = vmatpush1.bf16.msra.mxu0 %v1852
        %3612 = vmatprep.subr.bf16.mxu0 %v1855
        %3613 = vmatpush1.bf16.msra.mxu0 %v1854
        %3614 = vmatprep.subr.bf16.mxu0 %v1857
        %3615 = vmatpush1.bf16.msra.mxu0 %v1856
        %3616 = vmatprep.subr.bf16.mxu0 %v1859
        %3617 = vmatpush1.bf16.msra.mxu0 %v1858
        %3618 = vmatprep.subr.bf16.mxu0 %v1861
        %3619 = vmatpush1.bf16.msra.mxu0 %v1860
        %3620 = vmatprep.subr.bf16.mxu0 %v1863
        %3621 = vmatpush1.bf16.msra.mxu0 %v1862
        %3622 = vmatprep.subr.bf16.mxu0 %v1865
        %3623 = vmatpush1.bf16.msra.mxu0 %v1864
        %3624 = vmatprep.subr.bf16.mxu0 %v1867
        %3625 = vmatpush1.bf16.msra.mxu0 %v1866
        %3626 = vmatprep.subr.bf16.mxu0 %v1869
        %3627 = vmatpush1.bf16.msra.mxu0 %v1868
        %3628 = vmatprep.subr.bf16.mxu0 %v1871
        %3629 = vmatpush1.bf16.msra.mxu0 %v1870
        %3630 = vmatprep.subr.bf16.mxu0 %v1873
        %3631 = vmatpush1.bf16.msra.mxu0 %v1872
        %3632 = vmatprep.subr.bf16.mxu0 %v1875
        %3633 = vmatpush1.bf16.msra.mxu0 %v1874
        %3634 = vmatprep.mubr.bf16.mxu0 %v2347
        %3635 = vmatmul.mubr.bf16.gmra.mrb[0].mxu0 %v2345
        %v3636 = vpop.f32.mrb[0].mxu0
        %v3637 = vadd.f32 %v3596, %v3636
        %v3638 = vpop.f32.mrb[0].mxu0
        %v3639 = vadd.f32 %v3598, %v3638
        %v3640 = vpop.f32.mrb[0].mxu0
        %v3641 = vpop.f32.mrb[0].mxu0
        %3642 = vdwg.mxu0
        %3643 = vmatprep.subr.bf16.mxu0 %v1877
        %3644 = vmatpush1.bf16.msra.mxu0 %v1876
        %3645 = vmatprep.subr.bf16.mxu0 %v1879
        %3646 = vmatpush1.bf16.msra.mxu0 %v1878
        %3647 = vmatprep.subr.bf16.mxu0 %v1881
        %3648 = vmatpush1.bf16.msra.mxu0 %v1880
        %3649 = vmatprep.subr.bf16.mxu0 %v1883
        %3650 = vmatpush1.bf16.msra.mxu0 %v1882
        %3651 = vmatprep.subr.bf16.mxu0 %v1885
        %3652 = vmatpush1.bf16.msra.mxu0 %v1884
        %3653 = vmatprep.subr.bf16.mxu0 %v1887
        %3654 = vmatpush1.bf16.msra.mxu0 %v1886
        %3655 = vmatprep.subr.bf16.mxu0 %v1889
        %3656 = vmatpush1.bf16.msra.mxu0 %v1888
        %3657 = vmatprep.subr.bf16.mxu0 %v1891
        %3658 = vmatpush1.bf16.msra.mxu0 %v1890
        %3659 = vmatprep.subr.bf16.mxu0 %v1893
        %3660 = vmatpush1.bf16.msra.mxu0 %v1892
        %3661 = vmatprep.subr.bf16.mxu0 %v1895
        %3662 = vmatpush1.bf16.msra.mxu0 %v1894
        %3663 = vmatprep.subr.bf16.mxu0 %v1897
        %3664 = vmatpush1.bf16.msra.mxu0 %v1896
        %3665 = vmatprep.subr.bf16.mxu0 %v1899
        %3666 = vmatpush1.bf16.msra.mxu0 %v1898
        %3667 = vmatprep.subr.bf16.mxu0 %v1901
        %3668 = vmatpush1.bf16.msra.mxu0 %v1900
        %3669 = vmatprep.subr.bf16.mxu0 %v1903
        %3670 = vmatpush1.bf16.msra.mxu0 %v1902
        %3671 = vmatprep.subr.bf16.mxu0 %v1905
        %3672 = vmatpush1.bf16.msra.mxu0 %v1904
        %3673 = vmatprep.subr.bf16.mxu0 %v1907
        %3674 = vmatpush1.bf16.msra.mxu0 %v1906
        %3675 = vmatprep.mubr.bf16.mxu0 %v2344
        %3676 = vmatmul.mubr.bf16.gmra.mrb[0].mxu0 %v2330
        %v3677 = vpop.f32.mrb[0].mxu0
        %v3678 = vadd.f32 %v3637, %v3677
        %v3679 = vpop.f32.mrb[0].mxu0
        %v3680 = vadd.f32 %v3639, %v3679
        %v3681 = vpop.f32.mrb[0].mxu0
        %v3682 = vpop.f32.mrb[0].mxu0
        %3683 = vdwg.mxu0
        %3684 = vmatprep.subr.bf16.mxu0 %v1909
        %3685 = vmatpush1.bf16.msra.mxu0 %v1908
        %3686 = vmatprep.subr.bf16.mxu0 %v1911
        %3687 = vmatpush1.bf16.msra.mxu0 %v1910
        %3688 = vmatprep.subr.bf16.mxu0 %v1913
        %3689 = vmatpush1.bf16.msra.mxu0 %v1912
        %3690 = vmatprep.subr.bf16.mxu0 %v1915
        %3691 = vmatpush1.bf16.msra.mxu0 %v1914
        %3692 = vmatprep.subr.bf16.mxu0 %v1917
        %3693 = vmatpush1.bf16.msra.mxu0 %v1916
        %3694 = vmatprep.subr.bf16.mxu0 %v1919
        %3695 = vmatpush1.bf16.msra.mxu0 %v1918
        %3696 = vmatprep.subr.bf16.mxu0 %v1921
        %3697 = vmatpush1.bf16.msra.mxu0 %v1920
        %3698 = vmatprep.subr.bf16.mxu0 %v1923
        %3699 = vmatpush1.bf16.msra.mxu0 %v1922
        %3700 = vmatprep.subr.bf16.mxu0 %v1925
        %3701 = vmatpush1.bf16.msra.mxu0 %v1924
        %3702 = vmatprep.subr.bf16.mxu0 %v1927
        %3703 = vmatpush1.bf16.msra.mxu0 %v1926
        %3704 = vmatprep.subr.bf16.mxu0 %v1929
        %3705 = vmatpush1.bf16.msra.mxu0 %v1928
        %3706 = vmatprep.subr.bf16.mxu0 %v1931
        %3707 = vmatpush1.bf16.msra.mxu0 %v1930
        %3708 = vmatprep.subr.bf16.mxu0 %v1933
        %3709 = vmatpush1.bf16.msra.mxu0 %v1932
        %3710 = vmatprep.subr.bf16.mxu0 %v1935
        %3711 = vmatpush1.bf16.msra.mxu0 %v1934
        %3712 = vmatprep.subr.bf16.mxu0 %v1937
        %3713 = vmatpush1.bf16.msra.mxu0 %v1936
        %3714 = vmatprep.subr.bf16.mxu0 %v1939
        %3715 = vmatpush1.bf16.msra.mxu0 %v1938
        %3716 = vmatprep.mubr.bf16.mxu0 %v2348
        %3717 = vmatmul.mubr.bf16.gmra.mrb[0].mxu0 %v2346
        %v3718 = vpop.f32.mrb[0].mxu0
        %v3719 = vadd.f32 %v3678, %v3718
        %v3720 = vpop.f32.mrb[0].mxu0
        %v3721 = vadd.f32 %v3680, %v3720
        %v3722 = vpop.f32.mrb[0].mxu0
        %v3723 = vpop.f32.mrb[0].mxu0
        %3724 = vdwg.mxu0
        %v3727 = vcombine.low %v3719, %v3721
        %v3729 = vunpack.c.l.s4 1983009808
        %v3730 = vunpack.c.0.s8 %v3729
        %v3731 = vlaneseq
        %v3732 = vshrl.u32 %v3731, 7
        %v3733 = vsub.s32 %v3730, %v3732
        %v3734 = vrot.slane %v3727, %v3733
        %v3736 = vadd.f32 %v1940, %v3734
        %3737 = vst [vmem:[#allocation2] sm:$0xf] %v3736
        %p3738 = scmp.eq.s32.totalorder %s27, 3
        // Predicated region
        $region81: #{discriminator_head_forward.1} parent=51 // pred_check
          %p3739 = pneg %p3738
        $region82: #{discriminator_head_forward.1} parent=51 // pred_check_branch
          %3741 = sbr.rel (%p3739) target = $region84
        $region83: #{discriminator_head_forward.1} parent=51 // pred_region
          %v3742 = vld [vmem:[#allocation2] sm:$0xf]
          %v3743 = vld [vmem:[#allocation6] sm:$0x3]
          %v3745 = vlaneseq
          %v3746 = vshrl.u32 %v3745, 7
          %v3747 = vsub.s32 0, %v3746
          %v3748 = vrot.slane %v3743, %v3747
          %v3749 = vlaneseq
          %v3750 = vshrl.u32 %v3749, 7
          %v3751 = vsub.s32 1, %v3750
          %v3752 = vrot.slane %v3743, %v3751
          %v3753 = vcombine.low %v3748, %v3752
          %v3755 = vunpack.c.l.s4 1983009808
          %v3756 = vunpack.c.0.s8 %v3755
          %v3757 = vlaneseq
          %v3758 = vshrl.u32 %v3757, 7
          %v3759 = vsub.s32 %v3756, %v3758
          %v3760 = vrot.slane %v3753, %v3759
          %v3762 = vmul.f32 %v3742, %v3760
          %v3763 = vld [vmem:[#allocation8] sm:$0x3]
          %v3765 = vlaneseq
          %v3766 = vshrl.u32 %v3765, 7
          %v3767 = vsub.s32 0, %v3766
          %v3768 = vrot.slane %v3763, %v3767
          %v3769 = vlaneseq
          %v3770 = vshrl.u32 %v3769, 7
          %v3771 = vsub.s32 1, %v3770
          %v3772 = vrot.slane %v3763, %v3771
          %v3773 = vcombine.low %v3768, %v3772
          %v3775 = vunpack.c.l.s4 1983009808
          %v3776 = vunpack.c.0.s8 %v3775
          %v3777 = vlaneseq
          %v3778 = vshrl.u32 %v3777, 7
          %v3779 = vsub.s32 %v3776, %v3778
          %v3780 = vrot.slane %v3773, %v3779
          %v3782 = vadd.f32 %v3762, %v3780
          %vm3783 = vcmp.ge.f32.partialorder %v3782, 0.0
          %v3784 = vmul.f32 %v3782, 0.01
          %v3785 = vsel %vm3783, %v3782, %v3784
          %v3786 = vld [vmem:[#allocation9] sm:$0xff]
          %v3787 = vld [vmem:[#allocation9 + $0x8] sm:$0xff]
          %v3788 = vld [vmem:[#allocation9 + $0x10] sm:$0xff]
          %v3789 = vld [vmem:[#allocation9 + $0x18] sm:$0xff]
          %v3790 = vld [vmem:[#allocation9 + $0x20] sm:$0xff]
          %v3791 = vld [vmem:[#allocation9 + $0x28] sm:$0xff]
          %v3792 = vld [vmem:[#allocation9 + $0x30] sm:$0xff]
          %v3793 = vld [vmem:[#allocation9 + $0x38] sm:$0xff]
          %v3794 = vld [vmem:[#allocation9 + $0x40] sm:$0xff]
          %v3795 = vld [vmem:[#allocation9 + $0x48] sm:$0xff]
          %v3796 = vld [vmem:[#allocation9 + $0x50] sm:$0xff]
          %v3797 = vld [vmem:[#allocation9 + $0x58] sm:$0xff]
          %v3798 = vld [vmem:[#allocation9 + $0x60] sm:$0xff]
          %v3799 = vld [vmem:[#allocation9 + $0x68] sm:$0xff]
          %v3800 = vld [vmem:[#allocation9 + $0x70] sm:$0xff]
          %v3801 = vld [vmem:[#allocation9 + $0x78] sm:$0xff]
          %v3802 = vld [vmem:[#allocation9 + $0x80] sm:$0xff]
          %v3803 = vld [vmem:[#allocation9 + $0x88] sm:$0xff]
          %v3804 = vld [vmem:[#allocation9 + $0x90] sm:$0xff]
          %v3805 = vld [vmem:[#allocation9 + $0x98] sm:$0xff]
          %v3806 = vld [vmem:[#allocation9 + $0xa0] sm:$0xff]
          %v3807 = vld [vmem:[#allocation9 + $0xa8] sm:$0xff]
          %v3808 = vld [vmem:[#allocation9 + $0xb0] sm:$0xff]
          %v3809 = vld [vmem:[#allocation9 + $0xb8] sm:$0xff]
          %v3810 = vld [vmem:[#allocation9 + $0xc0] sm:$0xff]
          %v3811 = vld [vmem:[#allocation9 + $0xc8] sm:$0xff]
          %v3812 = vld [vmem:[#allocation9 + $0xd0] sm:$0xff]
          %v3813 = vld [vmem:[#allocation9 + $0xd8] sm:$0xff]
          %v3814 = vld [vmem:[#allocation9 + $0xe0] sm:$0xff]
          %v3815 = vld [vmem:[#allocation9 + $0xe8] sm:$0xff]
          %v3816 = vld [vmem:[#allocation9 + $0xf0] sm:$0xff]
          %v3817 = vld [vmem:[#allocation9 + $0xf8] sm:$0xff]
          %v3818 = vld [vmem:[#allocation11] sm:$0x1]
          %v3820 = vlaneseq
          %v3821 = vshrl.u32 %v3820, 7
          %v3822 = vsub.s32 0, %v3821
          %v3823 = vrot.slane %v3818, %v3822
          %v3827 = vunpack.c.l.s4 1983009808
          %v3828 = vunpack.c.0.s8 %v3827
          %v3829 = vlaneseq
          %v3830 = vshrl.u32 %v3829, 7
          %v3831 = vsub.s32 %v3828, %v3830
          %v3832 = vrot.slane %v3785, %v3831
          %v3833 = vcombine.high %v3832, %v3832
          %3836 = vmatprep.subr.mxu0 0.0
          %3837 = vmatpush1.msra.mxu0 %v3786
          %3838 = vmatprep.subr.mxu0 0.0
          %3839 = vmatpush1.msra.mxu0 %v3787
          %3840 = vmatprep.subr.mxu0 0.0
          %3841 = vmatpush1.msra.mxu0 %v3788
          %3842 = vmatprep.subr.mxu0 0.0
          %3843 = vmatpush1.msra.mxu0 %v3789
          %3844 = vmatprep.subr.mxu0 0.0
          %3845 = vmatpush1.msra.mxu0 %v3790
          %3846 = vmatprep.subr.mxu0 0.0
          %3847 = vmatpush1.msra.mxu0 %v3791
          %3848 = vmatprep.subr.mxu0 0.0
          %3849 = vmatpush1.msra.mxu0 %v3792
          %3850 = vmatprep.subr.mxu0 0.0
          %3851 = vmatpush1.msra.mxu0 %v3793
          %3852 = vmatprep.subr.mxu0 0.0
          %3853 = vmatpush1.msra.mxu0 %v3794
          %3854 = vmatprep.subr.mxu0 0.0
          %3855 = vmatpush1.msra.mxu0 %v3795
          %3856 = vmatprep.subr.mxu0 0.0
          %3857 = vmatpush1.msra.mxu0 %v3796
          %3858 = vmatprep.subr.mxu0 0.0
          %3859 = vmatpush1.msra.mxu0 %v3797
          %3860 = vmatprep.subr.mxu0 0.0
          %3861 = vmatpush1.msra.mxu0 %v3798
          %3862 = vmatprep.subr.mxu0 0.0
          %3863 = vmatpush1.msra.mxu0 %v3799
          %3864 = vmatprep.subr.mxu0 0.0
          %3865 = vmatpush1.msra.mxu0 %v3800
          %3866 = vmatprep.subr.mxu0 0.0
          %3867 = vmatpush1.msra.mxu0 %v3801
          %3868 = vmatprep.subr.mxu0 0.0
          %3869 = vmatpush1.msra.mxu0 %v3802
          %3870 = vmatprep.subr.mxu0 0.0
          %3871 = vmatpush1.msra.mxu0 %v3803
          %3872 = vmatprep.subr.mxu0 0.0
          %3873 = vmatpush1.msra.mxu0 %v3804
          %3874 = vmatprep.subr.mxu0 0.0
          %3875 = vmatpush1.msra.mxu0 %v3805
          %3876 = vmatprep.subr.mxu0 0.0
          %3877 = vmatpush1.msra.mxu0 %v3806
          %3878 = vmatprep.subr.mxu0 0.0
          %3879 = vmatpush1.msra.mxu0 %v3807
          %3880 = vmatprep.subr.mxu0 0.0
          %3881 = vmatpush1.msra.mxu0 %v3808
          %3882 = vmatprep.subr.mxu0 0.0
          %3883 = vmatpush1.msra.mxu0 %v3809
          %3884 = vmatprep.subr.mxu0 0.0
          %3885 = vmatpush1.msra.mxu0 %v3810
          %3886 = vmatprep.subr.mxu0 0.0
          %3887 = vmatpush1.msra.mxu0 %v3811
          %3888 = vmatprep.subr.mxu0 0.0
          %3889 = vmatpush1.msra.mxu0 %v3812
          %3890 = vmatprep.subr.mxu0 0.0
          %3891 = vmatpush1.msra.mxu0 %v3813
          %3892 = vmatprep.subr.mxu0 0.0
          %3893 = vmatpush1.msra.mxu0 %v3814
          %3894 = vmatprep.subr.mxu0 0.0
          %3895 = vmatpush1.msra.mxu0 %v3815
          %3896 = vmatprep.subr.mxu0 0.0
          %3897 = vmatpush1.msra.mxu0 %v3816
          %3898 = vmatprep.subr.mxu0 0.0
          %3899 = vmatpush1.msra.mxu0 %v3817
          %3900 = vmatprep.mubr.f32.mxu0 %v3833
          %3901 = vmatmul.mubr.f32.gmra.mrb[0].mxu0 %v3832
          %v3902 = vpop.f32.mrb[0].mxu0
          %v3903 = vadd.f32 %v3823, %v3902
          %v3904 = vpop.f32.mrb[0].mxu0
          %3905 = vdwg.mxu0
          %vm3906 = vcmp.ge.f32.partialorder %v3903, 0.0
          %v3907 = vmul.f32 %v3903, 0.01
          %v3908 = vsel %vm3906, %v3903, %v3907
          %v3909 = vld [vmem:[#allocation12] sm:$0x1]
          %v3911 = vlaneseq
          %v3912 = vshrl.u32 %v3911, 7
          %v3913 = vsub.s32 0, %v3912
          %v3914 = vrot.slane %v3909, %v3913
          %v3916 = vmul.f32 %v3908, %v3914
          %vm3917 = vcmask 1041408
          %v3918 = vsel %vm3917, %v3916, 0.0
          %3919 = vadd.xlane.f32.xlu0 %v3918
          %v3920 = vpop.xlane.xlu0 %3919
          %v3921 = vld [vmem:[#allocation3] sm:$0x1]
          %v3923 = vlaneseq
          %v3924 = vshrl.u32 %v3923, 7
          %v3925 = vsub.s32 0, %v3924
          %v3926 = vrot.slane %v3921, %v3925
          %v3928 = vadd.f32 %v3920, %v3926
          %v3929 = vsub.f32 0.0, %v3928
          %v3930 = vmul.f32 %v3929, 1.442695
          %v3931 = vpow.pop %v3930
          %v3932 = vadd.f32 %v3931, 1.0
          %v3933 = vrcp.pop %v3932
          %v3934 = vmul.f32 1.0, %v3933
          %vm3935 = vcmask 1024
          %3936 = vst.msk [vmem:[%s8] sm:$0x3] %vm3935, %v3934
        $region84: #{discriminator_head_forward.1} parent=51 // pred_fallthru
          _
        // Predicated region
        $region85: #{discriminator_head_forward.1} parent=51 // pred_check
          %p3937 = pneg %p218
        $region86: #{discriminator_head_forward.1} parent=51 // pred_check_branch
          %3939 = sbr.rel (%p3937) target = $region88
        $region87: #{discriminator_head_forward.1} parent=51 // pred_region
          _
        $region88: #{discriminator_head_forward.1} parent=51 // pred_fallthru
          _
        // Predicated region
        $region89: #{discriminator_head_forward.1} parent=51 // pred_check
          %p3940 = pneg %p218
        $region90: #{discriminator_head_forward.1} parent=51 // pred_check_branch
          %3942 = sbr.rel (%p3940) target = $region92
        $region91: #{discriminator_head_forward.1} parent=51 // pred_region
          _
        $region92: #{discriminator_head_forward.1} parent=51 // pred_fallthru
          _
      $region52: #{discriminator_head_forward.1} parent=5 // pred_fallthru
        _
      %p3943 = scmp.le.s32.totalorder 2, %s22
      // Predicated region
      $region93: #{discriminator_head_forward.1} parent=5 // pred_check
        %p3944 = pneg %p3943
      $region94: #{discriminator_head_forward.1} parent=5 // pred_check_branch
        %3946 = sbr.rel (%p3944) target = $region96
      $region95: #{discriminator_head_forward.1} parent=5 // pred_region
        %s3947 = ssub.s32 %s22, 2
      $region96: #{discriminator_head_forward.1} parent=5 // pred_fallthru
        _
    $region6: #{discriminator_head_forward.1} parent=1 // loop_footer
      %s26 = sadd.s32 1, %s22
    $region7: #{discriminator_head_forward.1} parent=1 // loop_footer_branch
      %21 = sbr.rel target = $region3
    $region8: #{discriminator_head_forward.1} parent=1 // loop_exit
      _
    %3948 = vsyncpa [#allocation5], 1
    %s3949 = scalar_lea.sflag [#allocation5], 1
    %3950 = vsyncpa %s3949, 1
    %3951 = vsyncpa [#allocation7], 1
    %3952 = vsyncpa [#allocation10], 1
    %3953 = vsyncpa [#allocation13], 1

</llo_original>
